<compile_context>
chip_gen: v7x
topology: tpu7x:2x2x1
jax: 0.10.0
libtpu: 0.0.40
codegen_flags: <defaults>
</compile_context>

<pallas_src>
import numpy as np
import jax
import jax.numpy as jnp
from jax.experimental import pallas as pl
from jax.experimental.pallas import tpu as pltpu

N_AGENTS = 22          # real batch size per timestep (22 intersections)
BATCH_PAD = 24         # padded to a multiple of 8 sublanes
INPUT_DIM = 16         # observation dim (small synthetic choice)
HIDDEN_DIM = 32        # hidden dim (small synthetic choice)
OUT_DIM = 8            # 8 phases -> matches the mask width
LANES = 128            # lane-dense output width
BN_EPS = 1e-5
LEAKY_SLOPE = 0.01


def _policy_kernel(x_ref, psum_ref, pbc_ref, w1_ref, b1_ref, w2_ref, b2_ref,
                   w3_ref, b3_ref, bias_ref, out_ref):
    x = x_ref[...]                                   # (M, 16): t_blk timesteps * 24 rows

    # ---- BatchNorm1d(affine=False), training-mode stats PER TIMESTEP over its
    # 22 real rows.  Segment sums over each timestep's 24 rows are done with a
    # 0/1 selector matmul; pad rows are zero so the 24-row sums equal the
    # 22-row sums exactly, and var = E[x^2] - mean^2 is exact.
    inv_n = jnp.float32(1.0 / N_AGENTS)
    sum_g = jnp.dot(psum_ref[...], x, preferred_element_type=jnp.float32)       # (t_blk, 16)
    sum2_g = jnp.dot(psum_ref[...], x * x, preferred_element_type=jnp.float32)  # (t_blk, 16)
    mean_g = sum_g * inv_n
    var_g = jnp.maximum(sum2_g * inv_n - mean_g * mean_g, 0.0)
    scale_g = jax.lax.rsqrt(var_g + BN_EPS)
    shift_g = -mean_g * scale_g
    # broadcast the per-timestep stats back to per-row via the transposed selector
    scale = jnp.dot(pbc_ref[...], scale_g, preferred_element_type=jnp.float32)  # (M, 16)
    shift = jnp.dot(pbc_ref[...], shift_g, preferred_element_type=jnp.float32)  # (M, 16)
    xn = x * scale + shift

    # ---- fc1 / fc2 / fc3 with leaky_relu, merged over timesteps (M rows) ----
    h1 = jnp.dot(xn, w1_ref[...], preferred_element_type=jnp.float32) + b1_ref[...]
    h1 = jnp.where(h1 > 0, h1, LEAKY_SLOPE * h1)
    h2 = jnp.dot(h1, w2_ref[...], preferred_element_type=jnp.float32) + b2_ref[...]
    h2 = jnp.where(h2 > 0, h2, LEAKY_SLOPE * h2)
    out = jnp.dot(h2, w3_ref[...], preferred_element_type=jnp.float32) + b3_ref[...]
    out = jnp.where(out > 0, out, LEAKY_SLOPE * out)                             # (M, 128)

    # ---- additive mask (-inf on masked phases and on the 120 pad lanes) + softmax
    out1 = out + bias_ref[...]
    row_max = jnp.max(out1, axis=1, keepdims=True)
    diff = out1 - row_max                            # exactly 0.0 on the max lane
    e = jnp.exp(diff)                                # exp(-inf) = 0 on masked lanes
    denom = jnp.sum(e, axis=1, keepdims=True)
    probs = e * pl.reciprocal(denom, approx=True)    # EUP vrcp; ~1e-3 row-sum error
    # (use an exact divide if probs feed a downstream loss)

    # ---- onehot(argmax): reuse `diff` instead of a second broadcast compare
    # against row_max; first index wins on ties.
    cols = jax.lax.broadcasted_iota(jnp.int32, out1.shape, 1)
    first_idx = jnp.min(jnp.where(diff >= 0.0, cols, LANES), axis=1, keepdims=True)
    act = jnp.where(cols == first_idx + OUT_DIM, 1.0, 0.0)   # onehot at lanes 8..15

    # packed output: lanes 0..7 = probs, lanes 8..15 = onehot action, rest = 0
    out_ref[...] = probs + act


def _prepare_constants(params, mask22, t_blk):
    """Everything that does not depend on the observations, built ONCE:
    lane-padded fc3, additive -inf mask bias tiled to a full block, and the
    per-timestep segment-sum / broadcast-back selector matrices."""
    w1, b1, w2, b2, w3, b3 = params

    w3p = jnp.zeros((HIDDEN_DIM, LANES), jnp.float32).at[:, :OUT_DIM].set(w3)
    b3p = jnp.zeros((1, LANES), jnp.float32).at[:, :OUT_DIM].set(b3)

    # additive mask for one timestep: -inf on masked phases and on all pad
    # lanes; the 2 pad rows keep lanes 0..7 open so their (discarded) softmax
    # stays NaN-free.  Tiled to the t_blk timesteps of one block (built once,
    # constant index_map -> DMA'd once, VMEM-resident).
    bias = jnp.full((BATCH_PAD, LANES), -jnp.inf, jnp.float32)
    bias = bias.at[:, :OUT_DIM].set(0.0)
    bias = bias.at[:N_AGENTS, :OUT_DIM].set(jnp.where(mask22 > 0.5, -jnp.inf, 0.0))
    bias_rows = jnp.tile(bias, (t_blk, 1))                         # (t_blk*24, 128)

    # 0/1 selector: row r of a block belongs to timestep r // 24.  Lets the
    # kernel do per-timestep BatchNorm stats as two MXU matmuls while keeping
    # the whole block one 2D (t_blk*24, ...) matmul chain.
    m_blk = t_blk * BATCH_PAD
    sel = np.zeros((m_blk, t_blk), np.float32)
    sel[np.arange(m_blk), np.arange(m_blk) // BATCH_PAD] = 1.0
    p_bcast = jnp.asarray(sel)                                     # (m_blk, t_blk)
    p_sum = jnp.asarray(sel.T)                                     # (t_blk, m_blk)

    return dict(w1=w1, b1=b1, w2=w2, b2=b2, w3p=w3p, b3p=b3p,
                bias_rows=bias_rows, p_sum=p_sum, p_bcast=p_bcast)


def make_discrete_policy(params, mask22, t_blk=16):
    """Returns a jitted forward: obs (T, 22, 16) -> (act, probs), each
    (T, 22, 8) float32.  `t_blk` timesteps are fused per grid step
    (M = 24*t_blk rows per matmul; 16..64 is a sensible range); weights and the
    mask bias stay VMEM-resident across the whole grid."""
    consts = _prepare_constants(params, mask22, t_blk)
    m_blk = t_blk * BATCH_PAD

    @jax.jit
    def forward(obs):
        T = obs.shape[0]
        n_blocks = pl.cdiv(T, t_blk)
        t_pad = n_blocks * t_blk

        # sublane-pad each timestep 22 -> 24 rows (zeros), pad T to a multiple
        # of t_blk, flatten to 2D so each grid step is one (m_blk, 16) slab.
        xp = jnp.zeros((t_pad, BATCH_PAD, INPUT_DIM), jnp.float32)
        xp = xp.at[:T, :N_AGENTS, :].set(obs)
        xp = xp.reshape(t_pad * BATCH_PAD, INPUT_DIM)

        const = lambda g: (0, 0)
        packed = pl.pallas_call(
            _policy_kernel,
            out_shape=jax.ShapeDtypeStruct((t_pad * BATCH_PAD, LANES), jnp.float32),
            grid_spec=pltpu.PrefetchScalarGridSpec(
                num_scalar_prefetch=0,
                grid=(n_blocks,),
                in_specs=[
                    pl.BlockSpec((m_blk, INPUT_DIM), lambda g: (g, 0)),   # obs block
                    pl.BlockSpec((t_blk, m_blk), const),                  # segment-sum sel
                    pl.BlockSpec((m_blk, t_blk), const),                  # broadcast-back sel
                    pl.BlockSpec((INPUT_DIM, HIDDEN_DIM), const),         # w1
                    pl.BlockSpec((1, HIDDEN_DIM), const),                 # b1
                    pl.BlockSpec((HIDDEN_DIM, HIDDEN_DIM), const),        # w2
                    pl.BlockSpec((1, HIDDEN_DIM), const),                 # b2
                    pl.BlockSpec((HIDDEN_DIM, LANES), const),             # w3 (lane-padded)
                    pl.BlockSpec((1, LANES), const),                      # b3 (lane-padded)
                    pl.BlockSpec((m_blk, LANES), const),                  # -inf mask bias
                ],
                out_specs=pl.BlockSpec((m_blk, LANES), lambda g: (g, 0)),
            ),
            compiler_params=pltpu.CompilerParams(
                dimension_semantics=("parallel",),   # shards across v7x's 2 TensorCores
                vmem_limit_bytes=32 * 1024 * 1024,
            ),
        )(xp, consts["p_sum"], consts["p_bcast"], consts["w1"], consts["b1"],
          consts["w2"], consts["b2"], consts["w3p"], consts["b3p"],
          consts["bias_rows"])

        packed = packed.reshape(t_pad, BATCH_PAD, LANES)
        probs = packed[:T, :N_AGENTS, :OUT_DIM]
        act = packed[:T, :N_AGENTS, OUT_DIM:2 * OUT_DIM]
        return act, probs

    return forward


def reference_forward(obs, params, mask22):
    """Pure-JAX reference of the PyTorch forward (training-mode BN, 22 branch)."""
    w1, b1, w2, b2, w3, b3 = params

    def one_step(x):
        mean = jnp.mean(x, axis=0, keepdims=True)
        var = jnp.mean((x - mean) ** 2, axis=0, keepdims=True)   # biased, like BN training
        xn = (x - mean) / jnp.sqrt(var + BN_EPS)
        h1 = jax.nn.leaky_relu(xn @ w1 + b1, LEAKY_SLOPE)
        h2 = jax.nn.leaky_relu(h1 @ w2 + b2, LEAKY_SLOPE)
        out = jax.nn.leaky_relu(h2 @ w3 + b3, LEAKY_SLOPE)
        out1 = jnp.where(mask22 > 0.5, -jnp.inf, out)
        p = jax.nn.softmax(out1, axis=-1)
        a = jax.nn.one_hot(jnp.argmax(out1, axis=-1), OUT_DIM, dtype=jnp.float32)
        return a, p

    return jax.vmap(one_step)(obs)


def init_params(key):
    """Deterministic PyTorch-Linear-style init: U(-1/sqrt(fan_in), +1/sqrt(fan_in))."""
    ks = jax.random.split(key, 6)

    def linear(kw, kb, fan_in, fan_out):
        bound = 1.0 / np.sqrt(fan_in)
        w = jax.random.uniform(kw, (fan_in, fan_out), jnp.float32, -bound, bound)
        b = jax.random.uniform(kb, (1, fan_out), jnp.float32, -bound, bound)
        return w, b

    w1, b1 = linear(ks[0], ks[1], INPUT_DIM, HIDDEN_DIM)
    w2, b2 = linear(ks[2], ks[3], HIDDEN_DIM, HIDDEN_DIM)
    w3, b3 = linear(ks[4], ks[5], HIDDEN_DIM, OUT_DIM)
    return (w1, b1, w2, b2, w3, b3)


def build_mask22():
    phase = np.array([
        [0, 0, 0, 1, 0, 1, 1, 0],
        [0, 1, 0, 0, 0, 0, 1, 1],
        [0, 0, 0, 1, 1, 0, 0, 1],
        [0, 1, 0, 0, 1, 1, 0, 0],
        [1, 1, 1, 1, 1, 1, 1, 1],
    ], dtype=np.float32)
    phase = -phase + 1.0
    no_exist = np.arange(N_AGENTS) % 5          # synthetic stand-in for no_exist_22.npy
    mask22 = np.stack([phase[no_exist[i]] for i in range(N_AGENTS)], axis=0)
    return jnp.asarray(mask22, dtype=jnp.float32)


if __name__ == "__main__":
    T = 64            # timesteps batched through the grid
    T_BLK = 16        # timesteps fused per grid step -> M = 384 rows per matmul

    key = jax.random.PRNGKey(0)
    k_obs, k_params = jax.random.split(key)

    obs = jax.random.normal(k_obs, (T, N_AGENTS, INPUT_DIM), dtype=jnp.float32)
    params = init_params(k_params)
    mask22 = build_mask22()

    policy = make_discrete_policy(params, mask22, t_blk=T_BLK)
    act, probs = policy(obs)
    act = jax.block_until_ready(act)
    probs = jax.block_until_ready(probs)

    # ---- pure-JAX reference + sanity checks ----
    ref_act, ref_probs = reference_forward(obs, params, mask22)

    assert act.shape == (T, N_AGENTS, OUT_DIM)
    assert probs.shape == (T, N_AGENTS, OUT_DIM)
    assert bool(jnp.all(jnp.isfinite(probs)))
    # approx reciprocal -> allow small slack on the row sums
    assert bool(jnp.all(jnp.abs(jnp.sum(probs, axis=-1) - 1.0) < 1e-2))
    # exactly one action chosen per row
    assert bool(jnp.all(jnp.sum(act, axis=-1) == 1.0))
    # masked phases must get exactly zero probability and never be chosen
    m = mask22[None, :, :] > 0.5
    assert bool(jnp.all(jnp.where(m, probs, 0.0) == 0.0))
    assert bool(jnp.all(jnp.where(m, act, 0.0) == 0.0))
    # match the pure-JAX reference
    assert bool(jnp.all(jnp.abs(probs - ref_probs) < 1e-2))
    # the chosen phase is (numerically) an argmax of the reference probs
    chosen_p = jnp.sum(ref_probs * act, axis=-1)
    assert bool(jnp.all(chosen_p >= jnp.max(ref_probs, axis=-1) - 1e-3))

    print("KERNEL_OK")
</pallas_src>

<mosaic_0001>
module attributes {stable_mosaic.version = 11 : i64} {
  func.func @_policy_kernel(%arg0: i32, %arg1: memref<384x16xf32, #tpu.memory_space<vmem>>, %arg2: memref<16x384xf32, #tpu.memory_space<vmem>>, %arg3: memref<384x16xf32, #tpu.memory_space<vmem>>, %arg4: memref<16x32xf32, #tpu.memory_space<vmem>>, %arg5: memref<1x32xf32, #tpu.memory_space<vmem>>, %arg6: memref<32x32xf32, #tpu.memory_space<vmem>>, %arg7: memref<1x32xf32, #tpu.memory_space<vmem>>, %arg8: memref<32x128xf32, #tpu.memory_space<vmem>>, %arg9: memref<1x128xf32, #tpu.memory_space<vmem>>, %arg10: memref<384x128xf32, #tpu.memory_space<vmem>>, %arg11: memref<384x128xf32, #tpu.memory_space<vmem>>) attributes {dimension_semantics = [#tpu.dimension_semantics<parallel>], iteration_bounds = array<i64: 4>, scalar_prefetch = 0 : i64, scratch_operands = 0 : i64, tpu.core_type = #tpu.core_type<tc>, window_params = [{transform_indices = @transform_0, window_bounds = array<i64: 384, 16>}, {pipeline_mode = #tpu.pipeline_mode<synchronous>, transform_indices = @transform_1, window_bounds = array<i64: 16, 384>}, {pipeline_mode = #tpu.pipeline_mode<synchronous>, transform_indices = @transform_2, window_bounds = array<i64: 384, 16>}, {pipeline_mode = #tpu.pipeline_mode<synchronous>, transform_indices = @transform_3, window_bounds = array<i64: 16, 32>}, {pipeline_mode = #tpu.pipeline_mode<synchronous>, transform_indices = @transform_4, window_bounds = array<i64: 1, 32>}, {pipeline_mode = #tpu.pipeline_mode<synchronous>, transform_indices = @transform_5, window_bounds = array<i64: 32, 32>}, {pipeline_mode = #tpu.pipeline_mode<synchronous>, transform_indices = @transform_6, window_bounds = array<i64: 1, 32>}, {pipeline_mode = #tpu.pipeline_mode<synchronous>, transform_indices = @transform_7, window_bounds = array<i64: 32, 128>}, {pipeline_mode = #tpu.pipeline_mode<synchronous>, transform_indices = @transform_8, window_bounds = array<i64: 1, 128>}, {pipeline_mode = #tpu.pipeline_mode<synchronous>, transform_indices = @transform_9, window_bounds = array<i64: 384, 128>}, {transform_indices = @transform_10, window_bounds = array<i64: 384, 128>}]} {
    %c0 = arith.constant 0 : index
    %c0_0 = arith.constant 0 : index
    %0 = vector.load %arg1[%c0, %c0_0] : memref<384x16xf32, #tpu.memory_space<vmem>>, vector<384x16xf32>
    %c0_1 = arith.constant 0 : index
    %c0_2 = arith.constant 0 : index
    %1 = vector.load %arg2[%c0_1, %c0_2] : memref<16x384xf32, #tpu.memory_space<vmem>>, vector<16x384xf32>
    %cst = arith.constant dense<0.000000e+00> : vector<16x16xf32>
    %2 = tpu.matmul %1, %0, %cst {dimension_numbers = #tpu.dot_dimension_numbers<[1], [0], [0], [1], [0, 0, 1, 1], [], []>} : vector<16x384xf32>, vector<384x16xf32>, vector<16x16xf32> -> vector<16x16xf32>
    %c0_3 = arith.constant 0 : index
    %c0_4 = arith.constant 0 : index
    %3 = vector.load %arg2[%c0_3, %c0_4] : memref<16x384xf32, #tpu.memory_space<vmem>>, vector<16x384xf32>
    %4 = arith.mulf %0, %0 : vector<384x16xf32>
    %cst_5 = arith.constant dense<0.000000e+00> : vector<16x16xf32>
    %5 = tpu.matmul %3, %4, %cst_5 {dimension_numbers = #tpu.dot_dimension_numbers<[1], [0], [0], [1], [0, 0, 1, 1], [], []>} : vector<16x384xf32>, vector<384x16xf32>, vector<16x16xf32> -> vector<16x16xf32>
    %cst_6 = arith.constant 0.0454545468 : f32
    %6 = vector.broadcast %cst_6 : f32 to vector<16x16xf32>
    %7 = arith.mulf %2, %6 : vector<16x16xf32>
    %cst_7 = arith.constant 0.0454545468 : f32
    %8 = vector.broadcast %cst_7 : f32 to vector<16x16xf32>
    %9 = arith.mulf %5, %8 : vector<16x16xf32>
    %10 = arith.mulf %7, %7 : vector<16x16xf32>
    %11 = arith.subf %9, %10 : vector<16x16xf32>
    %cst_8 = arith.constant 0.000000e+00 : f32
    %12 = vector.broadcast %cst_8 : f32 to vector<16x16xf32>
    %13 = arith.maximumf %11, %12 : vector<16x16xf32>
    %cst_9 = arith.constant 9.99999974E-6 : f32
    %14 = vector.broadcast %cst_9 : f32 to vector<16x16xf32>
    %15 = arith.addf %13, %14 : vector<16x16xf32>
    %16 = math.rsqrt %15 : vector<16x16xf32>
    %cst_10 = arith.constant 0.000000e+00 : f32
    %17 = vector.broadcast %cst_10 : f32 to vector<16x16xf32>
    %18 = arith.subf %17, %7 : vector<16x16xf32>
    %19 = arith.mulf %18, %16 : vector<16x16xf32>
    %c0_11 = arith.constant 0 : index
    %c0_12 = arith.constant 0 : index
    %20 = vector.load %arg3[%c0_11, %c0_12] : memref<384x16xf32, #tpu.memory_space<vmem>>, vector<384x16xf32>
    %cst_13 = arith.constant dense<0.000000e+00> : vector<384x16xf32>
    %21 = tpu.matmul %20, %16, %cst_13 {dimension_numbers = #tpu.dot_dimension_numbers<[1], [0], [0], [1], [0, 0, 1, 1], [], []>} : vector<384x16xf32>, vector<16x16xf32>, vector<384x16xf32> -> vector<384x16xf32>
    %c0_14 = arith.constant 0 : index
    %c0_15 = arith.constant 0 : index
    %22 = vector.load %arg3[%c0_14, %c0_15] : memref<384x16xf32, #tpu.memory_space<vmem>>, vector<384x16xf32>
    %cst_16 = arith.constant dense<0.000000e+00> : vector<384x16xf32>
    %23 = tpu.matmul %22, %19, %cst_16 {dimension_numbers = #tpu.dot_dimension_numbers<[1], [0], [0], [1], [0, 0, 1, 1], [], []>} : vector<384x16xf32>, vector<16x16xf32>, vector<384x16xf32> -> vector<384x16xf32>
    %24 = arith.mulf %0, %21 : vector<384x16xf32>
    %25 = arith.addf %24, %23 : vector<384x16xf32>
    %c0_17 = arith.constant 0 : index
    %c0_18 = arith.constant 0 : index
    %26 = vector.load %arg4[%c0_17, %c0_18] : memref<16x32xf32, #tpu.memory_space<vmem>>, vector<16x32xf32>
    %cst_19 = arith.constant dense<0.000000e+00> : vector<384x32xf32>
    %27 = tpu.matmul %25, %26, %cst_19 {dimension_numbers = #tpu.dot_dimension_numbers<[1], [0], [0], [1], [0, 0, 1, 1], [], []>} : vector<384x16xf32>, vector<16x32xf32>, vector<384x32xf32> -> vector<384x32xf32>
    %c0_20 = arith.constant 0 : index
    %c0_21 = arith.constant 0 : index
    %28 = vector.load %arg5[%c0_20, %c0_21] : memref<1x32xf32, #tpu.memory_space<vmem>>, vector<1x32xf32>
    %29 = vector.broadcast %28 : vector<1x32xf32> to vector<384x32xf32>
    %30 = arith.addf %27, %29 : vector<384x32xf32>
    %cst_22 = arith.constant 0.000000e+00 : f32
    %31 = vector.broadcast %cst_22 : f32 to vector<384x32xf32>
    %32 = arith.cmpf ogt, %30, %31 : vector<384x32xf32>
    %cst_23 = arith.constant 0.00999999977 : f32
    %33 = vector.broadcast %cst_23 : f32 to vector<384x32xf32>
    %34 = arith.mulf %33, %30 : vector<384x32xf32>
    %35 = arith.select %32, %30, %34 : vector<384x32xi1>, vector<384x32xf32>
    %c0_24 = arith.constant 0 : index
    %c0_25 = arith.constant 0 : index
    %36 = vector.load %arg6[%c0_24, %c0_25] : memref<32x32xf32, #tpu.memory_space<vmem>>, vector<32x32xf32>
    %cst_26 = arith.constant dense<0.000000e+00> : vector<384x32xf32>
    %37 = tpu.matmul %35, %36, %cst_26 {dimension_numbers = #tpu.dot_dimension_numbers<[1], [0], [0], [1], [0, 0, 1, 1], [], []>} : vector<384x32xf32>, vector<32x32xf32>, vector<384x32xf32> -> vector<384x32xf32>
    %c0_27 = arith.constant 0 : index
    %c0_28 = arith.constant 0 : index
    %38 = vector.load %arg7[%c0_27, %c0_28] : memref<1x32xf32, #tpu.memory_space<vmem>>, vector<1x32xf32>
    %39 = vector.broadcast %38 : vector<1x32xf32> to vector<384x32xf32>
    %40 = arith.addf %37, %39 : vector<384x32xf32>
    %cst_29 = arith.constant 0.000000e+00 : f32
    %41 = vector.broadcast %cst_29 : f32 to vector<384x32xf32>
    %42 = arith.cmpf ogt, %40, %41 : vector<384x32xf32>
    %cst_30 = arith.constant 0.00999999977 : f32
    %43 = vector.broadcast %cst_30 : f32 to vector<384x32xf32>
    %44 = arith.mulf %43, %40 : vector<384x32xf32>
    %45 = arith.select %42, %40, %44 : vector<384x32xi1>, vector<384x32xf32>
    %c0_31 = arith.constant 0 : index
    %c0_32 = arith.constant 0 : index
    %46 = vector.load %arg8[%c0_31, %c0_32] : memref<32x128xf32, #tpu.memory_space<vmem>>, vector<32x128xf32>
    %cst_33 = arith.constant dense<0.000000e+00> : vector<384x128xf32>
    %47 = tpu.matmul %45, %46, %cst_33 {dimension_numbers = #tpu.dot_dimension_numbers<[1], [0], [0], [1], [0, 0, 1, 1], [], []>} : vector<384x32xf32>, vector<32x128xf32>, vector<384x128xf32> -> vector<384x128xf32>
    %c0_34 = arith.constant 0 : index
    %c0_35 = arith.constant 0 : index
    %48 = vector.load %arg9[%c0_34, %c0_35] : memref<1x128xf32, #tpu.memory_space<vmem>>, vector<1x128xf32>
    %49 = vector.broadcast %48 : vector<1x128xf32> to vector<384x128xf32>
    %50 = arith.addf %47, %49 : vector<384x128xf32>
    %cst_36 = arith.constant 0.000000e+00 : f32
    %51 = vector.broadcast %cst_36 : f32 to vector<384x128xf32>
    %52 = arith.cmpf ogt, %50, %51 : vector<384x128xf32>
    %cst_37 = arith.constant 0.00999999977 : f32
    %53 = vector.broadcast %cst_37 : f32 to vector<384x128xf32>
    %54 = arith.mulf %53, %50 : vector<384x128xf32>
    %55 = arith.select %52, %50, %54 : vector<384x128xi1>, vector<384x128xf32>
    %c0_38 = arith.constant 0 : index
    %c0_39 = arith.constant 0 : index
    %56 = vector.load %arg10[%c0_38, %c0_39] : memref<384x128xf32, #tpu.memory_space<vmem>>, vector<384x128xf32>
    %57 = arith.addf %55, %56 : vector<384x128xf32>
    %cst_40 = arith.constant dense<0xFF800000> : vector<384xf32>
    %58 = vector.multi_reduction <maximumf>, %57, %cst_40 [1] : vector<384x128xf32> to vector<384xf32>
    %59 = vector.shape_cast %58 : vector<384xf32> to vector<384x1xf32>
    %60 = vector.broadcast %59 : vector<384x1xf32> to vector<384x128xf32>
    %61 = arith.subf %57, %60 : vector<384x128xf32>
    %62 = math.exp %61 : vector<384x128xf32>
    %cst_41 = arith.constant dense<0.000000e+00> : vector<384xf32>
    %63 = vector.multi_reduction <add>, %62, %cst_41 [1] : vector<384x128xf32> to vector<384xf32>
    %64 = vector.shape_cast %63 : vector<384xf32> to vector<384x1xf32>
    %65 = tpu.reciprocal %64 {approx = true} : vector<384x1xf32> -> vector<384x1xf32>
    %66 = vector.broadcast %65 : vector<384x1xf32> to vector<384x128xf32>
    %67 = arith.mulf %62, %66 : vector<384x128xf32>
    %68 = tpu.iota {dimensions = array<i32: 1>} : vector<384x128xi32>
    %cst_42 = arith.constant 0.000000e+00 : f32
    %69 = vector.broadcast %cst_42 : f32 to vector<384x128xf32>
    %70 = arith.cmpf oge, %61, %69 : vector<384x128xf32>
    %c128_i32 = arith.constant 128 : i32
    %71 = vector.broadcast %c128_i32 : i32 to vector<384x128xi32>
    %72 = arith.select %70, %68, %71 : vector<384x128xi1>, vector<384x128xi32>
    %cst_43 = arith.constant dense<2147483647> : vector<384xi32>
    %73 = vector.multi_reduction <minsi>, %72, %cst_43 [1] : vector<384x128xi32> to vector<384xi32>
    %74 = vector.shape_cast %73 : vector<384xi32> to vector<384x1xi32>
    %c8_i32 = arith.constant 8 : i32
    %75 = vector.broadcast %c8_i32 : i32 to vector<384x1xi32>
    %76 = arith.addi %74, %75 : vector<384x1xi32>
    %77 = vector.broadcast %76 : vector<384x1xi32> to vector<384x128xi32>
    %78 = arith.cmpi eq, %68, %77 : vector<384x128xi32>
    %cst_44 = arith.constant 1.000000e+00 : f32
    %cst_45 = arith.constant 0.000000e+00 : f32
    %79 = vector.broadcast %cst_44 : f32 to vector<384x128xf32>
    %80 = vector.broadcast %cst_45 : f32 to vector<384x128xf32>
    %81 = arith.select %78, %79, %80 : vector<384x128xi1>, vector<384x128xf32>
    %82 = arith.addf %67, %81 : vector<384x128xf32>
    %c0_46 = arith.constant 0 : index
    %c0_47 = arith.constant 0 : index
    %83 = vector.load %arg11[%c0_46, %c0_47] : memref<384x128xf32, #tpu.memory_space<vmem>>, vector<384x128xf32>
    tpu.vector_store %arg11[%c0_46, %c0_47], %82 {strides = array<i32>} : memref<384x128xf32, #tpu.memory_space<vmem>>, vector<384x128xf32>,
    return
  }
  func.func @transform_0(%arg0: i32) -> (i32, i32) {
    %c0_i32 = arith.constant 0 : i32
    %c0_i32_0 = arith.constant 0 : i32
    return %arg0, %c0_i32 : i32, i32
  }
  func.func @transform_1(%arg0: i32) -> (i32, i32) {
    %c0_i32 = arith.constant 0 : i32
    %c0_i32_0 = arith.constant 0 : i32
    %c0_i32_1 = arith.constant 0 : i32
    return %c0_i32, %c0_i32_0 : i32, i32
  }
  func.func @transform_2(%arg0: i32) -> (i32, i32) {
    %c0_i32 = arith.constant 0 : i32
    %c0_i32_0 = arith.constant 0 : i32
    %c0_i32_1 = arith.constant 0 : i32
    return %c0_i32, %c0_i32_0 : i32, i32
  }
  func.func @transform_3(%arg0: i32) -> (i32, i32) {
    %c0_i32 = arith.constant 0 : i32
    %c0_i32_0 = arith.constant 0 : i32
    %c0_i32_1 = arith.constant 0 : i32
    return %c0_i32, %c0_i32_0 : i32, i32
  }
  func.func @transform_4(%arg0: i32) -> (i32, i32) {
    %c0_i32 = arith.constant 0 : i32
    %c0_i32_0 = arith.constant 0 : i32
    %c0_i32_1 = arith.constant 0 : i32
    return %c0_i32, %c0_i32_0 : i32, i32
  }
  func.func @transform_5(%arg0: i32) -> (i32, i32) {
    %c0_i32 = arith.constant 0 : i32
    %c0_i32_0 = arith.constant 0 : i32
    %c0_i32_1 = arith.constant 0 : i32
    return %c0_i32, %c0_i32_0 : i32, i32
  }
  func.func @transform_6(%arg0: i32) -> (i32, i32) {
    %c0_i32 = arith.constant 0 : i32
    %c0_i32_0 = arith.constant 0 : i32
    %c0_i32_1 = arith.constant 0 : i32
    return %c0_i32, %c0_i32_0 : i32, i32
  }
  func.func @transform_7(%arg0: i32) -> (i32, i32) {
    %c0_i32 = arith.constant 0 : i32
    %c0_i32_0 = arith.constant 0 : i32
    %c0_i32_1 = arith.constant 0 : i32
    return %c0_i32, %c0_i32_0 : i32, i32
  }
  func.func @transform_8(%arg0: i32) -> (i32, i32) {
    %c0_i32 = arith.constant 0 : i32
    %c0_i32_0 = arith.constant 0 : i32
    %c0_i32_1 = arith.constant 0 : i32
    return %c0_i32, %c0_i32_0 : i32, i32
  }
  func.func @transform_9(%arg0: i32) -> (i32, i32) {
    %c0_i32 = arith.constant 0 : i32
    %c0_i32_0 = arith.constant 0 : i32
    %c0_i32_1 = arith.constant 0 : i32
    return %c0_i32, %c0_i32_0 : i32, i32
  }
  func.func @transform_10(%arg0: i32) -> (i32, i32) {
    %c0_i32 = arith.constant 0 : i32
    %c0_i32_0 = arith.constant 0 : i32
    return %arg0, %c0_i32 : i32, i32
  }
}

</mosaic_0001>

<llo_original>
// kernel: forward.1
$region0: #{forward.1}
  #allocation0 [shape = 'u32[]', space=smem, size = 0x4, offset = 0x4, fixed_abs, tag = 'smem constant byte address 0x4 - core index']
  #allocation1 [shape = 'u32[144,128]{1,0:T(1,128)}', space=vmem, size = 0x12000, scoped, tag = 'internal scratch']
  %s0 = inlined_call_operand.vmem [shape: f32[1536,16], index: 0, kind: input, shape index: {}]
  %s1 = inlined_call_operand.vmem [shape: f32[16,384], index: 1, kind: input, shape index: {}]
  %s2 = inlined_call_operand.vmem [shape: f32[384,16], index: 2, kind: input, shape index: {}]
  %s3 = inlined_call_operand.vmem [shape: f32[16,32], index: 3, kind: input, shape index: {}]
  %s4 = inlined_call_operand.vmem [shape: f32[1,32], index: 4, kind: input, shape index: {}]
  %s5 = inlined_call_operand.vmem [shape: f32[32,32], index: 5, kind: input, shape index: {}]
  %s6 = inlined_call_operand.vmem [shape: f32[1,32], index: 6, kind: input, shape index: {}]
  %s7 = inlined_call_operand.vmem [shape: f32[32,128], index: 7, kind: input, shape index: {}]
  %s8 = inlined_call_operand.vmem [shape: f32[1,128], index: 8, kind: input, shape index: {}]
  %s9 = inlined_call_operand.vmem [shape: f32[384,128], index: 9, kind: input, shape index: {}]
  %s10 = inlined_call_operand.vmem [shape: f32[1536,128], index: 10, kind: output, shape index: {}]
  %s11 = sld [smem:[#allocation0]]
  $region73: #{forward.1} parent=0
    _
  %s13 = ssub.s32 1, %s11
  %s14 = scalar_select 0, %s13, %s11
  loop: start=0, step=1, limit=6
  $region2: #{forward.1} parent=0 // loop_pre_header
    _
  $region3: #{forward.1} parent=0 // loop_header
    %s16 = sphi 0, %s20
    %p17 = scmp.ge.s32.totalorder %s16, 6
    %s26 = sphi 0, %s28
    %s29 = sphi 0, %s26
    %s30 = sphi 0, %s29
    %s46 = sphi 0, %s30
    %s50 = sphi 0, %s50
    %s52 = sphi 0, %s50
    %s53 = sphi 0, %s52
    %s67 = sphi 0, %s53
    %s71 = sphi 0, %s71
    %s73 = sphi 0, %s71
    %s74 = sphi 0, %s73
    %s88 = sphi 0, %s74
    %s92 = sphi 0, %s92
    %s94 = sphi 0, %s92
    %s95 = sphi 0, %s94
    %s109 = sphi 0, %s95
    %s113 = sphi 0, %s113
    %s115 = sphi 0, %s113
    %s116 = sphi 0, %s115
    %s130 = sphi 0, %s116
    %s134 = sphi 0, %s134
    %s136 = sphi 0, %s134
    %s137 = sphi 0, %s136
    %s151 = sphi 0, %s137
    %s155 = sphi 0, %s155
    %s157 = sphi 0, %s155
    %s158 = sphi 0, %s157
    %s172 = sphi 0, %s158
    %s176 = sphi 0, %s176
    %s178 = sphi 0, %s176
    %s179 = sphi 0, %s178
    %s193 = sphi 0, %s179
    %s197 = sphi 0, %s197
    %s199 = sphi 0, %s197
    %s200 = sphi 0, %s199
    %s214 = sphi 0, %s200
    %s218 = sphi 0, %s218
    %s220 = sphi 0, %s218
    %s221 = sphi 0, %s220
    %s235 = sphi 0, %s221
    %s241 = sphi 0, %s243
    %s244 = sphi 0, %s241
    %s245 = sphi 0, %s244
    %s261 = sphi 0, %s245
  $region4: #{forward.1} parent=0 // loop_header_branch
    %19 = sbr.rel (%p17) target = $region8
  $region5: #{forward.1} parent=0 // loop_body
    %s21 = ssub.s32 %s16, 1
    %s22 = ssub.s32 %s16, 2
    %s23 = sadd.s32 %s16, 1
    %s24 = ssub.s32 %s16, %s23
    %p25 = scmp.eq.s32.totalorder %s24, 0
    %s27 = sadd.s32 %s26, 1
    %s28 = scalar_select %p25, %s26, %s27
    %p31 = pneg %p25
    %p32 = scmp.eq.s32.totalorder %s16, 3
    %p33 = por %p31, %p32
    %p34 = scmp.ne.s32.totalorder %s26, %s29
    %p35 = scmp.eq.s32.totalorder %s16, 0
    %p36 = por %p34, %p35
    %p37 = scmp.ne.s32.totalorder %s26, %s29
    %p38 = scmp.eq.s32.totalorder %s21, 3
    %p39 = por %p37, %p38
    %p40 = scmp.ne.s32.totalorder %s29, %s30
    %p41 = scmp.eq.s32.totalorder %s21, 0
    %p42 = por %p40, %p41
    %p43 = scmp.ne.s32.totalorder %s29, %s30
    %p44 = scmp.eq.s32.totalorder %s22, 3
    %p45 = por %p43, %p44
    %p47 = scmp.ne.s32.totalorder %s30, %s46
    %p48 = scmp.eq.s32.totalorder %s22, 0
    %p49 = por %p47, %p48
    %s51 = sadd.s32 %s50, 1
    %p54 = scmp.eq.s32.totalorder %s16, 3
    %p55 = scmp.ne.s32.totalorder %s50, %s52
    %p56 = scmp.eq.s32.totalorder %s16, 0
    %p57 = por %p55, %p56
    %p58 = scmp.ne.s32.totalorder %s50, %s52
    %p59 = scmp.eq.s32.totalorder %s21, 3
    %p60 = por %p58, %p59
    %p61 = scmp.ne.s32.totalorder %s52, %s53
    %p62 = scmp.eq.s32.totalorder %s21, 0
    %p63 = por %p61, %p62
    %p64 = scmp.ne.s32.totalorder %s52, %s53
    %p65 = scmp.eq.s32.totalorder %s22, 3
    %p66 = por %p64, %p65
    %p68 = scmp.ne.s32.totalorder %s53, %s67
    %p69 = scmp.eq.s32.totalorder %s22, 0
    %p70 = por %p68, %p69
    %s72 = sadd.s32 %s71, 1
    %p75 = scmp.eq.s32.totalorder %s16, 3
    %p76 = scmp.ne.s32.totalorder %s71, %s73
    %p77 = scmp.eq.s32.totalorder %s16, 0
    %p78 = por %p76, %p77
    %p79 = scmp.ne.s32.totalorder %s71, %s73
    %p80 = scmp.eq.s32.totalorder %s21, 3
    %p81 = por %p79, %p80
    %p82 = scmp.ne.s32.totalorder %s73, %s74
    %p83 = scmp.eq.s32.totalorder %s21, 0
    %p84 = por %p82, %p83
    %p85 = scmp.ne.s32.totalorder %s73, %s74
    %p86 = scmp.eq.s32.totalorder %s22, 3
    %p87 = por %p85, %p86
    %p89 = scmp.ne.s32.totalorder %s74, %s88
    %p90 = scmp.eq.s32.totalorder %s22, 0
    %p91 = por %p89, %p90
    %s93 = sadd.s32 %s92, 1
    %p96 = scmp.eq.s32.totalorder %s16, 3
    %p97 = scmp.ne.s32.totalorder %s92, %s94
    %p98 = scmp.eq.s32.totalorder %s16, 0
    %p99 = por %p97, %p98
    %p100 = scmp.ne.s32.totalorder %s92, %s94
    %p101 = scmp.eq.s32.totalorder %s21, 3
    %p102 = por %p100, %p101
    %p103 = scmp.ne.s32.totalorder %s94, %s95
    %p104 = scmp.eq.s32.totalorder %s21, 0
    %p105 = por %p103, %p104
    %p106 = scmp.ne.s32.totalorder %s94, %s95
    %p107 = scmp.eq.s32.totalorder %s22, 3
    %p108 = por %p106, %p107
    %p110 = scmp.ne.s32.totalorder %s95, %s109
    %p111 = scmp.eq.s32.totalorder %s22, 0
    %p112 = por %p110, %p111
    %s114 = sadd.s32 %s113, 1
    %p117 = scmp.eq.s32.totalorder %s16, 3
    %p118 = scmp.ne.s32.totalorder %s113, %s115
    %p119 = scmp.eq.s32.totalorder %s16, 0
    %p120 = por %p118, %p119
    %p121 = scmp.ne.s32.totalorder %s113, %s115
    %p122 = scmp.eq.s32.totalorder %s21, 3
    %p123 = por %p121, %p122
    %p124 = scmp.ne.s32.totalorder %s115, %s116
    %p125 = scmp.eq.s32.totalorder %s21, 0
    %p126 = por %p124, %p125
    %p127 = scmp.ne.s32.totalorder %s115, %s116
    %p128 = scmp.eq.s32.totalorder %s22, 3
    %p129 = por %p127, %p128
    %p131 = scmp.ne.s32.totalorder %s116, %s130
    %p132 = scmp.eq.s32.totalorder %s22, 0
    %p133 = por %p131, %p132
    %s135 = sadd.s32 %s134, 1
    %p138 = scmp.eq.s32.totalorder %s16, 3
    %p139 = scmp.ne.s32.totalorder %s134, %s136
    %p140 = scmp.eq.s32.totalorder %s16, 0
    %p141 = por %p139, %p140
    %p142 = scmp.ne.s32.totalorder %s134, %s136
    %p143 = scmp.eq.s32.totalorder %s21, 3
    %p144 = por %p142, %p143
    %p145 = scmp.ne.s32.totalorder %s136, %s137
    %p146 = scmp.eq.s32.totalorder %s21, 0
    %p147 = por %p145, %p146
    %p148 = scmp.ne.s32.totalorder %s136, %s137
    %p149 = scmp.eq.s32.totalorder %s22, 3
    %p150 = por %p148, %p149
    %p152 = scmp.ne.s32.totalorder %s137, %s151
    %p153 = scmp.eq.s32.totalorder %s22, 0
    %p154 = por %p152, %p153
    %s156 = sadd.s32 %s155, 1
    %p159 = scmp.eq.s32.totalorder %s16, 3
    %p160 = scmp.ne.s32.totalorder %s155, %s157
    %p161 = scmp.eq.s32.totalorder %s16, 0
    %p162 = por %p160, %p161
    %p163 = scmp.ne.s32.totalorder %s155, %s157
    %p164 = scmp.eq.s32.totalorder %s21, 3
    %p165 = por %p163, %p164
    %p166 = scmp.ne.s32.totalorder %s157, %s158
    %p167 = scmp.eq.s32.totalorder %s21, 0
    %p168 = por %p166, %p167
    %p169 = scmp.ne.s32.totalorder %s157, %s158
    %p170 = scmp.eq.s32.totalorder %s22, 3
    %p171 = por %p169, %p170
    %p173 = scmp.ne.s32.totalorder %s158, %s172
    %p174 = scmp.eq.s32.totalorder %s22, 0
    %p175 = por %p173, %p174
    %s177 = sadd.s32 %s176, 1
    %p180 = scmp.eq.s32.totalorder %s16, 3
    %p181 = scmp.ne.s32.totalorder %s176, %s178
    %p182 = scmp.eq.s32.totalorder %s16, 0
    %p183 = por %p181, %p182
    %p184 = scmp.ne.s32.totalorder %s176, %s178
    %p185 = scmp.eq.s32.totalorder %s21, 3
    %p186 = por %p184, %p185
    %p187 = scmp.ne.s32.totalorder %s178, %s179
    %p188 = scmp.eq.s32.totalorder %s21, 0
    %p189 = por %p187, %p188
    %p190 = scmp.ne.s32.totalorder %s178, %s179
    %p191 = scmp.eq.s32.totalorder %s22, 3
    %p192 = por %p190, %p191
    %p194 = scmp.ne.s32.totalorder %s179, %s193
    %p195 = scmp.eq.s32.totalorder %s22, 0
    %p196 = por %p194, %p195
    %s198 = sadd.s32 %s197, 1
    %p201 = scmp.eq.s32.totalorder %s16, 3
    %p202 = scmp.ne.s32.totalorder %s197, %s199
    %p203 = scmp.eq.s32.totalorder %s16, 0
    %p204 = por %p202, %p203
    %p205 = scmp.ne.s32.totalorder %s197, %s199
    %p206 = scmp.eq.s32.totalorder %s21, 3
    %p207 = por %p205, %p206
    %p208 = scmp.ne.s32.totalorder %s199, %s200
    %p209 = scmp.eq.s32.totalorder %s21, 0
    %p210 = por %p208, %p209
    %p211 = scmp.ne.s32.totalorder %s199, %s200
    %p212 = scmp.eq.s32.totalorder %s22, 3
    %p213 = por %p211, %p212
    %p215 = scmp.ne.s32.totalorder %s200, %s214
    %p216 = scmp.eq.s32.totalorder %s22, 0
    %p217 = por %p215, %p216
    %s219 = sadd.s32 %s218, 1
    %p222 = scmp.eq.s32.totalorder %s16, 3
    %p223 = scmp.ne.s32.totalorder %s218, %s220
    %p224 = scmp.eq.s32.totalorder %s16, 0
    %p225 = por %p223, %p224
    %p226 = scmp.ne.s32.totalorder %s218, %s220
    %p227 = scmp.eq.s32.totalorder %s21, 3
    %p228 = por %p226, %p227
    %p229 = scmp.ne.s32.totalorder %s220, %s221
    %p230 = scmp.eq.s32.totalorder %s21, 0
    %p231 = por %p229, %p230
    %p232 = scmp.ne.s32.totalorder %s220, %s221
    %p233 = scmp.eq.s32.totalorder %s22, 3
    %p234 = por %p232, %p233
    %p236 = scmp.ne.s32.totalorder %s221, %s235
    %p237 = scmp.eq.s32.totalorder %s22, 0
    %p238 = por %p236, %p237
    %s239 = ssub.s32 %s16, %s23
    %p240 = scmp.eq.s32.totalorder %s239, 0
    %s242 = sadd.s32 %s241, 1
    %s243 = scalar_select %p240, %s241, %s242
    %p246 = pneg %p240
    %p247 = scmp.eq.s32.totalorder %s16, 3
    %p248 = por %p246, %p247
    %p249 = scmp.ne.s32.totalorder %s241, %s244
    %p250 = scmp.eq.s32.totalorder %s16, 0
    %p251 = por %p249, %p250
    %p252 = scmp.ne.s32.totalorder %s241, %s244
    %p253 = scmp.eq.s32.totalorder %s21, 3
    %p254 = por %p252, %p253
    %p255 = scmp.ne.s32.totalorder %s244, %s245
    %p256 = scmp.eq.s32.totalorder %s21, 0
    %p257 = por %p255, %p256
    %p258 = scmp.ne.s32.totalorder %s244, %s245
    %p259 = scmp.eq.s32.totalorder %s22, 3
    %p260 = por %p258, %p259
    %p262 = scmp.ne.s32.totalorder %s245, %s261
    %p263 = scmp.eq.s32.totalorder %s22, 0
    %p264 = por %p262, %p263
    %p265 = scmp.le.s32.totalorder 1, %s16
    %p266 = scmp.lt.s32.totalorder %s16, 5
    %p267 = pnand %p265, %p266
    %p268 = pneg %p267
    // Predicated region
    $region9: #{forward.1} parent=5 // pred_check
      _
    $region10: #{forward.1} parent=5 // pred_check_branch
      %270 = sbr.rel (%p267) target = $region12
    $region11: #{forward.1} parent=5 // pred_region
      %s271 = ssub.s32 %s16, 1
      // Predicated region
      $region13: #{forward.1} parent=11 // pred_check
        %p272 = pneg %p63
      $region14: #{forward.1} parent=11 // pred_check_branch
        %274 = sbr.rel (%p272) target = $region16
      $region15: #{forward.1} parent=11 // pred_region
        _
      $region16: #{forward.1} parent=11 // pred_fallthru
        _
      // Predicated region
      $region17: #{forward.1} parent=11 // pred_check
        %p275 = pneg %p84
      $region18: #{forward.1} parent=11 // pred_check_branch
        %277 = sbr.rel (%p275) target = $region20
      $region19: #{forward.1} parent=11 // pred_region
        _
      $region20: #{forward.1} parent=11 // pred_fallthru
        _
      // Predicated region
      $region21: #{forward.1} parent=11 // pred_check
        %p278 = pneg %p105
      $region22: #{forward.1} parent=11 // pred_check_branch
        %280 = sbr.rel (%p278) target = $region24
      $region23: #{forward.1} parent=11 // pred_region
        _
      $region24: #{forward.1} parent=11 // pred_fallthru
        _
      // Predicated region
      $region25: #{forward.1} parent=11 // pred_check
        %p281 = pneg %p126
      $region26: #{forward.1} parent=11 // pred_check_branch
        %283 = sbr.rel (%p281) target = $region28
      $region27: #{forward.1} parent=11 // pred_region
        _
      $region28: #{forward.1} parent=11 // pred_fallthru
        _
      // Predicated region
      $region29: #{forward.1} parent=11 // pred_check
        %p284 = pneg %p147
      $region30: #{forward.1} parent=11 // pred_check_branch
        %286 = sbr.rel (%p284) target = $region32
      $region31: #{forward.1} parent=11 // pred_region
        _
      $region32: #{forward.1} parent=11 // pred_fallthru
        _
      // Predicated region
      $region33: #{forward.1} parent=11 // pred_check
        %p287 = pneg %p168
      $region34: #{forward.1} parent=11 // pred_check_branch
        %289 = sbr.rel (%p287) target = $region36
      $region35: #{forward.1} parent=11 // pred_region
        _
      $region36: #{forward.1} parent=11 // pred_fallthru
        _
      // Predicated region
      $region37: #{forward.1} parent=11 // pred_check
        %p290 = pneg %p189
      $region38: #{forward.1} parent=11 // pred_check_branch
        %292 = sbr.rel (%p290) target = $region40
      $region39: #{forward.1} parent=11 // pred_region
        _
      $region40: #{forward.1} parent=11 // pred_fallthru
        _
      // Predicated region
      $region41: #{forward.1} parent=11 // pred_check
        %p293 = pneg %p210
      $region42: #{forward.1} parent=11 // pred_check_branch
        %295 = sbr.rel (%p293) target = $region44
      $region43: #{forward.1} parent=11 // pred_region
        _
      $region44: #{forward.1} parent=11 // pred_fallthru
        _
      // Predicated region
      $region45: #{forward.1} parent=11 // pred_check
        %p296 = pneg %p231
      $region46: #{forward.1} parent=11 // pred_check_branch
        %298 = sbr.rel (%p296) target = $region48
      $region47: #{forward.1} parent=11 // pred_region
        _
      $region48: #{forward.1} parent=11 // pred_fallthru
        _
    $region12: #{forward.1} parent=5 // pred_fallthru
      _
    %p299 = scmp.lt.s32.totalorder %s16, 4
    // Predicated region
    $region49: #{forward.1} parent=5 // pred_check
      %p300 = pneg %p299
    $region50: #{forward.1} parent=5 // pred_check_branch
      %302 = sbr.rel (%p300) target = $region52
    $region51: #{forward.1} parent=5 // pred_region
      // Predicated region
      $region53: #{forward.1} parent=51 // pred_check
        %p303 = pneg %p36
      $region54: #{forward.1} parent=51 // pred_check_branch
        %305 = sbr.rel (%p303) target = $region56
      $region55: #{forward.1} parent=51 // pred_region
        %s306 = smul.u32 48, %s16
        %p307 = scmp.lt.s32.totalorder %s306, 191
        %s308 = scalar_select %p307, %s306, 191
        %s309 = smul.addr %s308, 8
        %s310 = scalar_lea.vmem %s0, %s309
        %s311 = smul.u32 48, %s16
      $region56: #{forward.1} parent=51 // pred_fallthru
        _
    $region52: #{forward.1} parent=5 // pred_fallthru
      _
    %p312 = scmp.le.s32.totalorder 1, %s16
    %p313 = scmp.lt.s32.totalorder %s16, 5
    %p314 = pnand %p312, %p313
    %p315 = pneg %p314
    // Predicated region
    $region57: #{forward.1} parent=5 // pred_check
      _
    $region58: #{forward.1} parent=5 // pred_check_branch
      %317 = sbr.rel (%p314) target = $region60
    $region59: #{forward.1} parent=5 // pred_region
      %s318 = ssub.s32 %s16, 1
      %s319 = smul.u32 48, %s21
      %p320 = scmp.lt.s32.totalorder %s319, 191
      %s321 = scalar_select %p320, %s319, 191
      %s322 = smul.addr %s321, 8
      %s323 = scalar_lea.vmem %s0, %s322
      %p324 = pneg %p42
      %p325 = pneg %p39
      %p326 = pneg %p63
      %p327 = pneg %p60
      %p328 = pneg %p84
      %p329 = pneg %p81
      %p330 = pneg %p105
      %p331 = pneg %p102
      %p332 = pneg %p126
      %p333 = pneg %p123
      %p334 = pneg %p147
      %p335 = pneg %p144
      %p336 = pneg %p168
      %p337 = pneg %p165
      %p338 = pneg %p189
      %p339 = pneg %p186
      %p340 = pneg %p210
      %p341 = pneg %p207
      %p342 = pneg %p231
      %p343 = pneg %p228
      %p344 = pneg %p257
      %p345 = pneg %p254
      %s346 = smul.u32 48, %s21
      %p347 = scmp.lt.s32.totalorder %s346, 191
      %s348 = scalar_select %p347, %s346, 191
      %s349 = smul.addr %s348, 8
      %s350 = scalar_lea.vmem %s10, %s349
      %s351 = smul.u32 48, %s21
      %p352 = scmp.lt.s32.totalorder %s351, 191
      %s353 = scalar_select %p352, %s351, 191
      %s354 = smul.addr %s353, 8
      %s355 = scalar_lea.vmem %s0, %s354
      %s356 = smul.u32 48, %s21
      %s357 = smul.u32 48, %s21
      %p358 = scmp.lt.s32.totalorder %s357, 191
      %s359 = scalar_select %p358, %s357, 191
      %s360 = smul.addr %s359, 8
      %s361 = scalar_lea.vmem %s10, %s360
      %s362 = smul.u32 48, %s21
      %v363 = vld [vmem:[%s355] sm:$0xff]
      %v364 = vld [vmem:[%s355 + $0x8] sm:$0xff]
      %v365 = vld [vmem:[%s355 + $0x10] sm:$0xff]
      %v366 = vld [vmem:[%s355 + $0x18] sm:$0xff]
      %v367 = vld [vmem:[%s355 + $0x20] sm:$0xff]
      %v368 = vld [vmem:[%s355 + $0x28] sm:$0xff]
      %v369 = vld [vmem:[%s355 + $0x30] sm:$0xff]
      %v370 = vld [vmem:[%s355 + $0x38] sm:$0xff]
      %v371 = vld [vmem:[%s355 + $0x40] sm:$0xff]
      %v372 = vld [vmem:[%s355 + $0x48] sm:$0xff]
      %v373 = vld [vmem:[%s355 + $0x50] sm:$0xff]
      %v374 = vld [vmem:[%s355 + $0x58] sm:$0xff]
      %v375 = vld [vmem:[%s355 + $0x60] sm:$0xff]
      %v376 = vld [vmem:[%s355 + $0x68] sm:$0xff]
      %v377 = vld [vmem:[%s355 + $0x70] sm:$0xff]
      %v378 = vld [vmem:[%s355 + $0x78] sm:$0xff]
      %v379 = vld [vmem:[%s355 + $0x80] sm:$0xff]
      %v380 = vld [vmem:[%s355 + $0x88] sm:$0xff]
      %v381 = vld [vmem:[%s355 + $0x90] sm:$0xff]
      %v382 = vld [vmem:[%s355 + $0x98] sm:$0xff]
      %v383 = vld [vmem:[%s355 + $0xa0] sm:$0xff]
      %v384 = vld [vmem:[%s355 + $0xa8] sm:$0xff]
      %v385 = vld [vmem:[%s355 + $0xb0] sm:$0xff]
      %v386 = vld [vmem:[%s355 + $0xb8] sm:$0xff]
      %v387 = vld [vmem:[%s355 + $0xc0] sm:$0xff]
      %v388 = vld [vmem:[%s355 + $0xc8] sm:$0xff]
      %v389 = vld [vmem:[%s355 + $0xd0] sm:$0xff]
      %v390 = vld [vmem:[%s355 + $0xd8] sm:$0xff]
      %v391 = vld [vmem:[%s355 + $0xe0] sm:$0xff]
      %v392 = vld [vmem:[%s355 + $0xe8] sm:$0xff]
      %v393 = vld [vmem:[%s355 + $0xf0] sm:$0xff]
      %v394 = vld [vmem:[%s355 + $0xf8] sm:$0xff]
      %v395 = vld [vmem:[%s355 + $0x100] sm:$0xff]
      %v396 = vld [vmem:[%s355 + $0x108] sm:$0xff]
      %v397 = vld [vmem:[%s355 + $0x110] sm:$0xff]
      %v398 = vld [vmem:[%s355 + $0x118] sm:$0xff]
      %v399 = vld [vmem:[%s355 + $0x120] sm:$0xff]
      %v400 = vld [vmem:[%s355 + $0x128] sm:$0xff]
      %v401 = vld [vmem:[%s355 + $0x130] sm:$0xff]
      %v402 = vld [vmem:[%s355 + $0x138] sm:$0xff]
      %v403 = vld [vmem:[%s355 + $0x140] sm:$0xff]
      %v404 = vld [vmem:[%s355 + $0x148] sm:$0xff]
      %v405 = vld [vmem:[%s355 + $0x150] sm:$0xff]
      %v406 = vld [vmem:[%s355 + $0x158] sm:$0xff]
      %v407 = vld [vmem:[%s355 + $0x160] sm:$0xff]
      %v408 = vld [vmem:[%s355 + $0x168] sm:$0xff]
      %v409 = vld [vmem:[%s355 + $0x170] sm:$0xff]
      %v410 = vld [vmem:[%s355 + $0x178] sm:$0xff]
      %v411 = vld [vmem:[%s1] sm:$0xff]
      %v412 = vld [vmem:[%s1 + $0x8] sm:$0xff]
      %v413 = vld [vmem:[%s1 + $0x10] sm:$0xff]
      %v414 = vld [vmem:[%s1 + $0x18] sm:$0xff]
      %v415 = vld [vmem:[%s1 + $0x20] sm:$0xff]
      %v416 = vld [vmem:[%s1 + $0x28] sm:$0xff]
      %417 = vmatprep.subr.mxu0 0.0
      %418 = vmatpush1.msra.mxu0 %v363
      %419 = vmatprep.subr.mxu0 0.0
      %420 = vmatpush1.msra.mxu0 %v364
      %421 = vmatprep.subr.mxu0 0.0
      %422 = vmatpush1.msra.mxu0 %v365
      %423 = vmatprep.subr.mxu0 0.0
      %424 = vmatpush1.msra.mxu0 %v366
      %425 = vmatprep.subr.mxu0 0.0
      %426 = vmatpush1.msra.mxu0 %v367
      %427 = vmatprep.subr.mxu0 0.0
      %428 = vmatpush1.msra.mxu0 %v368
      %429 = vmatprep.subr.mxu0 0.0
      %430 = vmatpush1.msra.mxu0 %v369
      %431 = vmatprep.subr.mxu0 0.0
      %432 = vmatpush1.msra.mxu0 %v370
      %433 = vmatprep.subr.mxu0 0.0
      %434 = vmatpush1.msra.mxu0 %v371
      %435 = vmatprep.subr.mxu0 0.0
      %436 = vmatpush1.msra.mxu0 %v372
      %437 = vmatprep.subr.mxu0 0.0
      %438 = vmatpush1.msra.mxu0 %v373
      %439 = vmatprep.subr.mxu0 0.0
      %440 = vmatpush1.msra.mxu0 %v374
      %441 = vmatprep.subr.mxu0 0.0
      %442 = vmatpush1.msra.mxu0 %v375
      %443 = vmatprep.subr.mxu0 0.0
      %444 = vmatpush1.msra.mxu0 %v376
      %445 = vmatprep.subr.mxu0 0.0
      %446 = vmatpush1.msra.mxu0 %v377
      %447 = vmatprep.subr.mxu0 0.0
      %448 = vmatpush1.msra.mxu0 %v378
      %449 = vmatprep.subr.mxu0 0.0
      %450 = vmatpush1.msra.mxu0 %v379
      %451 = vmatprep.subr.mxu0 0.0
      %452 = vmatpush1.msra.mxu0 %v380
      %453 = vmatprep.subr.mxu0 0.0
      %454 = vmatpush1.msra.mxu0 %v381
      %455 = vmatprep.subr.mxu0 0.0
      %456 = vmatpush1.msra.mxu0 %v382
      %457 = vmatprep.subr.mxu0 0.0
      %458 = vmatpush1.msra.mxu0 %v383
      %459 = vmatprep.subr.mxu0 0.0
      %460 = vmatpush1.msra.mxu0 %v384
      %461 = vmatprep.subr.mxu0 0.0
      %462 = vmatpush1.msra.mxu0 %v385
      %463 = vmatprep.subr.mxu0 0.0
      %464 = vmatpush1.msra.mxu0 %v386
      %465 = vmatprep.subr.mxu0 0.0
      %466 = vmatpush1.msra.mxu0 %v387
      %467 = vmatprep.subr.mxu0 0.0
      %468 = vmatpush1.msra.mxu0 %v388
      %469 = vmatprep.subr.mxu0 0.0
      %470 = vmatpush1.msra.mxu0 %v389
      %471 = vmatprep.subr.mxu0 0.0
      %472 = vmatpush1.msra.mxu0 %v390
      %473 = vmatprep.subr.mxu0 0.0
      %474 = vmatpush1.msra.mxu0 %v391
      %475 = vmatprep.subr.mxu0 0.0
      %476 = vmatpush1.msra.mxu0 %v392
      %477 = vmatprep.subr.mxu0 0.0
      %478 = vmatpush1.msra.mxu0 %v393
      %479 = vmatprep.subr.mxu0 0.0
      %480 = vmatpush1.msra.mxu0 %v394
      %481 = vmatprep.mubr.f32.mxu0 %v412
      %482 = vmatmul.mubr.f32.gmra.mrb[0].mxu0 %v411
      %v483 = vpop.f32.mrb[0].mxu0
      %v484 = vadd.f32 0.0, %v483
      %v485 = vpop.f32.mrb[0].mxu0
      %486 = vmatprep.mubr.f32.mxu0 %v415
      %487 = vmatmul.mubr.f32.gmra.mrb[0].mxu0 %v414
      %v488 = vpop.f32.mrb[0].mxu0
      %v489 = vadd.f32 0.0, %v488
      %v490 = vpop.f32.mrb[0].mxu0
      %491 = vdwg.mxu0
      %492 = vmatprep.subr.mxu0 0.0
      %493 = vmatpush1.msra.mxu0 %v395
      %494 = vmatprep.subr.mxu0 0.0
      %495 = vmatpush1.msra.mxu0 %v396
      %496 = vmatprep.subr.mxu0 0.0
      %497 = vmatpush1.msra.mxu0 %v397
      %498 = vmatprep.subr.mxu0 0.0
      %499 = vmatpush1.msra.mxu0 %v398
      %500 = vmatprep.subr.mxu0 0.0
      %501 = vmatpush1.msra.mxu0 %v399
      %502 = vmatprep.subr.mxu0 0.0
      %503 = vmatpush1.msra.mxu0 %v400
      %504 = vmatprep.subr.mxu0 0.0
      %505 = vmatpush1.msra.mxu0 %v401
      %506 = vmatprep.subr.mxu0 0.0
      %507 = vmatpush1.msra.mxu0 %v402
      %508 = vmatprep.subr.mxu0 0.0
      %509 = vmatpush1.msra.mxu0 %v403
      %510 = vmatprep.subr.mxu0 0.0
      %511 = vmatpush1.msra.mxu0 %v404
      %512 = vmatprep.subr.mxu0 0.0
      %513 = vmatpush1.msra.mxu0 %v405
      %514 = vmatprep.subr.mxu0 0.0
      %515 = vmatpush1.msra.mxu0 %v406
      %516 = vmatprep.subr.mxu0 0.0
      %517 = vmatpush1.msra.mxu0 %v407
      %518 = vmatprep.subr.mxu0 0.0
      %519 = vmatpush1.msra.mxu0 %v408
      %520 = vmatprep.subr.mxu0 0.0
      %521 = vmatpush1.msra.mxu0 %v409
      %522 = vmatprep.subr.mxu0 0.0
      %523 = vmatpush1.msra.mxu0 %v410
      %524 = vmatprep.subr.mxu0 0.0
      %525 = vmatpush1.msra.mxu0 0.0
      %526 = vmatprep.subr.mxu0 0.0
      %527 = vmatpush1.msra.mxu0 0.0
      %528 = vmatprep.subr.mxu0 0.0
      %529 = vmatpush1.msra.mxu0 0.0
      %530 = vmatprep.subr.mxu0 0.0
      %531 = vmatpush1.msra.mxu0 0.0
      %532 = vmatprep.subr.mxu0 0.0
      %533 = vmatpush1.msra.mxu0 0.0
      %534 = vmatprep.subr.mxu0 0.0
      %535 = vmatpush1.msra.mxu0 0.0
      %536 = vmatprep.subr.mxu0 0.0
      %537 = vmatpush1.msra.mxu0 0.0
      %538 = vmatprep.subr.mxu0 0.0
      %539 = vmatpush1.msra.mxu0 0.0
      %540 = vmatprep.subr.mxu0 0.0
      %541 = vmatpush1.msra.mxu0 0.0
      %542 = vmatprep.subr.mxu0 0.0
      %543 = vmatpush1.msra.mxu0 0.0
      %544 = vmatprep.subr.mxu0 0.0
      %545 = vmatpush1.msra.mxu0 0.0
      %546 = vmatprep.subr.mxu0 0.0
      %547 = vmatpush1.msra.mxu0 0.0
      %548 = vmatprep.subr.mxu0 0.0
      %549 = vmatpush1.msra.mxu0 0.0
      %550 = vmatprep.subr.mxu0 0.0
      %551 = vmatpush1.msra.mxu0 0.0
      %552 = vmatprep.subr.mxu0 0.0
      %553 = vmatpush1.msra.mxu0 0.0
      %554 = vmatprep.subr.mxu0 0.0
      %555 = vmatpush1.msra.mxu0 0.0
      %556 = vmatprep.mubr.f32.mxu0 0.0
      %557 = vmatmul.mubr.f32.gmra.mrb[0].mxu0 %v413
      %v558 = vpop.f32.mrb[0].mxu0
      %v559 = vadd.f32 %v484, %v558
      %v560 = vpop.f32.mrb[0].mxu0
      %561 = vmatprep.mubr.f32.mxu0 0.0
      %562 = vmatmul.mubr.f32.gmra.mrb[0].mxu0 %v416
      %v563 = vpop.f32.mrb[0].mxu0
      %v564 = vadd.f32 %v489, %v563
      %v565 = vpop.f32.mrb[0].mxu0
      %566 = vdwg.mxu0
      %v567 = vmul.f32 %v363, %v363
      %v568 = vmul.f32 %v364, %v364
      %v569 = vmul.f32 %v365, %v365
      %v570 = vmul.f32 %v366, %v366
      %v571 = vmul.f32 %v367, %v367
      %v572 = vmul.f32 %v368, %v368
      %v573 = vmul.f32 %v369, %v369
      %v574 = vmul.f32 %v370, %v370
      %v575 = vmul.f32 %v371, %v371
      %v576 = vmul.f32 %v372, %v372
      %v577 = vmul.f32 %v373, %v373
      %v578 = vmul.f32 %v374, %v374
      %v579 = vmul.f32 %v375, %v375
      %v580 = vmul.f32 %v376, %v376
      %v581 = vmul.f32 %v377, %v377
      %v582 = vmul.f32 %v378, %v378
      %v583 = vmul.f32 %v379, %v379
      %v584 = vmul.f32 %v380, %v380
      %v585 = vmul.f32 %v381, %v381
      %v586 = vmul.f32 %v382, %v382
      %v587 = vmul.f32 %v383, %v383
      %v588 = vmul.f32 %v384, %v384
      %v589 = vmul.f32 %v385, %v385
      %v590 = vmul.f32 %v386, %v386
      %v591 = vmul.f32 %v387, %v387
      %v592 = vmul.f32 %v388, %v388
      %v593 = vmul.f32 %v389, %v389
      %v594 = vmul.f32 %v390, %v390
      %v595 = vmul.f32 %v391, %v391
      %v596 = vmul.f32 %v392, %v392
      %v597 = vmul.f32 %v393, %v393
      %v598 = vmul.f32 %v394, %v394
      %v599 = vmul.f32 %v395, %v395
      %v600 = vmul.f32 %v396, %v396
      %v601 = vmul.f32 %v397, %v397
      %v602 = vmul.f32 %v398, %v398
      %v603 = vmul.f32 %v399, %v399
      %v604 = vmul.f32 %v400, %v400
      %v605 = vmul.f32 %v401, %v401
      %v606 = vmul.f32 %v402, %v402
      %v607 = vmul.f32 %v403, %v403
      %v608 = vmul.f32 %v404, %v404
      %v609 = vmul.f32 %v405, %v405
      %v610 = vmul.f32 %v406, %v406
      %v611 = vmul.f32 %v407, %v407
      %v612 = vmul.f32 %v408, %v408
      %v613 = vmul.f32 %v409, %v409
      %v614 = vmul.f32 %v410, %v410
      %615 = vmatprep.subr.mxu0 0.0
      %616 = vmatpush1.msra.mxu0 %v567
      %617 = vmatprep.subr.mxu0 0.0
      %618 = vmatpush1.msra.mxu0 %v568
      %619 = vmatprep.subr.mxu0 0.0
      %620 = vmatpush1.msra.mxu0 %v569
      %621 = vmatprep.subr.mxu0 0.0
      %622 = vmatpush1.msra.mxu0 %v570
      %623 = vmatprep.subr.mxu0 0.0
      %624 = vmatpush1.msra.mxu0 %v571
      %625 = vmatprep.subr.mxu0 0.0
      %626 = vmatpush1.msra.mxu0 %v572
      %627 = vmatprep.subr.mxu0 0.0
      %628 = vmatpush1.msra.mxu0 %v573
      %629 = vmatprep.subr.mxu0 0.0
      %630 = vmatpush1.msra.mxu0 %v574
      %631 = vmatprep.subr.mxu0 0.0
      %632 = vmatpush1.msra.mxu0 %v575
      %633 = vmatprep.subr.mxu0 0.0
      %634 = vmatpush1.msra.mxu0 %v576
      %635 = vmatprep.subr.mxu0 0.0
      %636 = vmatpush1.msra.mxu0 %v577
      %637 = vmatprep.subr.mxu0 0.0
      %638 = vmatpush1.msra.mxu0 %v578
      %639 = vmatprep.subr.mxu0 0.0
      %640 = vmatpush1.msra.mxu0 %v579
      %641 = vmatprep.subr.mxu0 0.0
      %642 = vmatpush1.msra.mxu0 %v580
      %643 = vmatprep.subr.mxu0 0.0
      %644 = vmatpush1.msra.mxu0 %v581
      %645 = vmatprep.subr.mxu0 0.0
      %646 = vmatpush1.msra.mxu0 %v582
      %647 = vmatprep.subr.mxu0 0.0
      %648 = vmatpush1.msra.mxu0 %v583
      %649 = vmatprep.subr.mxu0 0.0
      %650 = vmatpush1.msra.mxu0 %v584
      %651 = vmatprep.subr.mxu0 0.0
      %652 = vmatpush1.msra.mxu0 %v585
      %653 = vmatprep.subr.mxu0 0.0
      %654 = vmatpush1.msra.mxu0 %v586
      %655 = vmatprep.subr.mxu0 0.0
      %656 = vmatpush1.msra.mxu0 %v587
      %657 = vmatprep.subr.mxu0 0.0
      %658 = vmatpush1.msra.mxu0 %v588
      %659 = vmatprep.subr.mxu0 0.0
      %660 = vmatpush1.msra.mxu0 %v589
      %661 = vmatprep.subr.mxu0 0.0
      %662 = vmatpush1.msra.mxu0 %v590
      %663 = vmatprep.subr.mxu0 0.0
      %664 = vmatpush1.msra.mxu0 %v591
      %665 = vmatprep.subr.mxu0 0.0
      %666 = vmatpush1.msra.mxu0 %v592
      %667 = vmatprep.subr.mxu0 0.0
      %668 = vmatpush1.msra.mxu0 %v593
      %669 = vmatprep.subr.mxu0 0.0
      %670 = vmatpush1.msra.mxu0 %v594
      %671 = vmatprep.subr.mxu0 0.0
      %672 = vmatpush1.msra.mxu0 %v595
      %673 = vmatprep.subr.mxu0 0.0
      %674 = vmatpush1.msra.mxu0 %v596
      %675 = vmatprep.subr.mxu0 0.0
      %676 = vmatpush1.msra.mxu0 %v597
      %677 = vmatprep.subr.mxu0 0.0
      %678 = vmatpush1.msra.mxu0 %v598
      %679 = vmatprep.mubr.f32.mxu0 %v412
      %680 = vmatmul.mubr.f32.gmra.mrb[0].mxu0 %v411
      %v681 = vpop.f32.mrb[0].mxu0
      %v682 = vadd.f32 0.0, %v681
      %v683 = vpop.f32.mrb[0].mxu0
      %684 = vmatprep.mubr.f32.mxu0 %v415
      %685 = vmatmul.mubr.f32.gmra.mrb[0].mxu0 %v414
      %v686 = vpop.f32.mrb[0].mxu0
      %v687 = vadd.f32 0.0, %v686
      %v688 = vpop.f32.mrb[0].mxu0
      %689 = vdwg.mxu0
      %690 = vmatprep.subr.mxu0 0.0
      %691 = vmatpush1.msra.mxu0 %v599
      %692 = vmatprep.subr.mxu0 0.0
      %693 = vmatpush1.msra.mxu0 %v600
      %694 = vmatprep.subr.mxu0 0.0
      %695 = vmatpush1.msra.mxu0 %v601
      %696 = vmatprep.subr.mxu0 0.0
      %697 = vmatpush1.msra.mxu0 %v602
      %698 = vmatprep.subr.mxu0 0.0
      %699 = vmatpush1.msra.mxu0 %v603
      %700 = vmatprep.subr.mxu0 0.0
      %701 = vmatpush1.msra.mxu0 %v604
      %702 = vmatprep.subr.mxu0 0.0
      %703 = vmatpush1.msra.mxu0 %v605
      %704 = vmatprep.subr.mxu0 0.0
      %705 = vmatpush1.msra.mxu0 %v606
      %706 = vmatprep.subr.mxu0 0.0
      %707 = vmatpush1.msra.mxu0 %v607
      %708 = vmatprep.subr.mxu0 0.0
      %709 = vmatpush1.msra.mxu0 %v608
      %710 = vmatprep.subr.mxu0 0.0
      %711 = vmatpush1.msra.mxu0 %v609
      %712 = vmatprep.subr.mxu0 0.0
      %713 = vmatpush1.msra.mxu0 %v610
      %714 = vmatprep.subr.mxu0 0.0
      %715 = vmatpush1.msra.mxu0 %v611
      %716 = vmatprep.subr.mxu0 0.0
      %717 = vmatpush1.msra.mxu0 %v612
      %718 = vmatprep.subr.mxu0 0.0
      %719 = vmatpush1.msra.mxu0 %v613
      %720 = vmatprep.subr.mxu0 0.0
      %721 = vmatpush1.msra.mxu0 %v614
      %722 = vmatprep.subr.mxu0 0.0
      %723 = vmatpush1.msra.mxu0 0.0
      %724 = vmatprep.subr.mxu0 0.0
      %725 = vmatpush1.msra.mxu0 0.0
      %726 = vmatprep.subr.mxu0 0.0
      %727 = vmatpush1.msra.mxu0 0.0
      %728 = vmatprep.subr.mxu0 0.0
      %729 = vmatpush1.msra.mxu0 0.0
      %730 = vmatprep.subr.mxu0 0.0
      %731 = vmatpush1.msra.mxu0 0.0
      %732 = vmatprep.subr.mxu0 0.0
      %733 = vmatpush1.msra.mxu0 0.0
      %734 = vmatprep.subr.mxu0 0.0
      %735 = vmatpush1.msra.mxu0 0.0
      %736 = vmatprep.subr.mxu0 0.0
      %737 = vmatpush1.msra.mxu0 0.0
      %738 = vmatprep.subr.mxu0 0.0
      %739 = vmatpush1.msra.mxu0 0.0
      %740 = vmatprep.subr.mxu0 0.0
      %741 = vmatpush1.msra.mxu0 0.0
      %742 = vmatprep.subr.mxu0 0.0
      %743 = vmatpush1.msra.mxu0 0.0
      %744 = vmatprep.subr.mxu0 0.0
      %745 = vmatpush1.msra.mxu0 0.0
      %746 = vmatprep.subr.mxu0 0.0
      %747 = vmatpush1.msra.mxu0 0.0
      %748 = vmatprep.subr.mxu0 0.0
      %749 = vmatpush1.msra.mxu0 0.0
      %750 = vmatprep.subr.mxu0 0.0
      %751 = vmatpush1.msra.mxu0 0.0
      %752 = vmatprep.subr.mxu0 0.0
      %753 = vmatpush1.msra.mxu0 0.0
      %754 = vmatprep.mubr.f32.mxu0 0.0
      %755 = vmatmul.mubr.f32.gmra.mrb[0].mxu0 %v413
      %v756 = vpop.f32.mrb[0].mxu0
      %v757 = vadd.f32 %v682, %v756
      %v758 = vpop.f32.mrb[0].mxu0
      %759 = vmatprep.mubr.f32.mxu0 0.0
      %760 = vmatmul.mubr.f32.gmra.mrb[0].mxu0 %v416
      %v761 = vpop.f32.mrb[0].mxu0
      %v762 = vadd.f32 %v687, %v761
      %v763 = vpop.f32.mrb[0].mxu0
      %764 = vdwg.mxu0
      %v765 = vmul.f32 %v559, 0.045454547
      %v766 = vmul.f32 %v564, 0.045454547
      %v767 = vmul.f32 %v757, 0.045454547
      %v768 = vmul.f32 %v762, 0.045454547
      %v769 = vmul.f32 %v765, %v765
      %v770 = vmul.f32 %v766, %v766
      %v771 = vsub.f32 %v767, %v769
      %v772 = vsub.f32 %v768, %v770
      %v773 = vmax.f32 %v771, 0.0
      %v774 = vmax.f32 %v772, 0.0
      %v775 = vadd.f32 %v773, 1e-05
      %v776 = vadd.f32 %v774, 1e-05
      %v777 = vrsqrt.pop %v775
      %v778 = vrsqrt.pop %v776
      %v779 = vsub.f32 0.0, %v765
      %v780 = vsub.f32 0.0, %v766
      %v781 = vmul.f32 %v779, %v777
      %v782 = vmul.f32 %v780, %v778
      %v783 = vld [vmem:[%s2] sm:$0xff]
      %v784 = vld [vmem:[%s2 + $0x8] sm:$0xff]
      %v785 = vld [vmem:[%s2 + $0x10] sm:$0xff]
      %v786 = vld [vmem:[%s2 + $0x18] sm:$0xff]
      %v787 = vld [vmem:[%s2 + $0x20] sm:$0xff]
      %v788 = vld [vmem:[%s2 + $0x28] sm:$0xff]
      %v789 = vld [vmem:[%s2 + $0x30] sm:$0xff]
      %v790 = vld [vmem:[%s2 + $0x38] sm:$0xff]
      %v791 = vld [vmem:[%s2 + $0x40] sm:$0xff]
      %v792 = vld [vmem:[%s2 + $0x48] sm:$0xff]
      %v793 = vld [vmem:[%s2 + $0x50] sm:$0xff]
      %v794 = vld [vmem:[%s2 + $0x58] sm:$0xff]
      %v795 = vld [vmem:[%s2 + $0x60] sm:$0xff]
      %v796 = vld [vmem:[%s2 + $0x68] sm:$0xff]
      %v797 = vld [vmem:[%s2 + $0x70] sm:$0xff]
      %v798 = vld [vmem:[%s2 + $0x78] sm:$0xff]
      %v799 = vld [vmem:[%s2 + $0x80] sm:$0xff]
      %v800 = vld [vmem:[%s2 + $0x88] sm:$0xff]
      %v801 = vld [vmem:[%s2 + $0x90] sm:$0xff]
      %v802 = vld [vmem:[%s2 + $0x98] sm:$0xff]
      %v803 = vld [vmem:[%s2 + $0xa0] sm:$0xff]
      %v804 = vld [vmem:[%s2 + $0xa8] sm:$0xff]
      %v805 = vld [vmem:[%s2 + $0xb0] sm:$0xff]
      %v806 = vld [vmem:[%s2 + $0xb8] sm:$0xff]
      %v807 = vld [vmem:[%s2 + $0xc0] sm:$0xff]
      %v808 = vld [vmem:[%s2 + $0xc8] sm:$0xff]
      %v809 = vld [vmem:[%s2 + $0xd0] sm:$0xff]
      %v810 = vld [vmem:[%s2 + $0xd8] sm:$0xff]
      %v811 = vld [vmem:[%s2 + $0xe0] sm:$0xff]
      %v812 = vld [vmem:[%s2 + $0xe8] sm:$0xff]
      %v813 = vld [vmem:[%s2 + $0xf0] sm:$0xff]
      %v814 = vld [vmem:[%s2 + $0xf8] sm:$0xff]
      %v815 = vld [vmem:[%s2 + $0x100] sm:$0xff]
      %v816 = vld [vmem:[%s2 + $0x108] sm:$0xff]
      %v817 = vld [vmem:[%s2 + $0x110] sm:$0xff]
      %v818 = vld [vmem:[%s2 + $0x118] sm:$0xff]
      %v819 = vld [vmem:[%s2 + $0x120] sm:$0xff]
      %v820 = vld [vmem:[%s2 + $0x128] sm:$0xff]
      %v821 = vld [vmem:[%s2 + $0x130] sm:$0xff]
      %v822 = vld [vmem:[%s2 + $0x138] sm:$0xff]
      %v823 = vld [vmem:[%s2 + $0x140] sm:$0xff]
      %v824 = vld [vmem:[%s2 + $0x148] sm:$0xff]
      %v825 = vld [vmem:[%s2 + $0x150] sm:$0xff]
      %v826 = vld [vmem:[%s2 + $0x158] sm:$0xff]
      %v827 = vld [vmem:[%s2 + $0x160] sm:$0xff]
      %v828 = vld [vmem:[%s2 + $0x168] sm:$0xff]
      %v829 = vld [vmem:[%s2 + $0x170] sm:$0xff]
      %v830 = vld [vmem:[%s2 + $0x178] sm:$0xff]
      %vm831 = vcmask 130048
      %v833 = vsel %vm831, %v783, 0
      %v836 = vsel %vm831, %v784, 0
      %v839 = vsel %vm831, %v785, 0
      %v842 = vsel %vm831, %v786, 0
      %v845 = vsel %vm831, %v787, 0
      %v848 = vsel %vm831, %v788, 0
      %v851 = vsel %vm831, %v789, 0
      %v854 = vsel %vm831, %v790, 0
      %v857 = vsel %vm831, %v791, 0
      %v860 = vsel %vm831, %v792, 0
      %v863 = vsel %vm831, %v793, 0
      %v866 = vsel %vm831, %v794, 0
      %v869 = vsel %vm831, %v795, 0
      %v872 = vsel %vm831, %v796, 0
      %v875 = vsel %vm831, %v797, 0
      %v878 = vsel %vm831, %v798, 0
      %v881 = vsel %vm831, %v799, 0
      %v884 = vsel %vm831, %v800, 0
      %v887 = vsel %vm831, %v801, 0
      %v890 = vsel %vm831, %v802, 0
      %v893 = vsel %vm831, %v803, 0
      %v896 = vsel %vm831, %v804, 0
      %v899 = vsel %vm831, %v805, 0
      %v902 = vsel %vm831, %v806, 0
      %v905 = vsel %vm831, %v807, 0
      %v908 = vsel %vm831, %v808, 0
      %v911 = vsel %vm831, %v809, 0
      %v914 = vsel %vm831, %v810, 0
      %v917 = vsel %vm831, %v811, 0
      %v920 = vsel %vm831, %v812, 0
      %v923 = vsel %vm831, %v813, 0
      %v926 = vsel %vm831, %v814, 0
      %v929 = vsel %vm831, %v815, 0
      %v932 = vsel %vm831, %v816, 0
      %v935 = vsel %vm831, %v817, 0
      %v938 = vsel %vm831, %v818, 0
      %v941 = vsel %vm831, %v819, 0
      %v944 = vsel %vm831, %v820, 0
      %v947 = vsel %vm831, %v821, 0
      %v950 = vsel %vm831, %v822, 0
      %v953 = vsel %vm831, %v823, 0
      %v956 = vsel %vm831, %v824, 0
      %v959 = vsel %vm831, %v825, 0
      %v962 = vsel %vm831, %v826, 0
      %v965 = vsel %vm831, %v827, 0
      %v968 = vsel %vm831, %v828, 0
      %v971 = vsel %vm831, %v829, 0
      %v974 = vsel %vm831, %v830, 0
      %976 = vmatprep.subr.mxu0 0.0
      %977 = vmatpush1.msra.mxu0 %v777
      %978 = vmatprep.subr.mxu0 0.0
      %979 = vmatpush1.msra.mxu0 %v778
      %980 = vmatprep.subr.mxu0 0.0
      %981 = vmatpush1.msra.mxu0 0.0
      %982 = vmatprep.subr.mxu0 0.0
      %983 = vmatpush1.msra.mxu0 0.0
      %984 = vmatprep.subr.mxu0 0.0
      %985 = vmatpush1.msra.mxu0 0.0
      %986 = vmatprep.subr.mxu0 0.0
      %987 = vmatpush1.msra.mxu0 0.0
      %988 = vmatprep.subr.mxu0 0.0
      %989 = vmatpush1.msra.mxu0 0.0
      %990 = vmatprep.subr.mxu0 0.0
      %991 = vmatpush1.msra.mxu0 0.0
      %992 = vmatprep.subr.mxu0 0.0
      %993 = vmatpush1.msra.mxu0 0.0
      %994 = vmatprep.subr.mxu0 0.0
      %995 = vmatpush1.msra.mxu0 0.0
      %996 = vmatprep.subr.mxu0 0.0
      %997 = vmatpush1.msra.mxu0 0.0
      %998 = vmatprep.subr.mxu0 0.0
      %999 = vmatpush1.msra.mxu0 0.0
      %1000 = vmatprep.subr.mxu0 0.0
      %1001 = vmatpush1.msra.mxu0 0.0
      %1002 = vmatprep.subr.mxu0 0.0
      %1003 = vmatpush1.msra.mxu0 0.0
      %1004 = vmatprep.subr.mxu0 0.0
      %1005 = vmatpush1.msra.mxu0 0.0
      %1006 = vmatprep.subr.mxu0 0.0
      %1007 = vmatpush1.msra.mxu0 0.0
      %1008 = vmatprep.subr.mxu0 0.0
      %1009 = vmatpush1.msra.mxu0 0.0
      %1010 = vmatprep.subr.mxu0 0.0
      %1011 = vmatpush1.msra.mxu0 0.0
      %1012 = vmatprep.subr.mxu0 0.0
      %1013 = vmatpush1.msra.mxu0 0.0
      %1014 = vmatprep.subr.mxu0 0.0
      %1015 = vmatpush1.msra.mxu0 0.0
      %1016 = vmatprep.subr.mxu0 0.0
      %1017 = vmatpush1.msra.mxu0 0.0
      %1018 = vmatprep.subr.mxu0 0.0
      %1019 = vmatpush1.msra.mxu0 0.0
      %1020 = vmatprep.subr.mxu0 0.0
      %1021 = vmatpush1.msra.mxu0 0.0
      %1022 = vmatprep.subr.mxu0 0.0
      %1023 = vmatpush1.msra.mxu0 0.0
      %1024 = vmatprep.subr.mxu0 0.0
      %1025 = vmatpush1.msra.mxu0 0.0
      %1026 = vmatprep.subr.mxu0 0.0
      %1027 = vmatpush1.msra.mxu0 0.0
      %1028 = vmatprep.subr.mxu0 0.0
      %1029 = vmatpush1.msra.mxu0 0.0
      %1030 = vmatprep.subr.mxu0 0.0
      %1031 = vmatpush1.msra.mxu0 0.0
      %1032 = vmatprep.subr.mxu0 0.0
      %1033 = vmatpush1.msra.mxu0 0.0
      %1034 = vmatprep.subr.mxu0 0.0
      %1035 = vmatpush1.msra.mxu0 0.0
      %1036 = vmatprep.subr.mxu0 0.0
      %1037 = vmatpush1.msra.mxu0 0.0
      %1038 = vmatprep.subr.mxu0 0.0
      %1039 = vmatpush1.msra.mxu0 0.0
      %1040 = vmatprep.mubr.f32.mxu0 0.0
      %1041 = vmatmul.mubr.f32.gmra.mrb[0].mxu0 %v833
      %v1042 = vpop.f32.mrb[0].mxu0
      %v1043 = vadd.f32 0.0, %v1042
      %v1044 = vpop.f32.mrb[0].mxu0
      %1045 = vmatprep.mubr.f32.mxu0 0.0
      %1046 = vmatmul.mubr.f32.gmra.mrb[0].mxu0 %v836
      %v1047 = vpop.f32.mrb[0].mxu0
      %v1048 = vadd.f32 0.0, %v1047
      %v1049 = vpop.f32.mrb[0].mxu0
      %1050 = vmatprep.mubr.f32.mxu0 0.0
      %1051 = vmatmul.mubr.f32.gmra.mrb[0].mxu0 %v839
      %v1052 = vpop.f32.mrb[0].mxu0
      %v1053 = vadd.f32 0.0, %v1052
      %v1054 = vpop.f32.mrb[0].mxu0
      %1055 = vmatprep.mubr.f32.mxu0 0.0
      %1056 = vmatmul.mubr.f32.gmra.mrb[0].mxu0 %v842
      %v1057 = vpop.f32.mrb[0].mxu0
      %v1058 = vadd.f32 0.0, %v1057
      %v1059 = vpop.f32.mrb[0].mxu0
      %1060 = vmatprep.mubr.f32.mxu0 0.0
      %1061 = vmatmul.mubr.f32.gmra.mrb[0].mxu0 %v845
      %v1062 = vpop.f32.mrb[0].mxu0
      %v1063 = vadd.f32 0.0, %v1062
      %v1064 = vpop.f32.mrb[0].mxu0
      %1065 = vmatprep.mubr.f32.mxu0 0.0
      %1066 = vmatmul.mubr.f32.gmra.mrb[0].mxu0 %v848
      %v1067 = vpop.f32.mrb[0].mxu0
      %v1068 = vadd.f32 0.0, %v1067
      %v1069 = vpop.f32.mrb[0].mxu0
      %1070 = vmatprep.mubr.f32.mxu0 0.0
      %1071 = vmatmul.mubr.f32.gmra.mrb[0].mxu0 %v851
      %v1072 = vpop.f32.mrb[0].mxu0
      %v1073 = vadd.f32 0.0, %v1072
      %v1074 = vpop.f32.mrb[0].mxu0
      %1075 = vmatprep.mubr.f32.mxu0 0.0
      %1076 = vmatmul.mubr.f32.gmra.mrb[0].mxu0 %v854
      %v1077 = vpop.f32.mrb[0].mxu0
      %v1078 = vadd.f32 0.0, %v1077
      %v1079 = vpop.f32.mrb[0].mxu0
      %1080 = vmatprep.mubr.f32.mxu0 0.0
      %1081 = vmatmul.mubr.f32.gmra.mrb[0].mxu0 %v857
      %v1082 = vpop.f32.mrb[0].mxu0
      %v1083 = vadd.f32 0.0, %v1082
      %v1084 = vpop.f32.mrb[0].mxu0
      %1085 = vmatprep.mubr.f32.mxu0 0.0
      %1086 = vmatmul.mubr.f32.gmra.mrb[0].mxu0 %v860
      %v1087 = vpop.f32.mrb[0].mxu0
      %v1088 = vadd.f32 0.0, %v1087
      %v1089 = vpop.f32.mrb[0].mxu0
      %1090 = vmatprep.mubr.f32.mxu0 0.0
      %1091 = vmatmul.mubr.f32.gmra.mrb[0].mxu0 %v863
      %v1092 = vpop.f32.mrb[0].mxu0
      %v1093 = vadd.f32 0.0, %v1092
      %v1094 = vpop.f32.mrb[0].mxu0
      %1095 = vmatprep.mubr.f32.mxu0 0.0
      %1096 = vmatmul.mubr.f32.gmra.mrb[0].mxu0 %v866
      %v1097 = vpop.f32.mrb[0].mxu0
      %v1098 = vadd.f32 0.0, %v1097
      %v1099 = vpop.f32.mrb[0].mxu0
      %1100 = vmatprep.mubr.f32.mxu0 0.0
      %1101 = vmatmul.mubr.f32.gmra.mrb[0].mxu0 %v869
      %v1102 = vpop.f32.mrb[0].mxu0
      %v1103 = vadd.f32 0.0, %v1102
      %v1104 = vpop.f32.mrb[0].mxu0
      %1105 = vmatprep.mubr.f32.mxu0 0.0
      %1106 = vmatmul.mubr.f32.gmra.mrb[0].mxu0 %v872
      %v1107 = vpop.f32.mrb[0].mxu0
      %v1108 = vadd.f32 0.0, %v1107
      %v1109 = vpop.f32.mrb[0].mxu0
      %1110 = vmatprep.mubr.f32.mxu0 0.0
      %1111 = vmatmul.mubr.f32.gmra.mrb[0].mxu0 %v875
      %v1112 = vpop.f32.mrb[0].mxu0
      %v1113 = vadd.f32 0.0, %v1112
      %v1114 = vpop.f32.mrb[0].mxu0
      %1115 = vmatprep.mubr.f32.mxu0 0.0
      %1116 = vmatmul.mubr.f32.gmra.mrb[0].mxu0 %v878
      %v1117 = vpop.f32.mrb[0].mxu0
      %v1118 = vadd.f32 0.0, %v1117
      %v1119 = vpop.f32.mrb[0].mxu0
      %1120 = vmatprep.mubr.f32.mxu0 0.0
      %1121 = vmatmul.mubr.f32.gmra.mrb[0].mxu0 %v881
      %v1122 = vpop.f32.mrb[0].mxu0
      %v1123 = vadd.f32 0.0, %v1122
      %v1124 = vpop.f32.mrb[0].mxu0
      %1125 = vmatprep.mubr.f32.mxu0 0.0
      %1126 = vmatmul.mubr.f32.gmra.mrb[0].mxu0 %v884
      %v1127 = vpop.f32.mrb[0].mxu0
      %v1128 = vadd.f32 0.0, %v1127
      %v1129 = vpop.f32.mrb[0].mxu0
      %1130 = vmatprep.mubr.f32.mxu0 0.0
      %1131 = vmatmul.mubr.f32.gmra.mrb[0].mxu0 %v887
      %v1132 = vpop.f32.mrb[0].mxu0
      %v1133 = vadd.f32 0.0, %v1132
      %v1134 = vpop.f32.mrb[0].mxu0
      %1135 = vmatprep.mubr.f32.mxu0 0.0
      %1136 = vmatmul.mubr.f32.gmra.mrb[0].mxu0 %v890
      %v1137 = vpop.f32.mrb[0].mxu0
      %v1138 = vadd.f32 0.0, %v1137
      %v1139 = vpop.f32.mrb[0].mxu0
      %1140 = vmatprep.mubr.f32.mxu0 0.0
      %1141 = vmatmul.mubr.f32.gmra.mrb[0].mxu0 %v893
      %v1142 = vpop.f32.mrb[0].mxu0
      %v1143 = vadd.f32 0.0, %v1142
      %v1144 = vpop.f32.mrb[0].mxu0
      %1145 = vmatprep.mubr.f32.mxu0 0.0
      %1146 = vmatmul.mubr.f32.gmra.mrb[0].mxu0 %v896
      %v1147 = vpop.f32.mrb[0].mxu0
      %v1148 = vadd.f32 0.0, %v1147
      %v1149 = vpop.f32.mrb[0].mxu0
      %1150 = vmatprep.mubr.f32.mxu0 0.0
      %1151 = vmatmul.mubr.f32.gmra.mrb[0].mxu0 %v899
      %v1152 = vpop.f32.mrb[0].mxu0
      %v1153 = vadd.f32 0.0, %v1152
      %v1154 = vpop.f32.mrb[0].mxu0
      %1155 = vmatprep.mubr.f32.mxu0 0.0
      %1156 = vmatmul.mubr.f32.gmra.mrb[0].mxu0 %v902
      %v1157 = vpop.f32.mrb[0].mxu0
      %v1158 = vadd.f32 0.0, %v1157
      %v1159 = vpop.f32.mrb[0].mxu0
      %1160 = vmatprep.mubr.f32.mxu0 0.0
      %1161 = vmatmul.mubr.f32.gmra.mrb[0].mxu0 %v905
      %v1162 = vpop.f32.mrb[0].mxu0
      %v1163 = vadd.f32 0.0, %v1162
      %v1164 = vpop.f32.mrb[0].mxu0
      %1165 = vmatprep.mubr.f32.mxu0 0.0
      %1166 = vmatmul.mubr.f32.gmra.mrb[0].mxu0 %v908
      %v1167 = vpop.f32.mrb[0].mxu0
      %v1168 = vadd.f32 0.0, %v1167
      %v1169 = vpop.f32.mrb[0].mxu0
      %1170 = vmatprep.mubr.f32.mxu0 0.0
      %1171 = vmatmul.mubr.f32.gmra.mrb[0].mxu0 %v911
      %v1172 = vpop.f32.mrb[0].mxu0
      %v1173 = vadd.f32 0.0, %v1172
      %v1174 = vpop.f32.mrb[0].mxu0
      %1175 = vmatprep.mubr.f32.mxu0 0.0
      %1176 = vmatmul.mubr.f32.gmra.mrb[0].mxu0 %v914
      %v1177 = vpop.f32.mrb[0].mxu0
      %v1178 = vadd.f32 0.0, %v1177
      %v1179 = vpop.f32.mrb[0].mxu0
      %1180 = vmatprep.mubr.f32.mxu0 0.0
      %1181 = vmatmul.mubr.f32.gmra.mrb[0].mxu0 %v917
      %v1182 = vpop.f32.mrb[0].mxu0
      %v1183 = vadd.f32 0.0, %v1182
      %v1184 = vpop.f32.mrb[0].mxu0
      %1185 = vmatprep.mubr.f32.mxu0 0.0
      %1186 = vmatmul.mubr.f32.gmra.mrb[0].mxu0 %v920
      %v1187 = vpop.f32.mrb[0].mxu0
      %v1188 = vadd.f32 0.0, %v1187
      %v1189 = vpop.f32.mrb[0].mxu0
      %1190 = vmatprep.mubr.f32.mxu0 0.0
      %1191 = vmatmul.mubr.f32.gmra.mrb[0].mxu0 %v923
      %v1192 = vpop.f32.mrb[0].mxu0
      %v1193 = vadd.f32 0.0, %v1192
      %v1194 = vpop.f32.mrb[0].mxu0
      %1195 = vmatprep.mubr.f32.mxu0 0.0
      %1196 = vmatmul.mubr.f32.gmra.mrb[0].mxu0 %v926
      %v1197 = vpop.f32.mrb[0].mxu0
      %v1198 = vadd.f32 0.0, %v1197
      %v1199 = vpop.f32.mrb[0].mxu0
      %1200 = vmatprep.mubr.f32.mxu0 0.0
      %1201 = vmatmul.mubr.f32.gmra.mrb[0].mxu0 %v929
      %v1202 = vpop.f32.mrb[0].mxu0
      %v1203 = vadd.f32 0.0, %v1202
      %v1204 = vpop.f32.mrb[0].mxu0
      %1205 = vmatprep.mubr.f32.mxu0 0.0
      %1206 = vmatmul.mubr.f32.gmra.mrb[0].mxu0 %v932
      %v1207 = vpop.f32.mrb[0].mxu0
      %v1208 = vadd.f32 0.0, %v1207
      %v1209 = vpop.f32.mrb[0].mxu0
      %1210 = vmatprep.mubr.f32.mxu0 0.0
      %1211 = vmatmul.mubr.f32.gmra.mrb[0].mxu0 %v935
      %v1212 = vpop.f32.mrb[0].mxu0
      %v1213 = vadd.f32 0.0, %v1212
      %v1214 = vpop.f32.mrb[0].mxu0
      %1215 = vmatprep.mubr.f32.mxu0 0.0
      %1216 = vmatmul.mubr.f32.gmra.mrb[0].mxu0 %v938
      %v1217 = vpop.f32.mrb[0].mxu0
      %v1218 = vadd.f32 0.0, %v1217
      %v1219 = vpop.f32.mrb[0].mxu0
      %1220 = vmatprep.mubr.f32.mxu0 0.0
      %1221 = vmatmul.mubr.f32.gmra.mrb[0].mxu0 %v941
      %v1222 = vpop.f32.mrb[0].mxu0
      %v1223 = vadd.f32 0.0, %v1222
      %v1224 = vpop.f32.mrb[0].mxu0
      %1225 = vmatprep.mubr.f32.mxu0 0.0
      %1226 = vmatmul.mubr.f32.gmra.mrb[0].mxu0 %v944
      %v1227 = vpop.f32.mrb[0].mxu0
      %v1228 = vadd.f32 0.0, %v1227
      %v1229 = vpop.f32.mrb[0].mxu0
      %1230 = vmatprep.mubr.f32.mxu0 0.0
      %1231 = vmatmul.mubr.f32.gmra.mrb[0].mxu0 %v947
      %v1232 = vpop.f32.mrb[0].mxu0
      %v1233 = vadd.f32 0.0, %v1232
      %v1234 = vpop.f32.mrb[0].mxu0
      %1235 = vmatprep.mubr.f32.mxu0 0.0
      %1236 = vmatmul.mubr.f32.gmra.mrb[0].mxu0 %v950
      %v1237 = vpop.f32.mrb[0].mxu0
      %v1238 = vadd.f32 0.0, %v1237
      %v1239 = vpop.f32.mrb[0].mxu0
      %1240 = vmatprep.mubr.f32.mxu0 0.0
      %1241 = vmatmul.mubr.f32.gmra.mrb[0].mxu0 %v953
      %v1242 = vpop.f32.mrb[0].mxu0
      %v1243 = vadd.f32 0.0, %v1242
      %v1244 = vpop.f32.mrb[0].mxu0
      %1245 = vmatprep.mubr.f32.mxu0 0.0
      %1246 = vmatmul.mubr.f32.gmra.mrb[0].mxu0 %v956
      %v1247 = vpop.f32.mrb[0].mxu0
      %v1248 = vadd.f32 0.0, %v1247
      %v1249 = vpop.f32.mrb[0].mxu0
      %1250 = vmatprep.mubr.f32.mxu0 0.0
      %1251 = vmatmul.mubr.f32.gmra.mrb[0].mxu0 %v959
      %v1252 = vpop.f32.mrb[0].mxu0
      %v1253 = vadd.f32 0.0, %v1252
      %v1254 = vpop.f32.mrb[0].mxu0
      %1255 = vmatprep.mubr.f32.mxu0 0.0
      %1256 = vmatmul.mubr.f32.gmra.mrb[0].mxu0 %v962
      %v1257 = vpop.f32.mrb[0].mxu0
      %v1258 = vadd.f32 0.0, %v1257
      %v1259 = vpop.f32.mrb[0].mxu0
      %1260 = vmatprep.mubr.f32.mxu0 0.0
      %1261 = vmatmul.mubr.f32.gmra.mrb[0].mxu0 %v965
      %v1262 = vpop.f32.mrb[0].mxu0
      %v1263 = vadd.f32 0.0, %v1262
      %v1264 = vpop.f32.mrb[0].mxu0
      %1265 = vmatprep.mubr.f32.mxu0 0.0
      %1266 = vmatmul.mubr.f32.gmra.mrb[0].mxu0 %v968
      %v1267 = vpop.f32.mrb[0].mxu0
      %v1268 = vadd.f32 0.0, %v1267
      %v1269 = vpop.f32.mrb[0].mxu0
      %1270 = vmatprep.mubr.f32.mxu0 0.0
      %1271 = vmatmul.mubr.f32.gmra.mrb[0].mxu0 %v971
      %v1272 = vpop.f32.mrb[0].mxu0
      %v1273 = vadd.f32 0.0, %v1272
      %v1274 = vpop.f32.mrb[0].mxu0
      %1275 = vmatprep.mubr.f32.mxu0 0.0
      %1276 = vmatmul.mubr.f32.gmra.mrb[0].mxu0 %v974
      %v1277 = vpop.f32.mrb[0].mxu0
      %v1278 = vadd.f32 0.0, %v1277
      %v1279 = vpop.f32.mrb[0].mxu0
      %1280 = vdwg.mxu0
      %1281 = vmatprep.subr.mxu0 0.0
      %1282 = vmatpush1.msra.mxu0 %v781
      %1283 = vmatprep.subr.mxu0 0.0
      %1284 = vmatpush1.msra.mxu0 %v782
      %1285 = vmatprep.subr.mxu0 0.0
      %1286 = vmatpush1.msra.mxu0 0.0
      %1287 = vmatprep.subr.mxu0 0.0
      %1288 = vmatpush1.msra.mxu0 0.0
      %1289 = vmatprep.subr.mxu0 0.0
      %1290 = vmatpush1.msra.mxu0 0.0
      %1291 = vmatprep.subr.mxu0 0.0
      %1292 = vmatpush1.msra.mxu0 0.0
      %1293 = vmatprep.subr.mxu0 0.0
      %1294 = vmatpush1.msra.mxu0 0.0
      %1295 = vmatprep.subr.mxu0 0.0
      %1296 = vmatpush1.msra.mxu0 0.0
      %1297 = vmatprep.subr.mxu0 0.0
      %1298 = vmatpush1.msra.mxu0 0.0
      %1299 = vmatprep.subr.mxu0 0.0
      %1300 = vmatpush1.msra.mxu0 0.0
      %1301 = vmatprep.subr.mxu0 0.0
      %1302 = vmatpush1.msra.mxu0 0.0
      %1303 = vmatprep.subr.mxu0 0.0
      %1304 = vmatpush1.msra.mxu0 0.0
      %1305 = vmatprep.subr.mxu0 0.0
      %1306 = vmatpush1.msra.mxu0 0.0
      %1307 = vmatprep.subr.mxu0 0.0
      %1308 = vmatpush1.msra.mxu0 0.0
      %1309 = vmatprep.subr.mxu0 0.0
      %1310 = vmatpush1.msra.mxu0 0.0
      %1311 = vmatprep.subr.mxu0 0.0
      %1312 = vmatpush1.msra.mxu0 0.0
      %1313 = vmatprep.subr.mxu0 0.0
      %1314 = vmatpush1.msra.mxu0 0.0
      %1315 = vmatprep.subr.mxu0 0.0
      %1316 = vmatpush1.msra.mxu0 0.0
      %1317 = vmatprep.subr.mxu0 0.0
      %1318 = vmatpush1.msra.mxu0 0.0
      %1319 = vmatprep.subr.mxu0 0.0
      %1320 = vmatpush1.msra.mxu0 0.0
      %1321 = vmatprep.subr.mxu0 0.0
      %1322 = vmatpush1.msra.mxu0 0.0
      %1323 = vmatprep.subr.mxu0 0.0
      %1324 = vmatpush1.msra.mxu0 0.0
      %1325 = vmatprep.subr.mxu0 0.0
      %1326 = vmatpush1.msra.mxu0 0.0
      %1327 = vmatprep.subr.mxu0 0.0
      %1328 = vmatpush1.msra.mxu0 0.0
      %1329 = vmatprep.subr.mxu0 0.0
      %1330 = vmatpush1.msra.mxu0 0.0
      %1331 = vmatprep.subr.mxu0 0.0
      %1332 = vmatpush1.msra.mxu0 0.0
      %1333 = vmatprep.subr.mxu0 0.0
      %1334 = vmatpush1.msra.mxu0 0.0
      %1335 = vmatprep.subr.mxu0 0.0
      %1336 = vmatpush1.msra.mxu0 0.0
      %1337 = vmatprep.subr.mxu0 0.0
      %1338 = vmatpush1.msra.mxu0 0.0
      %1339 = vmatprep.subr.mxu0 0.0
      %1340 = vmatpush1.msra.mxu0 0.0
      %1341 = vmatprep.subr.mxu0 0.0
      %1342 = vmatpush1.msra.mxu0 0.0
      %1343 = vmatprep.subr.mxu0 0.0
      %1344 = vmatpush1.msra.mxu0 0.0
      %1345 = vmatprep.mubr.f32.mxu0 0.0
      %1346 = vmatmul.mubr.f32.gmra.mrb[0].mxu0 %v833
      %v1347 = vpop.f32.mrb[0].mxu0
      %v1348 = vadd.f32 0.0, %v1347
      %v1349 = vpop.f32.mrb[0].mxu0
      %1350 = vmatprep.mubr.f32.mxu0 0.0
      %1351 = vmatmul.mubr.f32.gmra.mrb[0].mxu0 %v836
      %v1352 = vpop.f32.mrb[0].mxu0
      %v1353 = vadd.f32 0.0, %v1352
      %v1354 = vpop.f32.mrb[0].mxu0
      %1355 = vmatprep.mubr.f32.mxu0 0.0
      %1356 = vmatmul.mubr.f32.gmra.mrb[0].mxu0 %v839
      %v1357 = vpop.f32.mrb[0].mxu0
      %v1358 = vadd.f32 0.0, %v1357
      %v1359 = vpop.f32.mrb[0].mxu0
      %1360 = vmatprep.mubr.f32.mxu0 0.0
      %1361 = vmatmul.mubr.f32.gmra.mrb[0].mxu0 %v842
      %v1362 = vpop.f32.mrb[0].mxu0
      %v1363 = vadd.f32 0.0, %v1362
      %v1364 = vpop.f32.mrb[0].mxu0
      %1365 = vmatprep.mubr.f32.mxu0 0.0
      %1366 = vmatmul.mubr.f32.gmra.mrb[0].mxu0 %v845
      %v1367 = vpop.f32.mrb[0].mxu0
      %v1368 = vadd.f32 0.0, %v1367
      %v1369 = vpop.f32.mrb[0].mxu0
      %1370 = vmatprep.mubr.f32.mxu0 0.0
      %1371 = vmatmul.mubr.f32.gmra.mrb[0].mxu0 %v848
      %v1372 = vpop.f32.mrb[0].mxu0
      %v1373 = vadd.f32 0.0, %v1372
      %v1374 = vpop.f32.mrb[0].mxu0
      %1375 = vmatprep.mubr.f32.mxu0 0.0
      %1376 = vmatmul.mubr.f32.gmra.mrb[0].mxu0 %v851
      %v1377 = vpop.f32.mrb[0].mxu0
      %v1378 = vadd.f32 0.0, %v1377
      %v1379 = vpop.f32.mrb[0].mxu0
      %1380 = vmatprep.mubr.f32.mxu0 0.0
      %1381 = vmatmul.mubr.f32.gmra.mrb[0].mxu0 %v854
      %v1382 = vpop.f32.mrb[0].mxu0
      %v1383 = vadd.f32 0.0, %v1382
      %v1384 = vpop.f32.mrb[0].mxu0
      %1385 = vmatprep.mubr.f32.mxu0 0.0
      %1386 = vmatmul.mubr.f32.gmra.mrb[0].mxu0 %v857
      %v1387 = vpop.f32.mrb[0].mxu0
      %v1388 = vadd.f32 0.0, %v1387
      %v1389 = vpop.f32.mrb[0].mxu0
      %1390 = vmatprep.mubr.f32.mxu0 0.0
      %1391 = vmatmul.mubr.f32.gmra.mrb[0].mxu0 %v860
      %v1392 = vpop.f32.mrb[0].mxu0
      %v1393 = vadd.f32 0.0, %v1392
      %v1394 = vpop.f32.mrb[0].mxu0
      %1395 = vmatprep.mubr.f32.mxu0 0.0
      %1396 = vmatmul.mubr.f32.gmra.mrb[0].mxu0 %v863
      %v1397 = vpop.f32.mrb[0].mxu0
      %v1398 = vadd.f32 0.0, %v1397
      %v1399 = vpop.f32.mrb[0].mxu0
      %1400 = vmatprep.mubr.f32.mxu0 0.0
      %1401 = vmatmul.mubr.f32.gmra.mrb[0].mxu0 %v866
      %v1402 = vpop.f32.mrb[0].mxu0
      %v1403 = vadd.f32 0.0, %v1402
      %v1404 = vpop.f32.mrb[0].mxu0
      %1405 = vmatprep.mubr.f32.mxu0 0.0
      %1406 = vmatmul.mubr.f32.gmra.mrb[0].mxu0 %v869
      %v1407 = vpop.f32.mrb[0].mxu0
      %v1408 = vadd.f32 0.0, %v1407
      %v1409 = vpop.f32.mrb[0].mxu0
      %1410 = vmatprep.mubr.f32.mxu0 0.0
      %1411 = vmatmul.mubr.f32.gmra.mrb[0].mxu0 %v872
      %v1412 = vpop.f32.mrb[0].mxu0
      %v1413 = vadd.f32 0.0, %v1412
      %v1414 = vpop.f32.mrb[0].mxu0
      %1415 = vmatprep.mubr.f32.mxu0 0.0
      %1416 = vmatmul.mubr.f32.gmra.mrb[0].mxu0 %v875
      %v1417 = vpop.f32.mrb[0].mxu0
      %v1418 = vadd.f32 0.0, %v1417
      %v1419 = vpop.f32.mrb[0].mxu0
      %1420 = vmatprep.mubr.f32.mxu0 0.0
      %1421 = vmatmul.mubr.f32.gmra.mrb[0].mxu0 %v878
      %v1422 = vpop.f32.mrb[0].mxu0
      %v1423 = vadd.f32 0.0, %v1422
      %v1424 = vpop.f32.mrb[0].mxu0
      %1425 = vmatprep.mubr.f32.mxu0 0.0
      %1426 = vmatmul.mubr.f32.gmra.mrb[0].mxu0 %v881
      %v1427 = vpop.f32.mrb[0].mxu0
      %v1428 = vadd.f32 0.0, %v1427
      %v1429 = vpop.f32.mrb[0].mxu0
      %1430 = vmatprep.mubr.f32.mxu0 0.0
      %1431 = vmatmul.mubr.f32.gmra.mrb[0].mxu0 %v884
      %v1432 = vpop.f32.mrb[0].mxu0
      %v1433 = vadd.f32 0.0, %v1432
      %v1434 = vpop.f32.mrb[0].mxu0
      %1435 = vmatprep.mubr.f32.mxu0 0.0
      %1436 = vmatmul.mubr.f32.gmra.mrb[0].mxu0 %v887
      %v1437 = vpop.f32.mrb[0].mxu0
      %v1438 = vadd.f32 0.0, %v1437
      %v1439 = vpop.f32.mrb[0].mxu0
      %1440 = vmatprep.mubr.f32.mxu0 0.0
      %1441 = vmatmul.mubr.f32.gmra.mrb[0].mxu0 %v890
      %v1442 = vpop.f32.mrb[0].mxu0
      %v1443 = vadd.f32 0.0, %v1442
      %v1444 = vpop.f32.mrb[0].mxu0
      %1445 = vmatprep.mubr.f32.mxu0 0.0
      %1446 = vmatmul.mubr.f32.gmra.mrb[0].mxu0 %v893
      %v1447 = vpop.f32.mrb[0].mxu0
      %v1448 = vadd.f32 0.0, %v1447
      %v1449 = vpop.f32.mrb[0].mxu0
      %1450 = vmatprep.mubr.f32.mxu0 0.0
      %1451 = vmatmul.mubr.f32.gmra.mrb[0].mxu0 %v896
      %v1452 = vpop.f32.mrb[0].mxu0
      %v1453 = vadd.f32 0.0, %v1452
      %v1454 = vpop.f32.mrb[0].mxu0
      %1455 = vmatprep.mubr.f32.mxu0 0.0
      %1456 = vmatmul.mubr.f32.gmra.mrb[0].mxu0 %v899
      %v1457 = vpop.f32.mrb[0].mxu0
      %v1458 = vadd.f32 0.0, %v1457
      %v1459 = vpop.f32.mrb[0].mxu0
      %1460 = vmatprep.mubr.f32.mxu0 0.0
      %1461 = vmatmul.mubr.f32.gmra.mrb[0].mxu0 %v902
      %v1462 = vpop.f32.mrb[0].mxu0
      %v1463 = vadd.f32 0.0, %v1462
      %v1464 = vpop.f32.mrb[0].mxu0
      %1465 = vmatprep.mubr.f32.mxu0 0.0
      %1466 = vmatmul.mubr.f32.gmra.mrb[0].mxu0 %v905
      %v1467 = vpop.f32.mrb[0].mxu0
      %v1468 = vadd.f32 0.0, %v1467
      %v1469 = vpop.f32.mrb[0].mxu0
      %1470 = vmatprep.mubr.f32.mxu0 0.0
      %1471 = vmatmul.mubr.f32.gmra.mrb[0].mxu0 %v908
      %v1472 = vpop.f32.mrb[0].mxu0
      %v1473 = vadd.f32 0.0, %v1472
      %v1474 = vpop.f32.mrb[0].mxu0
      %1475 = vmatprep.mubr.f32.mxu0 0.0
      %1476 = vmatmul.mubr.f32.gmra.mrb[0].mxu0 %v911
      %v1477 = vpop.f32.mrb[0].mxu0
      %v1478 = vadd.f32 0.0, %v1477
      %v1479 = vpop.f32.mrb[0].mxu0
      %1480 = vmatprep.mubr.f32.mxu0 0.0
      %1481 = vmatmul.mubr.f32.gmra.mrb[0].mxu0 %v914
      %v1482 = vpop.f32.mrb[0].mxu0
      %v1483 = vadd.f32 0.0, %v1482
      %v1484 = vpop.f32.mrb[0].mxu0
      %1485 = vmatprep.mubr.f32.mxu0 0.0
      %1486 = vmatmul.mubr.f32.gmra.mrb[0].mxu0 %v917
      %v1487 = vpop.f32.mrb[0].mxu0
      %v1488 = vadd.f32 0.0, %v1487
      %v1489 = vpop.f32.mrb[0].mxu0
      %1490 = vmatprep.mubr.f32.mxu0 0.0
      %1491 = vmatmul.mubr.f32.gmra.mrb[0].mxu0 %v920
      %v1492 = vpop.f32.mrb[0].mxu0
      %v1493 = vadd.f32 0.0, %v1492
      %v1494 = vpop.f32.mrb[0].mxu0
      %1495 = vmatprep.mubr.f32.mxu0 0.0
      %1496 = vmatmul.mubr.f32.gmra.mrb[0].mxu0 %v923
      %v1497 = vpop.f32.mrb[0].mxu0
      %v1498 = vadd.f32 0.0, %v1497
      %v1499 = vpop.f32.mrb[0].mxu0
      %1500 = vmatprep.mubr.f32.mxu0 0.0
      %1501 = vmatmul.mubr.f32.gmra.mrb[0].mxu0 %v926
      %v1502 = vpop.f32.mrb[0].mxu0
      %v1503 = vadd.f32 0.0, %v1502
      %v1504 = vpop.f32.mrb[0].mxu0
      %1505 = vmatprep.mubr.f32.mxu0 0.0
      %1506 = vmatmul.mubr.f32.gmra.mrb[0].mxu0 %v929
      %v1507 = vpop.f32.mrb[0].mxu0
      %v1508 = vadd.f32 0.0, %v1507
      %v1509 = vpop.f32.mrb[0].mxu0
      %1510 = vmatprep.mubr.f32.mxu0 0.0
      %1511 = vmatmul.mubr.f32.gmra.mrb[0].mxu0 %v932
      %v1512 = vpop.f32.mrb[0].mxu0
      %v1513 = vadd.f32 0.0, %v1512
      %v1514 = vpop.f32.mrb[0].mxu0
      %1515 = vmatprep.mubr.f32.mxu0 0.0
      %1516 = vmatmul.mubr.f32.gmra.mrb[0].mxu0 %v935
      %v1517 = vpop.f32.mrb[0].mxu0
      %v1518 = vadd.f32 0.0, %v1517
      %v1519 = vpop.f32.mrb[0].mxu0
      %1520 = vmatprep.mubr.f32.mxu0 0.0
      %1521 = vmatmul.mubr.f32.gmra.mrb[0].mxu0 %v938
      %v1522 = vpop.f32.mrb[0].mxu0
      %v1523 = vadd.f32 0.0, %v1522
      %v1524 = vpop.f32.mrb[0].mxu0
      %1525 = vmatprep.mubr.f32.mxu0 0.0
      %1526 = vmatmul.mubr.f32.gmra.mrb[0].mxu0 %v941
      %v1527 = vpop.f32.mrb[0].mxu0
      %v1528 = vadd.f32 0.0, %v1527
      %v1529 = vpop.f32.mrb[0].mxu0
      %1530 = vmatprep.mubr.f32.mxu0 0.0
      %1531 = vmatmul.mubr.f32.gmra.mrb[0].mxu0 %v944
      %v1532 = vpop.f32.mrb[0].mxu0
      %v1533 = vadd.f32 0.0, %v1532
      %v1534 = vpop.f32.mrb[0].mxu0
      %1535 = vmatprep.mubr.f32.mxu0 0.0
      %1536 = vmatmul.mubr.f32.gmra.mrb[0].mxu0 %v947
      %v1537 = vpop.f32.mrb[0].mxu0
      %v1538 = vadd.f32 0.0, %v1537
      %v1539 = vpop.f32.mrb[0].mxu0
      %1540 = vmatprep.mubr.f32.mxu0 0.0
      %1541 = vmatmul.mubr.f32.gmra.mrb[0].mxu0 %v950
      %v1542 = vpop.f32.mrb[0].mxu0
      %v1543 = vadd.f32 0.0, %v1542
      %v1544 = vpop.f32.mrb[0].mxu0
      %1545 = vmatprep.mubr.f32.mxu0 0.0
      %1546 = vmatmul.mubr.f32.gmra.mrb[0].mxu0 %v953
      %v1547 = vpop.f32.mrb[0].mxu0
      %v1548 = vadd.f32 0.0, %v1547
      %v1549 = vpop.f32.mrb[0].mxu0
      %1550 = vmatprep.mubr.f32.mxu0 0.0
      %1551 = vmatmul.mubr.f32.gmra.mrb[0].mxu0 %v956
      %v1552 = vpop.f32.mrb[0].mxu0
      %v1553 = vadd.f32 0.0, %v1552
      %v1554 = vpop.f32.mrb[0].mxu0
      %1555 = vmatprep.mubr.f32.mxu0 0.0
      %1556 = vmatmul.mubr.f32.gmra.mrb[0].mxu0 %v959
      %v1557 = vpop.f32.mrb[0].mxu0
      %v1558 = vadd.f32 0.0, %v1557
      %v1559 = vpop.f32.mrb[0].mxu0
      %1560 = vmatprep.mubr.f32.mxu0 0.0
      %1561 = vmatmul.mubr.f32.gmra.mrb[0].mxu0 %v962
      %v1562 = vpop.f32.mrb[0].mxu0
      %v1563 = vadd.f32 0.0, %v1562
      %v1564 = vpop.f32.mrb[0].mxu0
      %1565 = vmatprep.mubr.f32.mxu0 0.0
      %1566 = vmatmul.mubr.f32.gmra.mrb[0].mxu0 %v965
      %v1567 = vpop.f32.mrb[0].mxu0
      %v1568 = vadd.f32 0.0, %v1567
      %v1569 = vpop.f32.mrb[0].mxu0
      %1570 = vmatprep.mubr.f32.mxu0 0.0
      %1571 = vmatmul.mubr.f32.gmra.mrb[0].mxu0 %v968
      %v1572 = vpop.f32.mrb[0].mxu0
      %v1573 = vadd.f32 0.0, %v1572
      %v1574 = vpop.f32.mrb[0].mxu0
      %1575 = vmatprep.mubr.f32.mxu0 0.0
      %1576 = vmatmul.mubr.f32.gmra.mrb[0].mxu0 %v971
      %v1577 = vpop.f32.mrb[0].mxu0
      %v1578 = vadd.f32 0.0, %v1577
      %v1579 = vpop.f32.mrb[0].mxu0
      %1580 = vmatprep.mubr.f32.mxu0 0.0
      %1581 = vmatmul.mubr.f32.gmra.mrb[0].mxu0 %v974
      %v1582 = vpop.f32.mrb[0].mxu0
      %v1583 = vadd.f32 0.0, %v1582
      %v1584 = vpop.f32.mrb[0].mxu0
      %1585 = vdwg.mxu0
      %v1586 = vmul.f32 %v363, %v1043
      %v1587 = vmul.f32 %v364, %v1048
      %v1588 = vmul.f32 %v365, %v1053
      %v1589 = vmul.f32 %v366, %v1058
      %v1590 = vmul.f32 %v367, %v1063
      %v1591 = vmul.f32 %v368, %v1068
      %v1592 = vmul.f32 %v369, %v1073
      %v1593 = vmul.f32 %v370, %v1078
      %v1594 = vmul.f32 %v371, %v1083
      %v1595 = vmul.f32 %v372, %v1088
      %v1596 = vmul.f32 %v373, %v1093
      %v1597 = vmul.f32 %v374, %v1098
      %v1598 = vmul.f32 %v375, %v1103
      %v1599 = vmul.f32 %v376, %v1108
      %v1600 = vmul.f32 %v377, %v1113
      %v1601 = vmul.f32 %v378, %v1118
      %v1602 = vmul.f32 %v379, %v1123
      %v1603 = vmul.f32 %v380, %v1128
      %v1604 = vmul.f32 %v381, %v1133
      %v1605 = vmul.f32 %v382, %v1138
      %v1606 = vmul.f32 %v383, %v1143
      %v1607 = vmul.f32 %v384, %v1148
      %v1608 = vmul.f32 %v385, %v1153
      %v1609 = vmul.f32 %v386, %v1158
      %v1610 = vmul.f32 %v387, %v1163
      %v1611 = vmul.f32 %v388, %v1168
      %v1612 = vmul.f32 %v389, %v1173
      %v1613 = vmul.f32 %v390, %v1178
      %v1614 = vmul.f32 %v391, %v1183
      %v1615 = vmul.f32 %v392, %v1188
      %v1616 = vmul.f32 %v393, %v1193
      %v1617 = vmul.f32 %v394, %v1198
      %v1618 = vmul.f32 %v395, %v1203
      %v1619 = vmul.f32 %v396, %v1208
      %v1620 = vmul.f32 %v397, %v1213
      %v1621 = vmul.f32 %v398, %v1218
      %v1622 = vmul.f32 %v399, %v1223
      %v1623 = vmul.f32 %v400, %v1228
      %v1624 = vmul.f32 %v401, %v1233
      %v1625 = vmul.f32 %v402, %v1238
      %v1626 = vmul.f32 %v403, %v1243
      %v1627 = vmul.f32 %v404, %v1248
      %v1628 = vmul.f32 %v405, %v1253
      %v1629 = vmul.f32 %v406, %v1258
      %v1630 = vmul.f32 %v407, %v1263
      %v1631 = vmul.f32 %v408, %v1268
      %v1632 = vmul.f32 %v409, %v1273
      %v1633 = vmul.f32 %v410, %v1278
      %v1634 = vadd.f32 %v1586, %v1348
      %v1635 = vadd.f32 %v1587, %v1353
      %v1636 = vadd.f32 %v1588, %v1358
      %v1637 = vadd.f32 %v1589, %v1363
      %v1638 = vadd.f32 %v1590, %v1368
      %v1639 = vadd.f32 %v1591, %v1373
      %v1640 = vadd.f32 %v1592, %v1378
      %v1641 = vadd.f32 %v1593, %v1383
      %v1642 = vadd.f32 %v1594, %v1388
      %v1643 = vadd.f32 %v1595, %v1393
      %v1644 = vadd.f32 %v1596, %v1398
      %v1645 = vadd.f32 %v1597, %v1403
      %v1646 = vadd.f32 %v1598, %v1408
      %v1647 = vadd.f32 %v1599, %v1413
      %v1648 = vadd.f32 %v1600, %v1418
      %v1649 = vadd.f32 %v1601, %v1423
      %v1650 = vadd.f32 %v1602, %v1428
      %v1651 = vadd.f32 %v1603, %v1433
      %v1652 = vadd.f32 %v1604, %v1438
      %v1653 = vadd.f32 %v1605, %v1443
      %v1654 = vadd.f32 %v1606, %v1448
      %v1655 = vadd.f32 %v1607, %v1453
      %v1656 = vadd.f32 %v1608, %v1458
      %v1657 = vadd.f32 %v1609, %v1463
      %v1658 = vadd.f32 %v1610, %v1468
      %v1659 = vadd.f32 %v1611, %v1473
      %v1660 = vadd.f32 %v1612, %v1478
      %v1661 = vadd.f32 %v1613, %v1483
      %v1662 = vadd.f32 %v1614, %v1488
      %v1663 = vadd.f32 %v1615, %v1493
      %v1664 = vadd.f32 %v1616, %v1498
      %v1665 = vadd.f32 %v1617, %v1503
      %v1666 = vadd.f32 %v1618, %v1508
      %v1667 = vadd.f32 %v1619, %v1513
      %v1668 = vadd.f32 %v1620, %v1518
      %v1669 = vadd.f32 %v1621, %v1523
      %v1670 = vadd.f32 %v1622, %v1528
      %v1671 = vadd.f32 %v1623, %v1533
      %v1672 = vadd.f32 %v1624, %v1538
      %v1673 = vadd.f32 %v1625, %v1543
      %v1674 = vadd.f32 %v1626, %v1548
      %v1675 = vadd.f32 %v1627, %v1553
      %v1676 = vadd.f32 %v1628, %v1558
      %v1677 = vadd.f32 %v1629, %v1563
      %v1678 = vadd.f32 %v1630, %v1568
      %v1679 = vadd.f32 %v1631, %v1573
      %v1680 = vadd.f32 %v1632, %v1578
      %v1681 = vadd.f32 %v1633, %v1583
      %v1682 = vld [vmem:[%s3] sm:$0xff]
      %v1683 = vld [vmem:[%s3 + $0x8] sm:$0xff]
      %v1684 = vld [vmem:[%s4] sm:$0x1]
      %v1686 = vlaneseq
      %v1687 = vshrl.u32 %v1686, 7
      %v1688 = vsub.s32 0, %v1687
      %v1689 = vrot.slane %v1684, %v1688
      %v1692 = vsel %vm831, %v1634, 0
      %v1695 = vsel %vm831, %v1635, 0
      %v1698 = vsel %vm831, %v1636, 0
      %v1701 = vsel %vm831, %v1637, 0
      %v1704 = vsel %vm831, %v1638, 0
      %v1707 = vsel %vm831, %v1639, 0
      %v1710 = vsel %vm831, %v1640, 0
      %v1713 = vsel %vm831, %v1641, 0
      %v1716 = vsel %vm831, %v1642, 0
      %v1719 = vsel %vm831, %v1643, 0
      %v1722 = vsel %vm831, %v1644, 0
      %v1725 = vsel %vm831, %v1645, 0
      %v1728 = vsel %vm831, %v1646, 0
      %v1731 = vsel %vm831, %v1647, 0
      %v1734 = vsel %vm831, %v1648, 0
      %v1737 = vsel %vm831, %v1649, 0
      %v1740 = vsel %vm831, %v1650, 0
      %v1743 = vsel %vm831, %v1651, 0
      %v1746 = vsel %vm831, %v1652, 0
      %v1749 = vsel %vm831, %v1653, 0
      %v1752 = vsel %vm831, %v1654, 0
      %v1755 = vsel %vm831, %v1655, 0
      %v1758 = vsel %vm831, %v1656, 0
      %v1761 = vsel %vm831, %v1657, 0
      %v1764 = vsel %vm831, %v1658, 0
      %v1767 = vsel %vm831, %v1659, 0
      %v1770 = vsel %vm831, %v1660, 0
      %v1773 = vsel %vm831, %v1661, 0
      %v1776 = vsel %vm831, %v1662, 0
      %v1779 = vsel %vm831, %v1663, 0
      %v1782 = vsel %vm831, %v1664, 0
      %v1785 = vsel %vm831, %v1665, 0
      %v1788 = vsel %vm831, %v1666, 0
      %v1791 = vsel %vm831, %v1667, 0
      %v1794 = vsel %vm831, %v1668, 0
      %v1797 = vsel %vm831, %v1669, 0
      %v1800 = vsel %vm831, %v1670, 0
      %v1803 = vsel %vm831, %v1671, 0
      %v1806 = vsel %vm831, %v1672, 0
      %v1809 = vsel %vm831, %v1673, 0
      %v1812 = vsel %vm831, %v1674, 0
      %v1815 = vsel %vm831, %v1675, 0
      %v1818 = vsel %vm831, %v1676, 0
      %v1821 = vsel %vm831, %v1677, 0
      %v1824 = vsel %vm831, %v1678, 0
      %v1827 = vsel %vm831, %v1679, 0
      %v1830 = vsel %vm831, %v1680, 0
      %v1833 = vsel %vm831, %v1681, 0
      %1835 = vmatprep.subr.mxu0 0.0
      %1836 = vmatpush1.msra.mxu0 %v1682
      %1837 = vmatprep.subr.mxu0 0.0
      %1838 = vmatpush1.msra.mxu0 %v1683
      %1839 = vmatprep.subr.mxu0 0.0
      %1840 = vmatpush1.msra.mxu0 0.0
      %1841 = vmatprep.subr.mxu0 0.0
      %1842 = vmatpush1.msra.mxu0 0.0
      %1843 = vmatprep.subr.mxu0 0.0
      %1844 = vmatpush1.msra.mxu0 0.0
      %1845 = vmatprep.subr.mxu0 0.0
      %1846 = vmatpush1.msra.mxu0 0.0
      %1847 = vmatprep.subr.mxu0 0.0
      %1848 = vmatpush1.msra.mxu0 0.0
      %1849 = vmatprep.subr.mxu0 0.0
      %1850 = vmatpush1.msra.mxu0 0.0
      %1851 = vmatprep.subr.mxu0 0.0
      %1852 = vmatpush1.msra.mxu0 0.0
      %1853 = vmatprep.subr.mxu0 0.0
      %1854 = vmatpush1.msra.mxu0 0.0
      %1855 = vmatprep.subr.mxu0 0.0
      %1856 = vmatpush1.msra.mxu0 0.0
      %1857 = vmatprep.subr.mxu0 0.0
      %1858 = vmatpush1.msra.mxu0 0.0
      %1859 = vmatprep.subr.mxu0 0.0
      %1860 = vmatpush1.msra.mxu0 0.0
      %1861 = vmatprep.subr.mxu0 0.0
      %1862 = vmatpush1.msra.mxu0 0.0
      %1863 = vmatprep.subr.mxu0 0.0
      %1864 = vmatpush1.msra.mxu0 0.0
      %1865 = vmatprep.subr.mxu0 0.0
      %1866 = vmatpush1.msra.mxu0 0.0
      %1867 = vmatprep.subr.mxu0 0.0
      %1868 = vmatpush1.msra.mxu0 0.0
      %1869 = vmatprep.subr.mxu0 0.0
      %1870 = vmatpush1.msra.mxu0 0.0
      %1871 = vmatprep.subr.mxu0 0.0
      %1872 = vmatpush1.msra.mxu0 0.0
      %1873 = vmatprep.subr.mxu0 0.0
      %1874 = vmatpush1.msra.mxu0 0.0
      %1875 = vmatprep.subr.mxu0 0.0
      %1876 = vmatpush1.msra.mxu0 0.0
      %1877 = vmatprep.subr.mxu0 0.0
      %1878 = vmatpush1.msra.mxu0 0.0
      %1879 = vmatprep.subr.mxu0 0.0
      %1880 = vmatpush1.msra.mxu0 0.0
      %1881 = vmatprep.subr.mxu0 0.0
      %1882 = vmatpush1.msra.mxu0 0.0
      %1883 = vmatprep.subr.mxu0 0.0
      %1884 = vmatpush1.msra.mxu0 0.0
      %1885 = vmatprep.subr.mxu0 0.0
      %1886 = vmatpush1.msra.mxu0 0.0
      %1887 = vmatprep.subr.mxu0 0.0
      %1888 = vmatpush1.msra.mxu0 0.0
      %1889 = vmatprep.subr.mxu0 0.0
      %1890 = vmatpush1.msra.mxu0 0.0
      %1891 = vmatprep.subr.mxu0 0.0
      %1892 = vmatpush1.msra.mxu0 0.0
      %1893 = vmatprep.subr.mxu0 0.0
      %1894 = vmatpush1.msra.mxu0 0.0
      %1895 = vmatprep.subr.mxu0 0.0
      %1896 = vmatpush1.msra.mxu0 0.0
      %1897 = vmatprep.subr.mxu0 0.0
      %1898 = vmatpush1.msra.mxu0 0.0
      %1899 = vmatprep.mubr.f32.mxu0 0.0
      %1900 = vmatmul.mubr.f32.gmra.mrb[0].mxu0 %v1692
      %v1901 = vpop.f32.mrb[0].mxu0
      %v1902 = vadd.f32 %v1689, %v1901
      %v1903 = vpop.f32.mrb[0].mxu0
      %1904 = vmatprep.mubr.f32.mxu0 0.0
      %1905 = vmatmul.mubr.f32.gmra.mrb[0].mxu0 %v1695
      %v1906 = vpop.f32.mrb[0].mxu0
      %v1907 = vadd.f32 %v1689, %v1906
      %v1908 = vpop.f32.mrb[0].mxu0
      %1909 = vmatprep.mubr.f32.mxu0 0.0
      %1910 = vmatmul.mubr.f32.gmra.mrb[0].mxu0 %v1698
      %v1911 = vpop.f32.mrb[0].mxu0
      %v1912 = vadd.f32 %v1689, %v1911
      %v1913 = vpop.f32.mrb[0].mxu0
      %1914 = vmatprep.mubr.f32.mxu0 0.0
      %1915 = vmatmul.mubr.f32.gmra.mrb[0].mxu0 %v1701
      %v1916 = vpop.f32.mrb[0].mxu0
      %v1917 = vadd.f32 %v1689, %v1916
      %v1918 = vpop.f32.mrb[0].mxu0
      %1919 = vmatprep.mubr.f32.mxu0 0.0
      %1920 = vmatmul.mubr.f32.gmra.mrb[0].mxu0 %v1704
      %v1921 = vpop.f32.mrb[0].mxu0
      %v1922 = vadd.f32 %v1689, %v1921
      %v1923 = vpop.f32.mrb[0].mxu0
      %1924 = vmatprep.mubr.f32.mxu0 0.0
      %1925 = vmatmul.mubr.f32.gmra.mrb[0].mxu0 %v1707
      %v1926 = vpop.f32.mrb[0].mxu0
      %v1927 = vadd.f32 %v1689, %v1926
      %v1928 = vpop.f32.mrb[0].mxu0
      %1929 = vmatprep.mubr.f32.mxu0 0.0
      %1930 = vmatmul.mubr.f32.gmra.mrb[0].mxu0 %v1710
      %v1931 = vpop.f32.mrb[0].mxu0
      %v1932 = vadd.f32 %v1689, %v1931
      %v1933 = vpop.f32.mrb[0].mxu0
      %1934 = vmatprep.mubr.f32.mxu0 0.0
      %1935 = vmatmul.mubr.f32.gmra.mrb[0].mxu0 %v1713
      %v1936 = vpop.f32.mrb[0].mxu0
      %v1937 = vadd.f32 %v1689, %v1936
      %v1938 = vpop.f32.mrb[0].mxu0
      %1939 = vmatprep.mubr.f32.mxu0 0.0
      %1940 = vmatmul.mubr.f32.gmra.mrb[0].mxu0 %v1716
      %v1941 = vpop.f32.mrb[0].mxu0
      %v1942 = vadd.f32 %v1689, %v1941
      %v1943 = vpop.f32.mrb[0].mxu0
      %1944 = vmatprep.mubr.f32.mxu0 0.0
      %1945 = vmatmul.mubr.f32.gmra.mrb[0].mxu0 %v1719
      %v1946 = vpop.f32.mrb[0].mxu0
      %v1947 = vadd.f32 %v1689, %v1946
      %v1948 = vpop.f32.mrb[0].mxu0
      %1949 = vmatprep.mubr.f32.mxu0 0.0
      %1950 = vmatmul.mubr.f32.gmra.mrb[0].mxu0 %v1722
      %v1951 = vpop.f32.mrb[0].mxu0
      %v1952 = vadd.f32 %v1689, %v1951
      %v1953 = vpop.f32.mrb[0].mxu0
      %1954 = vmatprep.mubr.f32.mxu0 0.0
      %1955 = vmatmul.mubr.f32.gmra.mrb[0].mxu0 %v1725
      %v1956 = vpop.f32.mrb[0].mxu0
      %v1957 = vadd.f32 %v1689, %v1956
      %v1958 = vpop.f32.mrb[0].mxu0
      %1959 = vmatprep.mubr.f32.mxu0 0.0
      %1960 = vmatmul.mubr.f32.gmra.mrb[0].mxu0 %v1728
      %v1961 = vpop.f32.mrb[0].mxu0
      %v1962 = vadd.f32 %v1689, %v1961
      %v1963 = vpop.f32.mrb[0].mxu0
      %1964 = vmatprep.mubr.f32.mxu0 0.0
      %1965 = vmatmul.mubr.f32.gmra.mrb[0].mxu0 %v1731
      %v1966 = vpop.f32.mrb[0].mxu0
      %v1967 = vadd.f32 %v1689, %v1966
      %v1968 = vpop.f32.mrb[0].mxu0
      %1969 = vmatprep.mubr.f32.mxu0 0.0
      %1970 = vmatmul.mubr.f32.gmra.mrb[0].mxu0 %v1734
      %v1971 = vpop.f32.mrb[0].mxu0
      %v1972 = vadd.f32 %v1689, %v1971
      %v1973 = vpop.f32.mrb[0].mxu0
      %1974 = vmatprep.mubr.f32.mxu0 0.0
      %1975 = vmatmul.mubr.f32.gmra.mrb[0].mxu0 %v1737
      %v1976 = vpop.f32.mrb[0].mxu0
      %v1977 = vadd.f32 %v1689, %v1976
      %v1978 = vpop.f32.mrb[0].mxu0
      %1979 = vmatprep.mubr.f32.mxu0 0.0
      %1980 = vmatmul.mubr.f32.gmra.mrb[0].mxu0 %v1740
      %v1981 = vpop.f32.mrb[0].mxu0
      %v1982 = vadd.f32 %v1689, %v1981
      %v1983 = vpop.f32.mrb[0].mxu0
      %1984 = vmatprep.mubr.f32.mxu0 0.0
      %1985 = vmatmul.mubr.f32.gmra.mrb[0].mxu0 %v1743
      %v1986 = vpop.f32.mrb[0].mxu0
      %v1987 = vadd.f32 %v1689, %v1986
      %v1988 = vpop.f32.mrb[0].mxu0
      %1989 = vmatprep.mubr.f32.mxu0 0.0
      %1990 = vmatmul.mubr.f32.gmra.mrb[0].mxu0 %v1746
      %v1991 = vpop.f32.mrb[0].mxu0
      %v1992 = vadd.f32 %v1689, %v1991
      %v1993 = vpop.f32.mrb[0].mxu0
      %1994 = vmatprep.mubr.f32.mxu0 0.0
      %1995 = vmatmul.mubr.f32.gmra.mrb[0].mxu0 %v1749
      %v1996 = vpop.f32.mrb[0].mxu0
      %v1997 = vadd.f32 %v1689, %v1996
      %v1998 = vpop.f32.mrb[0].mxu0
      %1999 = vmatprep.mubr.f32.mxu0 0.0
      %2000 = vmatmul.mubr.f32.gmra.mrb[0].mxu0 %v1752
      %v2001 = vpop.f32.mrb[0].mxu0
      %v2002 = vadd.f32 %v1689, %v2001
      %v2003 = vpop.f32.mrb[0].mxu0
      %2004 = vmatprep.mubr.f32.mxu0 0.0
      %2005 = vmatmul.mubr.f32.gmra.mrb[0].mxu0 %v1755
      %v2006 = vpop.f32.mrb[0].mxu0
      %v2007 = vadd.f32 %v1689, %v2006
      %v2008 = vpop.f32.mrb[0].mxu0
      %2009 = vmatprep.mubr.f32.mxu0 0.0
      %2010 = vmatmul.mubr.f32.gmra.mrb[0].mxu0 %v1758
      %v2011 = vpop.f32.mrb[0].mxu0
      %v2012 = vadd.f32 %v1689, %v2011
      %v2013 = vpop.f32.mrb[0].mxu0
      %2014 = vmatprep.mubr.f32.mxu0 0.0
      %2015 = vmatmul.mubr.f32.gmra.mrb[0].mxu0 %v1761
      %v2016 = vpop.f32.mrb[0].mxu0
      %v2017 = vadd.f32 %v1689, %v2016
      %v2018 = vpop.f32.mrb[0].mxu0
      %2019 = vmatprep.mubr.f32.mxu0 0.0
      %2020 = vmatmul.mubr.f32.gmra.mrb[0].mxu0 %v1764
      %v2021 = vpop.f32.mrb[0].mxu0
      %v2022 = vadd.f32 %v1689, %v2021
      %v2023 = vpop.f32.mrb[0].mxu0
      %2024 = vmatprep.mubr.f32.mxu0 0.0
      %2025 = vmatmul.mubr.f32.gmra.mrb[0].mxu0 %v1767
      %v2026 = vpop.f32.mrb[0].mxu0
      %v2027 = vadd.f32 %v1689, %v2026
      %v2028 = vpop.f32.mrb[0].mxu0
      %2029 = vmatprep.mubr.f32.mxu0 0.0
      %2030 = vmatmul.mubr.f32.gmra.mrb[0].mxu0 %v1770
      %v2031 = vpop.f32.mrb[0].mxu0
      %v2032 = vadd.f32 %v1689, %v2031
      %v2033 = vpop.f32.mrb[0].mxu0
      %2034 = vmatprep.mubr.f32.mxu0 0.0
      %2035 = vmatmul.mubr.f32.gmra.mrb[0].mxu0 %v1773
      %v2036 = vpop.f32.mrb[0].mxu0
      %v2037 = vadd.f32 %v1689, %v2036
      %v2038 = vpop.f32.mrb[0].mxu0
      %2039 = vmatprep.mubr.f32.mxu0 0.0
      %2040 = vmatmul.mubr.f32.gmra.mrb[0].mxu0 %v1776
      %v2041 = vpop.f32.mrb[0].mxu0
      %v2042 = vadd.f32 %v1689, %v2041
      %v2043 = vpop.f32.mrb[0].mxu0
      %2044 = vmatprep.mubr.f32.mxu0 0.0
      %2045 = vmatmul.mubr.f32.gmra.mrb[0].mxu0 %v1779
      %v2046 = vpop.f32.mrb[0].mxu0
      %v2047 = vadd.f32 %v1689, %v2046
      %v2048 = vpop.f32.mrb[0].mxu0
      %2049 = vmatprep.mubr.f32.mxu0 0.0
      %2050 = vmatmul.mubr.f32.gmra.mrb[0].mxu0 %v1782
      %v2051 = vpop.f32.mrb[0].mxu0
      %v2052 = vadd.f32 %v1689, %v2051
      %v2053 = vpop.f32.mrb[0].mxu0
      %2054 = vmatprep.mubr.f32.mxu0 0.0
      %2055 = vmatmul.mubr.f32.gmra.mrb[0].mxu0 %v1785
      %v2056 = vpop.f32.mrb[0].mxu0
      %v2057 = vadd.f32 %v1689, %v2056
      %v2058 = vpop.f32.mrb[0].mxu0
      %2059 = vmatprep.mubr.f32.mxu0 0.0
      %2060 = vmatmul.mubr.f32.gmra.mrb[0].mxu0 %v1788
      %v2061 = vpop.f32.mrb[0].mxu0
      %v2062 = vadd.f32 %v1689, %v2061
      %v2063 = vpop.f32.mrb[0].mxu0
      %2064 = vmatprep.mubr.f32.mxu0 0.0
      %2065 = vmatmul.mubr.f32.gmra.mrb[0].mxu0 %v1791
      %v2066 = vpop.f32.mrb[0].mxu0
      %v2067 = vadd.f32 %v1689, %v2066
      %v2068 = vpop.f32.mrb[0].mxu0
      %2069 = vmatprep.mubr.f32.mxu0 0.0
      %2070 = vmatmul.mubr.f32.gmra.mrb[0].mxu0 %v1794
      %v2071 = vpop.f32.mrb[0].mxu0
      %v2072 = vadd.f32 %v1689, %v2071
      %v2073 = vpop.f32.mrb[0].mxu0
      %2074 = vmatprep.mubr.f32.mxu0 0.0
      %2075 = vmatmul.mubr.f32.gmra.mrb[0].mxu0 %v1797
      %v2076 = vpop.f32.mrb[0].mxu0
      %v2077 = vadd.f32 %v1689, %v2076
      %v2078 = vpop.f32.mrb[0].mxu0
      %2079 = vmatprep.mubr.f32.mxu0 0.0
      %2080 = vmatmul.mubr.f32.gmra.mrb[0].mxu0 %v1800
      %v2081 = vpop.f32.mrb[0].mxu0
      %v2082 = vadd.f32 %v1689, %v2081
      %v2083 = vpop.f32.mrb[0].mxu0
      %2084 = vmatprep.mubr.f32.mxu0 0.0
      %2085 = vmatmul.mubr.f32.gmra.mrb[0].mxu0 %v1803
      %v2086 = vpop.f32.mrb[0].mxu0
      %v2087 = vadd.f32 %v1689, %v2086
      %v2088 = vpop.f32.mrb[0].mxu0
      %2089 = vmatprep.mubr.f32.mxu0 0.0
      %2090 = vmatmul.mubr.f32.gmra.mrb[0].mxu0 %v1806
      %v2091 = vpop.f32.mrb[0].mxu0
      %v2092 = vadd.f32 %v1689, %v2091
      %v2093 = vpop.f32.mrb[0].mxu0
      %2094 = vmatprep.mubr.f32.mxu0 0.0
      %2095 = vmatmul.mubr.f32.gmra.mrb[0].mxu0 %v1809
      %v2096 = vpop.f32.mrb[0].mxu0
      %v2097 = vadd.f32 %v1689, %v2096
      %v2098 = vpop.f32.mrb[0].mxu0
      %2099 = vmatprep.mubr.f32.mxu0 0.0
      %2100 = vmatmul.mubr.f32.gmra.mrb[0].mxu0 %v1812
      %v2101 = vpop.f32.mrb[0].mxu0
      %v2102 = vadd.f32 %v1689, %v2101
      %v2103 = vpop.f32.mrb[0].mxu0
      %2104 = vmatprep.mubr.f32.mxu0 0.0
      %2105 = vmatmul.mubr.f32.gmra.mrb[0].mxu0 %v1815
      %v2106 = vpop.f32.mrb[0].mxu0
      %v2107 = vadd.f32 %v1689, %v2106
      %v2108 = vpop.f32.mrb[0].mxu0
      %2109 = vmatprep.mubr.f32.mxu0 0.0
      %2110 = vmatmul.mubr.f32.gmra.mrb[0].mxu0 %v1818
      %v2111 = vpop.f32.mrb[0].mxu0
      %v2112 = vadd.f32 %v1689, %v2111
      %v2113 = vpop.f32.mrb[0].mxu0
      %2114 = vmatprep.mubr.f32.mxu0 0.0
      %2115 = vmatmul.mubr.f32.gmra.mrb[0].mxu0 %v1821
      %v2116 = vpop.f32.mrb[0].mxu0
      %v2117 = vadd.f32 %v1689, %v2116
      %v2118 = vpop.f32.mrb[0].mxu0
      %2119 = vmatprep.mubr.f32.mxu0 0.0
      %2120 = vmatmul.mubr.f32.gmra.mrb[0].mxu0 %v1824
      %v2121 = vpop.f32.mrb[0].mxu0
      %v2122 = vadd.f32 %v1689, %v2121
      %v2123 = vpop.f32.mrb[0].mxu0
      %2124 = vmatprep.mubr.f32.mxu0 0.0
      %2125 = vmatmul.mubr.f32.gmra.mrb[0].mxu0 %v1827
      %v2126 = vpop.f32.mrb[0].mxu0
      %v2127 = vadd.f32 %v1689, %v2126
      %v2128 = vpop.f32.mrb[0].mxu0
      %2129 = vmatprep.mubr.f32.mxu0 0.0
      %2130 = vmatmul.mubr.f32.gmra.mrb[0].mxu0 %v1830
      %v2131 = vpop.f32.mrb[0].mxu0
      %v2132 = vadd.f32 %v1689, %v2131
      %v2133 = vpop.f32.mrb[0].mxu0
      %2134 = vmatprep.mubr.f32.mxu0 0.0
      %2135 = vmatmul.mubr.f32.gmra.mrb[0].mxu0 %v1833
      %v2136 = vpop.f32.mrb[0].mxu0
      %v2137 = vadd.f32 %v1689, %v2136
      %v2138 = vpop.f32.mrb[0].mxu0
      %2139 = vdwg.mxu0
      %vm2140 = vcmp.gt.f32.partialorder %v1902, 0.0
      %vm2141 = vcmp.gt.f32.partialorder %v1907, 0.0
      %vm2142 = vcmp.gt.f32.partialorder %v1912, 0.0
      %vm2143 = vcmp.gt.f32.partialorder %v1917, 0.0
      %vm2144 = vcmp.gt.f32.partialorder %v1922, 0.0
      %vm2145 = vcmp.gt.f32.partialorder %v1927, 0.0
      %vm2146 = vcmp.gt.f32.partialorder %v1932, 0.0
      %vm2147 = vcmp.gt.f32.partialorder %v1937, 0.0
      %vm2148 = vcmp.gt.f32.partialorder %v1942, 0.0
      %vm2149 = vcmp.gt.f32.partialorder %v1947, 0.0
      %vm2150 = vcmp.gt.f32.partialorder %v1952, 0.0
      %vm2151 = vcmp.gt.f32.partialorder %v1957, 0.0
      %vm2152 = vcmp.gt.f32.partialorder %v1962, 0.0
      %vm2153 = vcmp.gt.f32.partialorder %v1967, 0.0
      %vm2154 = vcmp.gt.f32.partialorder %v1972, 0.0
      %vm2155 = vcmp.gt.f32.partialorder %v1977, 0.0
      %vm2156 = vcmp.gt.f32.partialorder %v1982, 0.0
      %vm2157 = vcmp.gt.f32.partialorder %v1987, 0.0
      %vm2158 = vcmp.gt.f32.partialorder %v1992, 0.0
      %vm2159 = vcmp.gt.f32.partialorder %v1997, 0.0
      %vm2160 = vcmp.gt.f32.partialorder %v2002, 0.0
      %vm2161 = vcmp.gt.f32.partialorder %v2007, 0.0
      %vm2162 = vcmp.gt.f32.partialorder %v2012, 0.0
      %vm2163 = vcmp.gt.f32.partialorder %v2017, 0.0
      %vm2164 = vcmp.gt.f32.partialorder %v2022, 0.0
      %vm2165 = vcmp.gt.f32.partialorder %v2027, 0.0
      %vm2166 = vcmp.gt.f32.partialorder %v2032, 0.0
      %vm2167 = vcmp.gt.f32.partialorder %v2037, 0.0
      %vm2168 = vcmp.gt.f32.partialorder %v2042, 0.0
      %vm2169 = vcmp.gt.f32.partialorder %v2047, 0.0
      %vm2170 = vcmp.gt.f32.partialorder %v2052, 0.0
      %vm2171 = vcmp.gt.f32.partialorder %v2057, 0.0
      %vm2172 = vcmp.gt.f32.partialorder %v2062, 0.0
      %vm2173 = vcmp.gt.f32.partialorder %v2067, 0.0
      %vm2174 = vcmp.gt.f32.partialorder %v2072, 0.0
      %vm2175 = vcmp.gt.f32.partialorder %v2077, 0.0
      %vm2176 = vcmp.gt.f32.partialorder %v2082, 0.0
      %vm2177 = vcmp.gt.f32.partialorder %v2087, 0.0
      %vm2178 = vcmp.gt.f32.partialorder %v2092, 0.0
      %vm2179 = vcmp.gt.f32.partialorder %v2097, 0.0
      %vm2180 = vcmp.gt.f32.partialorder %v2102, 0.0
      %vm2181 = vcmp.gt.f32.partialorder %v2107, 0.0
      %vm2182 = vcmp.gt.f32.partialorder %v2112, 0.0
      %vm2183 = vcmp.gt.f32.partialorder %v2117, 0.0
      %vm2184 = vcmp.gt.f32.partialorder %v2122, 0.0
      %vm2185 = vcmp.gt.f32.partialorder %v2127, 0.0
      %vm2186 = vcmp.gt.f32.partialorder %v2132, 0.0
      %vm2187 = vcmp.gt.f32.partialorder %v2137, 0.0
      %v2188 = vmul.f32 %v1902, 0.01
      %v2189 = vmul.f32 %v1907, 0.01
      %v2190 = vmul.f32 %v1912, 0.01
      %v2191 = vmul.f32 %v1917, 0.01
      %v2192 = vmul.f32 %v1922, 0.01
      %v2193 = vmul.f32 %v1927, 0.01
      %v2194 = vmul.f32 %v1932, 0.01
      %v2195 = vmul.f32 %v1937, 0.01
      %v2196 = vmul.f32 %v1942, 0.01
      %v2197 = vmul.f32 %v1947, 0.01
      %v2198 = vmul.f32 %v1952, 0.01
      %v2199 = vmul.f32 %v1957, 0.01
      %v2200 = vmul.f32 %v1962, 0.01
      %v2201 = vmul.f32 %v1967, 0.01
      %v2202 = vmul.f32 %v1972, 0.01
      %v2203 = vmul.f32 %v1977, 0.01
      %v2204 = vmul.f32 %v1982, 0.01
      %v2205 = vmul.f32 %v1987, 0.01
      %v2206 = vmul.f32 %v1992, 0.01
      %v2207 = vmul.f32 %v1997, 0.01
      %v2208 = vmul.f32 %v2002, 0.01
      %v2209 = vmul.f32 %v2007, 0.01
      %v2210 = vmul.f32 %v2012, 0.01
      %v2211 = vmul.f32 %v2017, 0.01
      %v2212 = vmul.f32 %v2022, 0.01
      %v2213 = vmul.f32 %v2027, 0.01
      %v2214 = vmul.f32 %v2032, 0.01
      %v2215 = vmul.f32 %v2037, 0.01
      %v2216 = vmul.f32 %v2042, 0.01
      %v2217 = vmul.f32 %v2047, 0.01
      %v2218 = vmul.f32 %v2052, 0.01
      %v2219 = vmul.f32 %v2057, 0.01
      %v2220 = vmul.f32 %v2062, 0.01
      %v2221 = vmul.f32 %v2067, 0.01
      %v2222 = vmul.f32 %v2072, 0.01
      %v2223 = vmul.f32 %v2077, 0.01
      %v2224 = vmul.f32 %v2082, 0.01
      %v2225 = vmul.f32 %v2087, 0.01
      %v2226 = vmul.f32 %v2092, 0.01
      %v2227 = vmul.f32 %v2097, 0.01
      %v2228 = vmul.f32 %v2102, 0.01
      %v2229 = vmul.f32 %v2107, 0.01
      %v2230 = vmul.f32 %v2112, 0.01
      %v2231 = vmul.f32 %v2117, 0.01
      %v2232 = vmul.f32 %v2122, 0.01
      %v2233 = vmul.f32 %v2127, 0.01
      %v2234 = vmul.f32 %v2132, 0.01
      %v2235 = vmul.f32 %v2137, 0.01
      %v2236 = vsel %vm2140, %v1902, %v2188
      %v2237 = vsel %vm2141, %v1907, %v2189
      %v2238 = vsel %vm2142, %v1912, %v2190
      %v2239 = vsel %vm2143, %v1917, %v2191
      %v2240 = vsel %vm2144, %v1922, %v2192
      %v2241 = vsel %vm2145, %v1927, %v2193
      %v2242 = vsel %vm2146, %v1932, %v2194
      %v2243 = vsel %vm2147, %v1937, %v2195
      %v2244 = vsel %vm2148, %v1942, %v2196
      %v2245 = vsel %vm2149, %v1947, %v2197
      %v2246 = vsel %vm2150, %v1952, %v2198
      %v2247 = vsel %vm2151, %v1957, %v2199
      %v2248 = vsel %vm2152, %v1962, %v2200
      %v2249 = vsel %vm2153, %v1967, %v2201
      %v2250 = vsel %vm2154, %v1972, %v2202
      %v2251 = vsel %vm2155, %v1977, %v2203
      %v2252 = vsel %vm2156, %v1982, %v2204
      %v2253 = vsel %vm2157, %v1987, %v2205
      %v2254 = vsel %vm2158, %v1992, %v2206
      %v2255 = vsel %vm2159, %v1997, %v2207
      %v2256 = vsel %vm2160, %v2002, %v2208
      %v2257 = vsel %vm2161, %v2007, %v2209
      %v2258 = vsel %vm2162, %v2012, %v2210
      %v2259 = vsel %vm2163, %v2017, %v2211
      %v2260 = vsel %vm2164, %v2022, %v2212
      %v2261 = vsel %vm2165, %v2027, %v2213
      %v2262 = vsel %vm2166, %v2032, %v2214
      %v2263 = vsel %vm2167, %v2037, %v2215
      %v2264 = vsel %vm2168, %v2042, %v2216
      %v2265 = vsel %vm2169, %v2047, %v2217
      %v2266 = vsel %vm2170, %v2052, %v2218
      %v2267 = vsel %vm2171, %v2057, %v2219
      %v2268 = vsel %vm2172, %v2062, %v2220
      %v2269 = vsel %vm2173, %v2067, %v2221
      %v2270 = vsel %vm2174, %v2072, %v2222
      %v2271 = vsel %vm2175, %v2077, %v2223
      %v2272 = vsel %vm2176, %v2082, %v2224
      %v2273 = vsel %vm2177, %v2087, %v2225
      %v2274 = vsel %vm2178, %v2092, %v2226
      %v2275 = vsel %vm2179, %v2097, %v2227
      %v2276 = vsel %vm2180, %v2102, %v2228
      %v2277 = vsel %vm2181, %v2107, %v2229
      %v2278 = vsel %vm2182, %v2112, %v2230
      %v2279 = vsel %vm2183, %v2117, %v2231
      %v2280 = vsel %vm2184, %v2122, %v2232
      %v2281 = vsel %vm2185, %v2127, %v2233
      %v2282 = vsel %vm2186, %v2132, %v2234
      %v2283 = vsel %vm2187, %v2137, %v2235
      %v2284 = vld [vmem:[%s5] sm:$0xff]
      %v2285 = vld [vmem:[%s5 + $0x8] sm:$0xff]
      %v2286 = vld [vmem:[%s5 + $0x10] sm:$0xff]
      %v2287 = vld [vmem:[%s5 + $0x18] sm:$0xff]
      %v2288 = vld [vmem:[%s6] sm:$0x1]
      %v2290 = vlaneseq
      %v2291 = vshrl.u32 %v2290, 7
      %v2292 = vsub.s32 0, %v2291
      %v2293 = vrot.slane %v2288, %v2292
      %vm2295 = vcmask 261120
      %v2297 = vsel %vm2295, %v2236, 0
      %v2300 = vsel %vm2295, %v2237, 0
      %v2303 = vsel %vm2295, %v2238, 0
      %v2306 = vsel %vm2295, %v2239, 0
      %v2309 = vsel %vm2295, %v2240, 0
      %v2312 = vsel %vm2295, %v2241, 0
      %v2315 = vsel %vm2295, %v2242, 0
      %v2318 = vsel %vm2295, %v2243, 0
      %v2321 = vsel %vm2295, %v2244, 0
      %v2324 = vsel %vm2295, %v2245, 0
      %v2327 = vsel %vm2295, %v2246, 0
      %v2330 = vsel %vm2295, %v2247, 0
      %v2333 = vsel %vm2295, %v2248, 0
      %v2336 = vsel %vm2295, %v2249, 0
      %v2339 = vsel %vm2295, %v2250, 0
      %v2342 = vsel %vm2295, %v2251, 0
      %v2345 = vsel %vm2295, %v2252, 0
      %v2348 = vsel %vm2295, %v2253, 0
      %v2351 = vsel %vm2295, %v2254, 0
      %v2354 = vsel %vm2295, %v2255, 0
      %v2357 = vsel %vm2295, %v2256, 0
      %v2360 = vsel %vm2295, %v2257, 0
      %v2363 = vsel %vm2295, %v2258, 0
      %v2366 = vsel %vm2295, %v2259, 0
      %v2369 = vsel %vm2295, %v2260, 0
      %v2372 = vsel %vm2295, %v2261, 0
      %v2375 = vsel %vm2295, %v2262, 0
      %v2378 = vsel %vm2295, %v2263, 0
      %v2381 = vsel %vm2295, %v2264, 0
      %v2384 = vsel %vm2295, %v2265, 0
      %v2387 = vsel %vm2295, %v2266, 0
      %v2390 = vsel %vm2295, %v2267, 0
      %v2393 = vsel %vm2295, %v2268, 0
      %v2396 = vsel %vm2295, %v2269, 0
      %v2399 = vsel %vm2295, %v2270, 0
      %v2402 = vsel %vm2295, %v2271, 0
      %v2405 = vsel %vm2295, %v2272, 0
      %v2408 = vsel %vm2295, %v2273, 0
      %v2411 = vsel %vm2295, %v2274, 0
      %v2414 = vsel %vm2295, %v2275, 0
      %v2417 = vsel %vm2295, %v2276, 0
      %v2420 = vsel %vm2295, %v2277, 0
      %v2423 = vsel %vm2295, %v2278, 0
      %v2426 = vsel %vm2295, %v2279, 0
      %v2429 = vsel %vm2295, %v2280, 0
      %v2432 = vsel %vm2295, %v2281, 0
      %v2435 = vsel %vm2295, %v2282, 0
      %v2438 = vsel %vm2295, %v2283, 0
      %2440 = vmatprep.subr.mxu0 0.0
      %2441 = vmatpush1.msra.mxu0 %v2284
      %2442 = vmatprep.subr.mxu0 0.0
      %2443 = vmatpush1.msra.mxu0 %v2285
      %2444 = vmatprep.subr.mxu0 0.0
      %2445 = vmatpush1.msra.mxu0 %v2286
      %2446 = vmatprep.subr.mxu0 0.0
      %2447 = vmatpush1.msra.mxu0 %v2287
      %2448 = vmatprep.subr.mxu0 0.0
      %2449 = vmatpush1.msra.mxu0 0.0
      %2450 = vmatprep.subr.mxu0 0.0
      %2451 = vmatpush1.msra.mxu0 0.0
      %2452 = vmatprep.subr.mxu0 0.0
      %2453 = vmatpush1.msra.mxu0 0.0
      %2454 = vmatprep.subr.mxu0 0.0
      %2455 = vmatpush1.msra.mxu0 0.0
      %2456 = vmatprep.subr.mxu0 0.0
      %2457 = vmatpush1.msra.mxu0 0.0
      %2458 = vmatprep.subr.mxu0 0.0
      %2459 = vmatpush1.msra.mxu0 0.0
      %2460 = vmatprep.subr.mxu0 0.0
      %2461 = vmatpush1.msra.mxu0 0.0
      %2462 = vmatprep.subr.mxu0 0.0
      %2463 = vmatpush1.msra.mxu0 0.0
      %2464 = vmatprep.subr.mxu0 0.0
      %2465 = vmatpush1.msra.mxu0 0.0
      %2466 = vmatprep.subr.mxu0 0.0
      %2467 = vmatpush1.msra.mxu0 0.0
      %2468 = vmatprep.subr.mxu0 0.0
      %2469 = vmatpush1.msra.mxu0 0.0
      %2470 = vmatprep.subr.mxu0 0.0
      %2471 = vmatpush1.msra.mxu0 0.0
      %2472 = vmatprep.subr.mxu0 0.0
      %2473 = vmatpush1.msra.mxu0 0.0
      %2474 = vmatprep.subr.mxu0 0.0
      %2475 = vmatpush1.msra.mxu0 0.0
      %2476 = vmatprep.subr.mxu0 0.0
      %2477 = vmatpush1.msra.mxu0 0.0
      %2478 = vmatprep.subr.mxu0 0.0
      %2479 = vmatpush1.msra.mxu0 0.0
      %2480 = vmatprep.subr.mxu0 0.0
      %2481 = vmatpush1.msra.mxu0 0.0
      %2482 = vmatprep.subr.mxu0 0.0
      %2483 = vmatpush1.msra.mxu0 0.0
      %2484 = vmatprep.subr.mxu0 0.0
      %2485 = vmatpush1.msra.mxu0 0.0
      %2486 = vmatprep.subr.mxu0 0.0
      %2487 = vmatpush1.msra.mxu0 0.0
      %2488 = vmatprep.subr.mxu0 0.0
      %2489 = vmatpush1.msra.mxu0 0.0
      %2490 = vmatprep.subr.mxu0 0.0
      %2491 = vmatpush1.msra.mxu0 0.0
      %2492 = vmatprep.subr.mxu0 0.0
      %2493 = vmatpush1.msra.mxu0 0.0
      %2494 = vmatprep.subr.mxu0 0.0
      %2495 = vmatpush1.msra.mxu0 0.0
      %2496 = vmatprep.subr.mxu0 0.0
      %2497 = vmatpush1.msra.mxu0 0.0
      %2498 = vmatprep.subr.mxu0 0.0
      %2499 = vmatpush1.msra.mxu0 0.0
      %2500 = vmatprep.subr.mxu0 0.0
      %2501 = vmatpush1.msra.mxu0 0.0
      %2502 = vmatprep.subr.mxu0 0.0
      %2503 = vmatpush1.msra.mxu0 0.0
      %2504 = vmatprep.mubr.f32.mxu0 0.0
      %2505 = vmatmul.mubr.f32.gmra.mrb[0].mxu0 %v2297
      %v2506 = vpop.f32.mrb[0].mxu0
      %v2507 = vadd.f32 %v2293, %v2506
      %v2508 = vpop.f32.mrb[0].mxu0
      %2509 = vmatprep.mubr.f32.mxu0 0.0
      %2510 = vmatmul.mubr.f32.gmra.mrb[0].mxu0 %v2300
      %v2511 = vpop.f32.mrb[0].mxu0
      %v2512 = vadd.f32 %v2293, %v2511
      %v2513 = vpop.f32.mrb[0].mxu0
      %2514 = vmatprep.mubr.f32.mxu0 0.0
      %2515 = vmatmul.mubr.f32.gmra.mrb[0].mxu0 %v2303
      %v2516 = vpop.f32.mrb[0].mxu0
      %v2517 = vadd.f32 %v2293, %v2516
      %v2518 = vpop.f32.mrb[0].mxu0
      %2519 = vmatprep.mubr.f32.mxu0 0.0
      %2520 = vmatmul.mubr.f32.gmra.mrb[0].mxu0 %v2306
      %v2521 = vpop.f32.mrb[0].mxu0
      %v2522 = vadd.f32 %v2293, %v2521
      %v2523 = vpop.f32.mrb[0].mxu0
      %2524 = vmatprep.mubr.f32.mxu0 0.0
      %2525 = vmatmul.mubr.f32.gmra.mrb[0].mxu0 %v2309
      %v2526 = vpop.f32.mrb[0].mxu0
      %v2527 = vadd.f32 %v2293, %v2526
      %v2528 = vpop.f32.mrb[0].mxu0
      %2529 = vmatprep.mubr.f32.mxu0 0.0
      %2530 = vmatmul.mubr.f32.gmra.mrb[0].mxu0 %v2312
      %v2531 = vpop.f32.mrb[0].mxu0
      %v2532 = vadd.f32 %v2293, %v2531
      %v2533 = vpop.f32.mrb[0].mxu0
      %2534 = vmatprep.mubr.f32.mxu0 0.0
      %2535 = vmatmul.mubr.f32.gmra.mrb[0].mxu0 %v2315
      %v2536 = vpop.f32.mrb[0].mxu0
      %v2537 = vadd.f32 %v2293, %v2536
      %v2538 = vpop.f32.mrb[0].mxu0
      %2539 = vmatprep.mubr.f32.mxu0 0.0
      %2540 = vmatmul.mubr.f32.gmra.mrb[0].mxu0 %v2318
      %v2541 = vpop.f32.mrb[0].mxu0
      %v2542 = vadd.f32 %v2293, %v2541
      %v2543 = vpop.f32.mrb[0].mxu0
      %2544 = vmatprep.mubr.f32.mxu0 0.0
      %2545 = vmatmul.mubr.f32.gmra.mrb[0].mxu0 %v2321
      %v2546 = vpop.f32.mrb[0].mxu0
      %v2547 = vadd.f32 %v2293, %v2546
      %v2548 = vpop.f32.mrb[0].mxu0
      %2549 = vmatprep.mubr.f32.mxu0 0.0
      %2550 = vmatmul.mubr.f32.gmra.mrb[0].mxu0 %v2324
      %v2551 = vpop.f32.mrb[0].mxu0
      %v2552 = vadd.f32 %v2293, %v2551
      %v2553 = vpop.f32.mrb[0].mxu0
      %2554 = vmatprep.mubr.f32.mxu0 0.0
      %2555 = vmatmul.mubr.f32.gmra.mrb[0].mxu0 %v2327
      %v2556 = vpop.f32.mrb[0].mxu0
      %v2557 = vadd.f32 %v2293, %v2556
      %v2558 = vpop.f32.mrb[0].mxu0
      %2559 = vmatprep.mubr.f32.mxu0 0.0
      %2560 = vmatmul.mubr.f32.gmra.mrb[0].mxu0 %v2330
      %v2561 = vpop.f32.mrb[0].mxu0
      %v2562 = vadd.f32 %v2293, %v2561
      %v2563 = vpop.f32.mrb[0].mxu0
      %2564 = vmatprep.mubr.f32.mxu0 0.0
      %2565 = vmatmul.mubr.f32.gmra.mrb[0].mxu0 %v2333
      %v2566 = vpop.f32.mrb[0].mxu0
      %v2567 = vadd.f32 %v2293, %v2566
      %v2568 = vpop.f32.mrb[0].mxu0
      %2569 = vmatprep.mubr.f32.mxu0 0.0
      %2570 = vmatmul.mubr.f32.gmra.mrb[0].mxu0 %v2336
      %v2571 = vpop.f32.mrb[0].mxu0
      %v2572 = vadd.f32 %v2293, %v2571
      %v2573 = vpop.f32.mrb[0].mxu0
      %2574 = vmatprep.mubr.f32.mxu0 0.0
      %2575 = vmatmul.mubr.f32.gmra.mrb[0].mxu0 %v2339
      %v2576 = vpop.f32.mrb[0].mxu0
      %v2577 = vadd.f32 %v2293, %v2576
      %v2578 = vpop.f32.mrb[0].mxu0
      %2579 = vmatprep.mubr.f32.mxu0 0.0
      %2580 = vmatmul.mubr.f32.gmra.mrb[0].mxu0 %v2342
      %v2581 = vpop.f32.mrb[0].mxu0
      %v2582 = vadd.f32 %v2293, %v2581
      %v2583 = vpop.f32.mrb[0].mxu0
      %2584 = vmatprep.mubr.f32.mxu0 0.0
      %2585 = vmatmul.mubr.f32.gmra.mrb[0].mxu0 %v2345
      %v2586 = vpop.f32.mrb[0].mxu0
      %v2587 = vadd.f32 %v2293, %v2586
      %v2588 = vpop.f32.mrb[0].mxu0
      %2589 = vmatprep.mubr.f32.mxu0 0.0
      %2590 = vmatmul.mubr.f32.gmra.mrb[0].mxu0 %v2348
      %v2591 = vpop.f32.mrb[0].mxu0
      %v2592 = vadd.f32 %v2293, %v2591
      %v2593 = vpop.f32.mrb[0].mxu0
      %2594 = vmatprep.mubr.f32.mxu0 0.0
      %2595 = vmatmul.mubr.f32.gmra.mrb[0].mxu0 %v2351
      %v2596 = vpop.f32.mrb[0].mxu0
      %v2597 = vadd.f32 %v2293, %v2596
      %v2598 = vpop.f32.mrb[0].mxu0
      %2599 = vmatprep.mubr.f32.mxu0 0.0
      %2600 = vmatmul.mubr.f32.gmra.mrb[0].mxu0 %v2354
      %v2601 = vpop.f32.mrb[0].mxu0
      %v2602 = vadd.f32 %v2293, %v2601
      %v2603 = vpop.f32.mrb[0].mxu0
      %2604 = vmatprep.mubr.f32.mxu0 0.0
      %2605 = vmatmul.mubr.f32.gmra.mrb[0].mxu0 %v2357
      %v2606 = vpop.f32.mrb[0].mxu0
      %v2607 = vadd.f32 %v2293, %v2606
      %v2608 = vpop.f32.mrb[0].mxu0
      %2609 = vmatprep.mubr.f32.mxu0 0.0
      %2610 = vmatmul.mubr.f32.gmra.mrb[0].mxu0 %v2360
      %v2611 = vpop.f32.mrb[0].mxu0
      %v2612 = vadd.f32 %v2293, %v2611
      %v2613 = vpop.f32.mrb[0].mxu0
      %2614 = vmatprep.mubr.f32.mxu0 0.0
      %2615 = vmatmul.mubr.f32.gmra.mrb[0].mxu0 %v2363
      %v2616 = vpop.f32.mrb[0].mxu0
      %v2617 = vadd.f32 %v2293, %v2616
      %v2618 = vpop.f32.mrb[0].mxu0
      %2619 = vmatprep.mubr.f32.mxu0 0.0
      %2620 = vmatmul.mubr.f32.gmra.mrb[0].mxu0 %v2366
      %v2621 = vpop.f32.mrb[0].mxu0
      %v2622 = vadd.f32 %v2293, %v2621
      %v2623 = vpop.f32.mrb[0].mxu0
      %2624 = vmatprep.mubr.f32.mxu0 0.0
      %2625 = vmatmul.mubr.f32.gmra.mrb[0].mxu0 %v2369
      %v2626 = vpop.f32.mrb[0].mxu0
      %v2627 = vadd.f32 %v2293, %v2626
      %v2628 = vpop.f32.mrb[0].mxu0
      %2629 = vmatprep.mubr.f32.mxu0 0.0
      %2630 = vmatmul.mubr.f32.gmra.mrb[0].mxu0 %v2372
      %v2631 = vpop.f32.mrb[0].mxu0
      %v2632 = vadd.f32 %v2293, %v2631
      %v2633 = vpop.f32.mrb[0].mxu0
      %2634 = vmatprep.mubr.f32.mxu0 0.0
      %2635 = vmatmul.mubr.f32.gmra.mrb[0].mxu0 %v2375
      %v2636 = vpop.f32.mrb[0].mxu0
      %v2637 = vadd.f32 %v2293, %v2636
      %v2638 = vpop.f32.mrb[0].mxu0
      %2639 = vmatprep.mubr.f32.mxu0 0.0
      %2640 = vmatmul.mubr.f32.gmra.mrb[0].mxu0 %v2378
      %v2641 = vpop.f32.mrb[0].mxu0
      %v2642 = vadd.f32 %v2293, %v2641
      %v2643 = vpop.f32.mrb[0].mxu0
      %2644 = vmatprep.mubr.f32.mxu0 0.0
      %2645 = vmatmul.mubr.f32.gmra.mrb[0].mxu0 %v2381
      %v2646 = vpop.f32.mrb[0].mxu0
      %v2647 = vadd.f32 %v2293, %v2646
      %v2648 = vpop.f32.mrb[0].mxu0
      %2649 = vmatprep.mubr.f32.mxu0 0.0
      %2650 = vmatmul.mubr.f32.gmra.mrb[0].mxu0 %v2384
      %v2651 = vpop.f32.mrb[0].mxu0
      %v2652 = vadd.f32 %v2293, %v2651
      %v2653 = vpop.f32.mrb[0].mxu0
      %2654 = vmatprep.mubr.f32.mxu0 0.0
      %2655 = vmatmul.mubr.f32.gmra.mrb[0].mxu0 %v2387
      %v2656 = vpop.f32.mrb[0].mxu0
      %v2657 = vadd.f32 %v2293, %v2656
      %v2658 = vpop.f32.mrb[0].mxu0
      %2659 = vmatprep.mubr.f32.mxu0 0.0
      %2660 = vmatmul.mubr.f32.gmra.mrb[0].mxu0 %v2390
      %v2661 = vpop.f32.mrb[0].mxu0
      %v2662 = vadd.f32 %v2293, %v2661
      %v2663 = vpop.f32.mrb[0].mxu0
      %2664 = vmatprep.mubr.f32.mxu0 0.0
      %2665 = vmatmul.mubr.f32.gmra.mrb[0].mxu0 %v2393
      %v2666 = vpop.f32.mrb[0].mxu0
      %v2667 = vadd.f32 %v2293, %v2666
      %v2668 = vpop.f32.mrb[0].mxu0
      %2669 = vmatprep.mubr.f32.mxu0 0.0
      %2670 = vmatmul.mubr.f32.gmra.mrb[0].mxu0 %v2396
      %v2671 = vpop.f32.mrb[0].mxu0
      %v2672 = vadd.f32 %v2293, %v2671
      %v2673 = vpop.f32.mrb[0].mxu0
      %2674 = vmatprep.mubr.f32.mxu0 0.0
      %2675 = vmatmul.mubr.f32.gmra.mrb[0].mxu0 %v2399
      %v2676 = vpop.f32.mrb[0].mxu0
      %v2677 = vadd.f32 %v2293, %v2676
      %v2678 = vpop.f32.mrb[0].mxu0
      %2679 = vmatprep.mubr.f32.mxu0 0.0
      %2680 = vmatmul.mubr.f32.gmra.mrb[0].mxu0 %v2402
      %v2681 = vpop.f32.mrb[0].mxu0
      %v2682 = vadd.f32 %v2293, %v2681
      %v2683 = vpop.f32.mrb[0].mxu0
      %2684 = vmatprep.mubr.f32.mxu0 0.0
      %2685 = vmatmul.mubr.f32.gmra.mrb[0].mxu0 %v2405
      %v2686 = vpop.f32.mrb[0].mxu0
      %v2687 = vadd.f32 %v2293, %v2686
      %v2688 = vpop.f32.mrb[0].mxu0
      %2689 = vmatprep.mubr.f32.mxu0 0.0
      %2690 = vmatmul.mubr.f32.gmra.mrb[0].mxu0 %v2408
      %v2691 = vpop.f32.mrb[0].mxu0
      %v2692 = vadd.f32 %v2293, %v2691
      %v2693 = vpop.f32.mrb[0].mxu0
      %2694 = vmatprep.mubr.f32.mxu0 0.0
      %2695 = vmatmul.mubr.f32.gmra.mrb[0].mxu0 %v2411
      %v2696 = vpop.f32.mrb[0].mxu0
      %v2697 = vadd.f32 %v2293, %v2696
      %v2698 = vpop.f32.mrb[0].mxu0
      %2699 = vmatprep.mubr.f32.mxu0 0.0
      %2700 = vmatmul.mubr.f32.gmra.mrb[0].mxu0 %v2414
      %v2701 = vpop.f32.mrb[0].mxu0
      %v2702 = vadd.f32 %v2293, %v2701
      %v2703 = vpop.f32.mrb[0].mxu0
      %2704 = vmatprep.mubr.f32.mxu0 0.0
      %2705 = vmatmul.mubr.f32.gmra.mrb[0].mxu0 %v2417
      %v2706 = vpop.f32.mrb[0].mxu0
      %v2707 = vadd.f32 %v2293, %v2706
      %v2708 = vpop.f32.mrb[0].mxu0
      %2709 = vmatprep.mubr.f32.mxu0 0.0
      %2710 = vmatmul.mubr.f32.gmra.mrb[0].mxu0 %v2420
      %v2711 = vpop.f32.mrb[0].mxu0
      %v2712 = vadd.f32 %v2293, %v2711
      %v2713 = vpop.f32.mrb[0].mxu0
      %2714 = vmatprep.mubr.f32.mxu0 0.0
      %2715 = vmatmul.mubr.f32.gmra.mrb[0].mxu0 %v2423
      %v2716 = vpop.f32.mrb[0].mxu0
      %v2717 = vadd.f32 %v2293, %v2716
      %v2718 = vpop.f32.mrb[0].mxu0
      %2719 = vmatprep.mubr.f32.mxu0 0.0
      %2720 = vmatmul.mubr.f32.gmra.mrb[0].mxu0 %v2426
      %v2721 = vpop.f32.mrb[0].mxu0
      %v2722 = vadd.f32 %v2293, %v2721
      %v2723 = vpop.f32.mrb[0].mxu0
      %2724 = vmatprep.mubr.f32.mxu0 0.0
      %2725 = vmatmul.mubr.f32.gmra.mrb[0].mxu0 %v2429
      %v2726 = vpop.f32.mrb[0].mxu0
      %v2727 = vadd.f32 %v2293, %v2726
      %v2728 = vpop.f32.mrb[0].mxu0
      %2729 = vmatprep.mubr.f32.mxu0 0.0
      %2730 = vmatmul.mubr.f32.gmra.mrb[0].mxu0 %v2432
      %v2731 = vpop.f32.mrb[0].mxu0
      %v2732 = vadd.f32 %v2293, %v2731
      %v2733 = vpop.f32.mrb[0].mxu0
      %2734 = vmatprep.mubr.f32.mxu0 0.0
      %2735 = vmatmul.mubr.f32.gmra.mrb[0].mxu0 %v2435
      %v2736 = vpop.f32.mrb[0].mxu0
      %v2737 = vadd.f32 %v2293, %v2736
      %v2738 = vpop.f32.mrb[0].mxu0
      %2739 = vmatprep.mubr.f32.mxu0 0.0
      %2740 = vmatmul.mubr.f32.gmra.mrb[0].mxu0 %v2438
      %v2741 = vpop.f32.mrb[0].mxu0
      %v2742 = vadd.f32 %v2293, %v2741
      %v2743 = vpop.f32.mrb[0].mxu0
      %2744 = vdwg.mxu0
      %vm2745 = vcmp.gt.f32.partialorder %v2507, 0.0
      %vm2746 = vcmp.gt.f32.partialorder %v2512, 0.0
      %vm2747 = vcmp.gt.f32.partialorder %v2517, 0.0
      %vm2748 = vcmp.gt.f32.partialorder %v2522, 0.0
      %vm2749 = vcmp.gt.f32.partialorder %v2527, 0.0
      %vm2750 = vcmp.gt.f32.partialorder %v2532, 0.0
      %vm2751 = vcmp.gt.f32.partialorder %v2537, 0.0
      %vm2752 = vcmp.gt.f32.partialorder %v2542, 0.0
      %vm2753 = vcmp.gt.f32.partialorder %v2547, 0.0
      %vm2754 = vcmp.gt.f32.partialorder %v2552, 0.0
      %vm2755 = vcmp.gt.f32.partialorder %v2557, 0.0
      %vm2756 = vcmp.gt.f32.partialorder %v2562, 0.0
      %vm2757 = vcmp.gt.f32.partialorder %v2567, 0.0
      %vm2758 = vcmp.gt.f32.partialorder %v2572, 0.0
      %vm2759 = vcmp.gt.f32.partialorder %v2577, 0.0
      %vm2760 = vcmp.gt.f32.partialorder %v2582, 0.0
      %vm2761 = vcmp.gt.f32.partialorder %v2587, 0.0
      %vm2762 = vcmp.gt.f32.partialorder %v2592, 0.0
      %vm2763 = vcmp.gt.f32.partialorder %v2597, 0.0
      %vm2764 = vcmp.gt.f32.partialorder %v2602, 0.0
      %vm2765 = vcmp.gt.f32.partialorder %v2607, 0.0
      %vm2766 = vcmp.gt.f32.partialorder %v2612, 0.0
      %vm2767 = vcmp.gt.f32.partialorder %v2617, 0.0
      %vm2768 = vcmp.gt.f32.partialorder %v2622, 0.0
      %vm2769 = vcmp.gt.f32.partialorder %v2627, 0.0
      %vm2770 = vcmp.gt.f32.partialorder %v2632, 0.0
      %vm2771 = vcmp.gt.f32.partialorder %v2637, 0.0
      %vm2772 = vcmp.gt.f32.partialorder %v2642, 0.0
      %vm2773 = vcmp.gt.f32.partialorder %v2647, 0.0
      %vm2774 = vcmp.gt.f32.partialorder %v2652, 0.0
      %vm2775 = vcmp.gt.f32.partialorder %v2657, 0.0
      %vm2776 = vcmp.gt.f32.partialorder %v2662, 0.0
      %vm2777 = vcmp.gt.f32.partialorder %v2667, 0.0
      %vm2778 = vcmp.gt.f32.partialorder %v2672, 0.0
      %vm2779 = vcmp.gt.f32.partialorder %v2677, 0.0
      %vm2780 = vcmp.gt.f32.partialorder %v2682, 0.0
      %vm2781 = vcmp.gt.f32.partialorder %v2687, 0.0
      %vm2782 = vcmp.gt.f32.partialorder %v2692, 0.0
      %vm2783 = vcmp.gt.f32.partialorder %v2697, 0.0
      %vm2784 = vcmp.gt.f32.partialorder %v2702, 0.0
      %vm2785 = vcmp.gt.f32.partialorder %v2707, 0.0
      %vm2786 = vcmp.gt.f32.partialorder %v2712, 0.0
      %vm2787 = vcmp.gt.f32.partialorder %v2717, 0.0
      %vm2788 = vcmp.gt.f32.partialorder %v2722, 0.0
      %vm2789 = vcmp.gt.f32.partialorder %v2727, 0.0
      %vm2790 = vcmp.gt.f32.partialorder %v2732, 0.0
      %vm2791 = vcmp.gt.f32.partialorder %v2737, 0.0
      %vm2792 = vcmp.gt.f32.partialorder %v2742, 0.0
      %v2793 = vmul.f32 %v2507, 0.01
      %v2794 = vmul.f32 %v2512, 0.01
      %v2795 = vmul.f32 %v2517, 0.01
      %v2796 = vmul.f32 %v2522, 0.01
      %v2797 = vmul.f32 %v2527, 0.01
      %v2798 = vmul.f32 %v2532, 0.01
      %v2799 = vmul.f32 %v2537, 0.01
      %v2800 = vmul.f32 %v2542, 0.01
      %v2801 = vmul.f32 %v2547, 0.01
      %v2802 = vmul.f32 %v2552, 0.01
      %v2803 = vmul.f32 %v2557, 0.01
      %v2804 = vmul.f32 %v2562, 0.01
      %v2805 = vmul.f32 %v2567, 0.01
      %v2806 = vmul.f32 %v2572, 0.01
      %v2807 = vmul.f32 %v2577, 0.01
      %v2808 = vmul.f32 %v2582, 0.01
      %v2809 = vmul.f32 %v2587, 0.01
      %v2810 = vmul.f32 %v2592, 0.01
      %v2811 = vmul.f32 %v2597, 0.01
      %v2812 = vmul.f32 %v2602, 0.01
      %v2813 = vmul.f32 %v2607, 0.01
      %v2814 = vmul.f32 %v2612, 0.01
      %v2815 = vmul.f32 %v2617, 0.01
      %v2816 = vmul.f32 %v2622, 0.01
      %v2817 = vmul.f32 %v2627, 0.01
      %v2818 = vmul.f32 %v2632, 0.01
      %v2819 = vmul.f32 %v2637, 0.01
      %v2820 = vmul.f32 %v2642, 0.01
      %v2821 = vmul.f32 %v2647, 0.01
      %v2822 = vmul.f32 %v2652, 0.01
      %v2823 = vmul.f32 %v2657, 0.01
      %v2824 = vmul.f32 %v2662, 0.01
      %v2825 = vmul.f32 %v2667, 0.01
      %v2826 = vmul.f32 %v2672, 0.01
      %v2827 = vmul.f32 %v2677, 0.01
      %v2828 = vmul.f32 %v2682, 0.01
      %v2829 = vmul.f32 %v2687, 0.01
      %v2830 = vmul.f32 %v2692, 0.01
      %v2831 = vmul.f32 %v2697, 0.01
      %v2832 = vmul.f32 %v2702, 0.01
      %v2833 = vmul.f32 %v2707, 0.01
      %v2834 = vmul.f32 %v2712, 0.01
      %v2835 = vmul.f32 %v2717, 0.01
      %v2836 = vmul.f32 %v2722, 0.01
      %v2837 = vmul.f32 %v2727, 0.01
      %v2838 = vmul.f32 %v2732, 0.01
      %v2839 = vmul.f32 %v2737, 0.01
      %v2840 = vmul.f32 %v2742, 0.01
      %v2841 = vsel %vm2745, %v2507, %v2793
      %v2842 = vsel %vm2746, %v2512, %v2794
      %v2843 = vsel %vm2747, %v2517, %v2795
      %v2844 = vsel %vm2748, %v2522, %v2796
      %v2845 = vsel %vm2749, %v2527, %v2797
      %v2846 = vsel %vm2750, %v2532, %v2798
      %v2847 = vsel %vm2751, %v2537, %v2799
      %v2848 = vsel %vm2752, %v2542, %v2800
      %v2849 = vsel %vm2753, %v2547, %v2801
      %v2850 = vsel %vm2754, %v2552, %v2802
      %v2851 = vsel %vm2755, %v2557, %v2803
      %v2852 = vsel %vm2756, %v2562, %v2804
      %v2853 = vsel %vm2757, %v2567, %v2805
      %v2854 = vsel %vm2758, %v2572, %v2806
      %v2855 = vsel %vm2759, %v2577, %v2807
      %v2856 = vsel %vm2760, %v2582, %v2808
      %v2857 = vsel %vm2761, %v2587, %v2809
      %v2858 = vsel %vm2762, %v2592, %v2810
      %v2859 = vsel %vm2763, %v2597, %v2811
      %v2860 = vsel %vm2764, %v2602, %v2812
      %v2861 = vsel %vm2765, %v2607, %v2813
      %v2862 = vsel %vm2766, %v2612, %v2814
      %v2863 = vsel %vm2767, %v2617, %v2815
      %v2864 = vsel %vm2768, %v2622, %v2816
      %v2865 = vsel %vm2769, %v2627, %v2817
      %v2866 = vsel %vm2770, %v2632, %v2818
      %v2867 = vsel %vm2771, %v2637, %v2819
      %v2868 = vsel %vm2772, %v2642, %v2820
      %v2869 = vsel %vm2773, %v2647, %v2821
      %v2870 = vsel %vm2774, %v2652, %v2822
      %v2871 = vsel %vm2775, %v2657, %v2823
      %v2872 = vsel %vm2776, %v2662, %v2824
      %v2873 = vsel %vm2777, %v2667, %v2825
      %v2874 = vsel %vm2778, %v2672, %v2826
      %v2875 = vsel %vm2779, %v2677, %v2827
      %v2876 = vsel %vm2780, %v2682, %v2828
      %v2877 = vsel %vm2781, %v2687, %v2829
      %v2878 = vsel %vm2782, %v2692, %v2830
      %v2879 = vsel %vm2783, %v2697, %v2831
      %v2880 = vsel %vm2784, %v2702, %v2832
      %v2881 = vsel %vm2785, %v2707, %v2833
      %v2882 = vsel %vm2786, %v2712, %v2834
      %v2883 = vsel %vm2787, %v2717, %v2835
      %v2884 = vsel %vm2788, %v2722, %v2836
      %v2885 = vsel %vm2789, %v2727, %v2837
      %v2886 = vsel %vm2790, %v2732, %v2838
      %v2887 = vsel %vm2791, %v2737, %v2839
      %v2888 = vsel %vm2792, %v2742, %v2840
      %v2889 = vld [vmem:[%s7] sm:$0xff]
      %v2890 = vld [vmem:[%s7 + $0x8] sm:$0xff]
      %v2891 = vld [vmem:[%s7 + $0x10] sm:$0xff]
      %v2892 = vld [vmem:[%s7 + $0x18] sm:$0xff]
      %v2893 = vld [vmem:[%s8] sm:$0x1]
      %v2895 = vlaneseq
      %v2896 = vshrl.u32 %v2895, 7
      %v2897 = vsub.s32 0, %v2896
      %v2898 = vrot.slane %v2893, %v2897
      %v2901 = vsel %vm2295, %v2841, 0
      %v2904 = vsel %vm2295, %v2842, 0
      %v2907 = vsel %vm2295, %v2843, 0
      %v2910 = vsel %vm2295, %v2844, 0
      %v2913 = vsel %vm2295, %v2845, 0
      %v2916 = vsel %vm2295, %v2846, 0
      %v2919 = vsel %vm2295, %v2847, 0
      %v2922 = vsel %vm2295, %v2848, 0
      %v2925 = vsel %vm2295, %v2849, 0
      %v2928 = vsel %vm2295, %v2850, 0
      %v2931 = vsel %vm2295, %v2851, 0
      %v2934 = vsel %vm2295, %v2852, 0
      %v2937 = vsel %vm2295, %v2853, 0
      %v2940 = vsel %vm2295, %v2854, 0
      %v2943 = vsel %vm2295, %v2855, 0
      %v2946 = vsel %vm2295, %v2856, 0
      %v2949 = vsel %vm2295, %v2857, 0
      %v2952 = vsel %vm2295, %v2858, 0
      %v2955 = vsel %vm2295, %v2859, 0
      %v2958 = vsel %vm2295, %v2860, 0
      %v2961 = vsel %vm2295, %v2861, 0
      %v2964 = vsel %vm2295, %v2862, 0
      %v2967 = vsel %vm2295, %v2863, 0
      %v2970 = vsel %vm2295, %v2864, 0
      %v2973 = vsel %vm2295, %v2865, 0
      %v2976 = vsel %vm2295, %v2866, 0
      %v2979 = vsel %vm2295, %v2867, 0
      %v2982 = vsel %vm2295, %v2868, 0
      %v2985 = vsel %vm2295, %v2869, 0
      %v2988 = vsel %vm2295, %v2870, 0
      %v2991 = vsel %vm2295, %v2871, 0
      %v2994 = vsel %vm2295, %v2872, 0
      %v2997 = vsel %vm2295, %v2873, 0
      %v3000 = vsel %vm2295, %v2874, 0
      %v3003 = vsel %vm2295, %v2875, 0
      %v3006 = vsel %vm2295, %v2876, 0
      %v3009 = vsel %vm2295, %v2877, 0
      %v3012 = vsel %vm2295, %v2878, 0
      %v3015 = vsel %vm2295, %v2879, 0
      %v3018 = vsel %vm2295, %v2880, 0
      %v3021 = vsel %vm2295, %v2881, 0
      %v3024 = vsel %vm2295, %v2882, 0
      %v3027 = vsel %vm2295, %v2883, 0
      %v3030 = vsel %vm2295, %v2884, 0
      %v3033 = vsel %vm2295, %v2885, 0
      %v3036 = vsel %vm2295, %v2886, 0
      %v3039 = vsel %vm2295, %v2887, 0
      %v3042 = vsel %vm2295, %v2888, 0
      %3044 = vmatprep.subr.mxu0 0.0
      %3045 = vmatpush1.msra.mxu0 %v2889
      %3046 = vmatprep.subr.mxu0 0.0
      %3047 = vmatpush1.msra.mxu0 %v2890
      %3048 = vmatprep.subr.mxu0 0.0
      %3049 = vmatpush1.msra.mxu0 %v2891
      %3050 = vmatprep.subr.mxu0 0.0
      %3051 = vmatpush1.msra.mxu0 %v2892
      %3052 = vmatprep.subr.mxu0 0.0
      %3053 = vmatpush1.msra.mxu0 0.0
      %3054 = vmatprep.subr.mxu0 0.0
      %3055 = vmatpush1.msra.mxu0 0.0
      %3056 = vmatprep.subr.mxu0 0.0
      %3057 = vmatpush1.msra.mxu0 0.0
      %3058 = vmatprep.subr.mxu0 0.0
      %3059 = vmatpush1.msra.mxu0 0.0
      %3060 = vmatprep.subr.mxu0 0.0
      %3061 = vmatpush1.msra.mxu0 0.0
      %3062 = vmatprep.subr.mxu0 0.0
      %3063 = vmatpush1.msra.mxu0 0.0
      %3064 = vmatprep.subr.mxu0 0.0
      %3065 = vmatpush1.msra.mxu0 0.0
      %3066 = vmatprep.subr.mxu0 0.0
      %3067 = vmatpush1.msra.mxu0 0.0
      %3068 = vmatprep.subr.mxu0 0.0
      %3069 = vmatpush1.msra.mxu0 0.0
      %3070 = vmatprep.subr.mxu0 0.0
      %3071 = vmatpush1.msra.mxu0 0.0
      %3072 = vmatprep.subr.mxu0 0.0
      %3073 = vmatpush1.msra.mxu0 0.0
      %3074 = vmatprep.subr.mxu0 0.0
      %3075 = vmatpush1.msra.mxu0 0.0
      %3076 = vmatprep.subr.mxu0 0.0
      %3077 = vmatpush1.msra.mxu0 0.0
      %3078 = vmatprep.subr.mxu0 0.0
      %3079 = vmatpush1.msra.mxu0 0.0
      %3080 = vmatprep.subr.mxu0 0.0
      %3081 = vmatpush1.msra.mxu0 0.0
      %3082 = vmatprep.subr.mxu0 0.0
      %3083 = vmatpush1.msra.mxu0 0.0
      %3084 = vmatprep.subr.mxu0 0.0
      %3085 = vmatpush1.msra.mxu0 0.0
      %3086 = vmatprep.subr.mxu0 0.0
      %3087 = vmatpush1.msra.mxu0 0.0
      %3088 = vmatprep.subr.mxu0 0.0
      %3089 = vmatpush1.msra.mxu0 0.0
      %3090 = vmatprep.subr.mxu0 0.0
      %3091 = vmatpush1.msra.mxu0 0.0
      %3092 = vmatprep.subr.mxu0 0.0
      %3093 = vmatpush1.msra.mxu0 0.0
      %3094 = vmatprep.subr.mxu0 0.0
      %3095 = vmatpush1.msra.mxu0 0.0
      %3096 = vmatprep.subr.mxu0 0.0
      %3097 = vmatpush1.msra.mxu0 0.0
      %3098 = vmatprep.subr.mxu0 0.0
      %3099 = vmatpush1.msra.mxu0 0.0
      %3100 = vmatprep.subr.mxu0 0.0
      %3101 = vmatpush1.msra.mxu0 0.0
      %3102 = vmatprep.subr.mxu0 0.0
      %3103 = vmatpush1.msra.mxu0 0.0
      %3104 = vmatprep.subr.mxu0 0.0
      %3105 = vmatpush1.msra.mxu0 0.0
      %3106 = vmatprep.subr.mxu0 0.0
      %3107 = vmatpush1.msra.mxu0 0.0
      %3108 = vmatprep.mubr.f32.mxu0 0.0
      %3109 = vmatmul.mubr.f32.gmra.mrb[0].mxu0 %v2901
      %v3110 = vpop.f32.mrb[0].mxu0
      %v3111 = vadd.f32 %v2898, %v3110
      %v3112 = vpop.f32.mrb[0].mxu0
      %3113 = vmatprep.mubr.f32.mxu0 0.0
      %3114 = vmatmul.mubr.f32.gmra.mrb[0].mxu0 %v2904
      %v3115 = vpop.f32.mrb[0].mxu0
      %v3116 = vadd.f32 %v2898, %v3115
      %v3117 = vpop.f32.mrb[0].mxu0
      %3118 = vmatprep.mubr.f32.mxu0 0.0
      %3119 = vmatmul.mubr.f32.gmra.mrb[0].mxu0 %v2907
      %v3120 = vpop.f32.mrb[0].mxu0
      %v3121 = vadd.f32 %v2898, %v3120
      %v3122 = vpop.f32.mrb[0].mxu0
      %3123 = vmatprep.mubr.f32.mxu0 0.0
      %3124 = vmatmul.mubr.f32.gmra.mrb[0].mxu0 %v2910
      %v3125 = vpop.f32.mrb[0].mxu0
      %v3126 = vadd.f32 %v2898, %v3125
      %v3127 = vpop.f32.mrb[0].mxu0
      %3128 = vmatprep.mubr.f32.mxu0 0.0
      %3129 = vmatmul.mubr.f32.gmra.mrb[0].mxu0 %v2913
      %v3130 = vpop.f32.mrb[0].mxu0
      %v3131 = vadd.f32 %v2898, %v3130
      %v3132 = vpop.f32.mrb[0].mxu0
      %3133 = vmatprep.mubr.f32.mxu0 0.0
      %3134 = vmatmul.mubr.f32.gmra.mrb[0].mxu0 %v2916
      %v3135 = vpop.f32.mrb[0].mxu0
      %v3136 = vadd.f32 %v2898, %v3135
      %v3137 = vpop.f32.mrb[0].mxu0
      %3138 = vmatprep.mubr.f32.mxu0 0.0
      %3139 = vmatmul.mubr.f32.gmra.mrb[0].mxu0 %v2919
      %v3140 = vpop.f32.mrb[0].mxu0
      %v3141 = vadd.f32 %v2898, %v3140
      %v3142 = vpop.f32.mrb[0].mxu0
      %3143 = vmatprep.mubr.f32.mxu0 0.0
      %3144 = vmatmul.mubr.f32.gmra.mrb[0].mxu0 %v2922
      %v3145 = vpop.f32.mrb[0].mxu0
      %v3146 = vadd.f32 %v2898, %v3145
      %v3147 = vpop.f32.mrb[0].mxu0
      %3148 = vmatprep.mubr.f32.mxu0 0.0
      %3149 = vmatmul.mubr.f32.gmra.mrb[0].mxu0 %v2925
      %v3150 = vpop.f32.mrb[0].mxu0
      %v3151 = vadd.f32 %v2898, %v3150
      %v3152 = vpop.f32.mrb[0].mxu0
      %3153 = vmatprep.mubr.f32.mxu0 0.0
      %3154 = vmatmul.mubr.f32.gmra.mrb[0].mxu0 %v2928
      %v3155 = vpop.f32.mrb[0].mxu0
      %v3156 = vadd.f32 %v2898, %v3155
      %v3157 = vpop.f32.mrb[0].mxu0
      %3158 = vmatprep.mubr.f32.mxu0 0.0
      %3159 = vmatmul.mubr.f32.gmra.mrb[0].mxu0 %v2931
      %v3160 = vpop.f32.mrb[0].mxu0
      %v3161 = vadd.f32 %v2898, %v3160
      %v3162 = vpop.f32.mrb[0].mxu0
      %3163 = vmatprep.mubr.f32.mxu0 0.0
      %3164 = vmatmul.mubr.f32.gmra.mrb[0].mxu0 %v2934
      %v3165 = vpop.f32.mrb[0].mxu0
      %v3166 = vadd.f32 %v2898, %v3165
      %v3167 = vpop.f32.mrb[0].mxu0
      %3168 = vmatprep.mubr.f32.mxu0 0.0
      %3169 = vmatmul.mubr.f32.gmra.mrb[0].mxu0 %v2937
      %v3170 = vpop.f32.mrb[0].mxu0
      %v3171 = vadd.f32 %v2898, %v3170
      %v3172 = vpop.f32.mrb[0].mxu0
      %3173 = vmatprep.mubr.f32.mxu0 0.0
      %3174 = vmatmul.mubr.f32.gmra.mrb[0].mxu0 %v2940
      %v3175 = vpop.f32.mrb[0].mxu0
      %v3176 = vadd.f32 %v2898, %v3175
      %v3177 = vpop.f32.mrb[0].mxu0
      %3178 = vmatprep.mubr.f32.mxu0 0.0
      %3179 = vmatmul.mubr.f32.gmra.mrb[0].mxu0 %v2943
      %v3180 = vpop.f32.mrb[0].mxu0
      %v3181 = vadd.f32 %v2898, %v3180
      %v3182 = vpop.f32.mrb[0].mxu0
      %3183 = vmatprep.mubr.f32.mxu0 0.0
      %3184 = vmatmul.mubr.f32.gmra.mrb[0].mxu0 %v2946
      %v3185 = vpop.f32.mrb[0].mxu0
      %v3186 = vadd.f32 %v2898, %v3185
      %v3187 = vpop.f32.mrb[0].mxu0
      %3188 = vmatprep.mubr.f32.mxu0 0.0
      %3189 = vmatmul.mubr.f32.gmra.mrb[0].mxu0 %v2949
      %v3190 = vpop.f32.mrb[0].mxu0
      %v3191 = vadd.f32 %v2898, %v3190
      %v3192 = vpop.f32.mrb[0].mxu0
      %3193 = vmatprep.mubr.f32.mxu0 0.0
      %3194 = vmatmul.mubr.f32.gmra.mrb[0].mxu0 %v2952
      %v3195 = vpop.f32.mrb[0].mxu0
      %v3196 = vadd.f32 %v2898, %v3195
      %v3197 = vpop.f32.mrb[0].mxu0
      %3198 = vmatprep.mubr.f32.mxu0 0.0
      %3199 = vmatmul.mubr.f32.gmra.mrb[0].mxu0 %v2955
      %v3200 = vpop.f32.mrb[0].mxu0
      %v3201 = vadd.f32 %v2898, %v3200
      %v3202 = vpop.f32.mrb[0].mxu0
      %3203 = vmatprep.mubr.f32.mxu0 0.0
      %3204 = vmatmul.mubr.f32.gmra.mrb[0].mxu0 %v2958
      %v3205 = vpop.f32.mrb[0].mxu0
      %v3206 = vadd.f32 %v2898, %v3205
      %v3207 = vpop.f32.mrb[0].mxu0
      %3208 = vmatprep.mubr.f32.mxu0 0.0
      %3209 = vmatmul.mubr.f32.gmra.mrb[0].mxu0 %v2961
      %v3210 = vpop.f32.mrb[0].mxu0
      %v3211 = vadd.f32 %v2898, %v3210
      %v3212 = vpop.f32.mrb[0].mxu0
      %3213 = vmatprep.mubr.f32.mxu0 0.0
      %3214 = vmatmul.mubr.f32.gmra.mrb[0].mxu0 %v2964
      %v3215 = vpop.f32.mrb[0].mxu0
      %v3216 = vadd.f32 %v2898, %v3215
      %v3217 = vpop.f32.mrb[0].mxu0
      %3218 = vmatprep.mubr.f32.mxu0 0.0
      %3219 = vmatmul.mubr.f32.gmra.mrb[0].mxu0 %v2967
      %v3220 = vpop.f32.mrb[0].mxu0
      %v3221 = vadd.f32 %v2898, %v3220
      %v3222 = vpop.f32.mrb[0].mxu0
      %3223 = vmatprep.mubr.f32.mxu0 0.0
      %3224 = vmatmul.mubr.f32.gmra.mrb[0].mxu0 %v2970
      %v3225 = vpop.f32.mrb[0].mxu0
      %v3226 = vadd.f32 %v2898, %v3225
      %v3227 = vpop.f32.mrb[0].mxu0
      %3228 = vmatprep.mubr.f32.mxu0 0.0
      %3229 = vmatmul.mubr.f32.gmra.mrb[0].mxu0 %v2973
      %v3230 = vpop.f32.mrb[0].mxu0
      %v3231 = vadd.f32 %v2898, %v3230
      %v3232 = vpop.f32.mrb[0].mxu0
      %3233 = vmatprep.mubr.f32.mxu0 0.0
      %3234 = vmatmul.mubr.f32.gmra.mrb[0].mxu0 %v2976
      %v3235 = vpop.f32.mrb[0].mxu0
      %v3236 = vadd.f32 %v2898, %v3235
      %v3237 = vpop.f32.mrb[0].mxu0
      %3238 = vmatprep.mubr.f32.mxu0 0.0
      %3239 = vmatmul.mubr.f32.gmra.mrb[0].mxu0 %v2979
      %v3240 = vpop.f32.mrb[0].mxu0
      %v3241 = vadd.f32 %v2898, %v3240
      %v3242 = vpop.f32.mrb[0].mxu0
      %3243 = vmatprep.mubr.f32.mxu0 0.0
      %3244 = vmatmul.mubr.f32.gmra.mrb[0].mxu0 %v2982
      %v3245 = vpop.f32.mrb[0].mxu0
      %v3246 = vadd.f32 %v2898, %v3245
      %v3247 = vpop.f32.mrb[0].mxu0
      %3248 = vmatprep.mubr.f32.mxu0 0.0
      %3249 = vmatmul.mubr.f32.gmra.mrb[0].mxu0 %v2985
      %v3250 = vpop.f32.mrb[0].mxu0
      %v3251 = vadd.f32 %v2898, %v3250
      %v3252 = vpop.f32.mrb[0].mxu0
      %3253 = vmatprep.mubr.f32.mxu0 0.0
      %3254 = vmatmul.mubr.f32.gmra.mrb[0].mxu0 %v2988
      %v3255 = vpop.f32.mrb[0].mxu0
      %v3256 = vadd.f32 %v2898, %v3255
      %v3257 = vpop.f32.mrb[0].mxu0
      %3258 = vmatprep.mubr.f32.mxu0 0.0
      %3259 = vmatmul.mubr.f32.gmra.mrb[0].mxu0 %v2991
      %v3260 = vpop.f32.mrb[0].mxu0
      %v3261 = vadd.f32 %v2898, %v3260
      %v3262 = vpop.f32.mrb[0].mxu0
      %3263 = vmatprep.mubr.f32.mxu0 0.0
      %3264 = vmatmul.mubr.f32.gmra.mrb[0].mxu0 %v2994
      %v3265 = vpop.f32.mrb[0].mxu0
      %v3266 = vadd.f32 %v2898, %v3265
      %v3267 = vpop.f32.mrb[0].mxu0
      %3268 = vmatprep.mubr.f32.mxu0 0.0
      %3269 = vmatmul.mubr.f32.gmra.mrb[0].mxu0 %v2997
      %v3270 = vpop.f32.mrb[0].mxu0
      %v3271 = vadd.f32 %v2898, %v3270
      %v3272 = vpop.f32.mrb[0].mxu0
      %3273 = vmatprep.mubr.f32.mxu0 0.0
      %3274 = vmatmul.mubr.f32.gmra.mrb[0].mxu0 %v3000
      %v3275 = vpop.f32.mrb[0].mxu0
      %v3276 = vadd.f32 %v2898, %v3275
      %v3277 = vpop.f32.mrb[0].mxu0
      %3278 = vmatprep.mubr.f32.mxu0 0.0
      %3279 = vmatmul.mubr.f32.gmra.mrb[0].mxu0 %v3003
      %v3280 = vpop.f32.mrb[0].mxu0
      %v3281 = vadd.f32 %v2898, %v3280
      %v3282 = vpop.f32.mrb[0].mxu0
      %3283 = vmatprep.mubr.f32.mxu0 0.0
      %3284 = vmatmul.mubr.f32.gmra.mrb[0].mxu0 %v3006
      %v3285 = vpop.f32.mrb[0].mxu0
      %v3286 = vadd.f32 %v2898, %v3285
      %v3287 = vpop.f32.mrb[0].mxu0
      %3288 = vmatprep.mubr.f32.mxu0 0.0
      %3289 = vmatmul.mubr.f32.gmra.mrb[0].mxu0 %v3009
      %v3290 = vpop.f32.mrb[0].mxu0
      %v3291 = vadd.f32 %v2898, %v3290
      %v3292 = vpop.f32.mrb[0].mxu0
      %3293 = vmatprep.mubr.f32.mxu0 0.0
      %3294 = vmatmul.mubr.f32.gmra.mrb[0].mxu0 %v3012
      %v3295 = vpop.f32.mrb[0].mxu0
      %v3296 = vadd.f32 %v2898, %v3295
      %v3297 = vpop.f32.mrb[0].mxu0
      %3298 = vmatprep.mubr.f32.mxu0 0.0
      %3299 = vmatmul.mubr.f32.gmra.mrb[0].mxu0 %v3015
      %v3300 = vpop.f32.mrb[0].mxu0
      %v3301 = vadd.f32 %v2898, %v3300
      %v3302 = vpop.f32.mrb[0].mxu0
      %3303 = vmatprep.mubr.f32.mxu0 0.0
      %3304 = vmatmul.mubr.f32.gmra.mrb[0].mxu0 %v3018
      %v3305 = vpop.f32.mrb[0].mxu0
      %v3306 = vadd.f32 %v2898, %v3305
      %v3307 = vpop.f32.mrb[0].mxu0
      %3308 = vmatprep.mubr.f32.mxu0 0.0
      %3309 = vmatmul.mubr.f32.gmra.mrb[0].mxu0 %v3021
      %v3310 = vpop.f32.mrb[0].mxu0
      %v3311 = vadd.f32 %v2898, %v3310
      %v3312 = vpop.f32.mrb[0].mxu0
      %3313 = vmatprep.mubr.f32.mxu0 0.0
      %3314 = vmatmul.mubr.f32.gmra.mrb[0].mxu0 %v3024
      %v3315 = vpop.f32.mrb[0].mxu0
      %v3316 = vadd.f32 %v2898, %v3315
      %v3317 = vpop.f32.mrb[0].mxu0
      %3318 = vmatprep.mubr.f32.mxu0 0.0
      %3319 = vmatmul.mubr.f32.gmra.mrb[0].mxu0 %v3027
      %v3320 = vpop.f32.mrb[0].mxu0
      %v3321 = vadd.f32 %v2898, %v3320
      %v3322 = vpop.f32.mrb[0].mxu0
      %3323 = vmatprep.mubr.f32.mxu0 0.0
      %3324 = vmatmul.mubr.f32.gmra.mrb[0].mxu0 %v3030
      %v3325 = vpop.f32.mrb[0].mxu0
      %v3326 = vadd.f32 %v2898, %v3325
      %v3327 = vpop.f32.mrb[0].mxu0
      %3328 = vmatprep.mubr.f32.mxu0 0.0
      %3329 = vmatmul.mubr.f32.gmra.mrb[0].mxu0 %v3033
      %v3330 = vpop.f32.mrb[0].mxu0
      %v3331 = vadd.f32 %v2898, %v3330
      %v3332 = vpop.f32.mrb[0].mxu0
      %3333 = vmatprep.mubr.f32.mxu0 0.0
      %3334 = vmatmul.mubr.f32.gmra.mrb[0].mxu0 %v3036
      %v3335 = vpop.f32.mrb[0].mxu0
      %v3336 = vadd.f32 %v2898, %v3335
      %v3337 = vpop.f32.mrb[0].mxu0
      %3338 = vmatprep.mubr.f32.mxu0 0.0
      %3339 = vmatmul.mubr.f32.gmra.mrb[0].mxu0 %v3039
      %v3340 = vpop.f32.mrb[0].mxu0
      %v3341 = vadd.f32 %v2898, %v3340
      %v3342 = vpop.f32.mrb[0].mxu0
      %3343 = vmatprep.mubr.f32.mxu0 0.0
      %3344 = vmatmul.mubr.f32.gmra.mrb[0].mxu0 %v3042
      %v3345 = vpop.f32.mrb[0].mxu0
      %v3346 = vadd.f32 %v2898, %v3345
      %v3347 = vpop.f32.mrb[0].mxu0
      %3348 = vdwg.mxu0
      %vm3349 = vcmp.gt.f32.partialorder %v3111, 0.0
      %vm3350 = vcmp.gt.f32.partialorder %v3116, 0.0
      %vm3351 = vcmp.gt.f32.partialorder %v3121, 0.0
      %vm3352 = vcmp.gt.f32.partialorder %v3126, 0.0
      %vm3353 = vcmp.gt.f32.partialorder %v3131, 0.0
      %vm3354 = vcmp.gt.f32.partialorder %v3136, 0.0
      %vm3355 = vcmp.gt.f32.partialorder %v3141, 0.0
      %vm3356 = vcmp.gt.f32.partialorder %v3146, 0.0
      %vm3357 = vcmp.gt.f32.partialorder %v3151, 0.0
      %vm3358 = vcmp.gt.f32.partialorder %v3156, 0.0
      %vm3359 = vcmp.gt.f32.partialorder %v3161, 0.0
      %vm3360 = vcmp.gt.f32.partialorder %v3166, 0.0
      %vm3361 = vcmp.gt.f32.partialorder %v3171, 0.0
      %vm3362 = vcmp.gt.f32.partialorder %v3176, 0.0
      %vm3363 = vcmp.gt.f32.partialorder %v3181, 0.0
      %vm3364 = vcmp.gt.f32.partialorder %v3186, 0.0
      %vm3365 = vcmp.gt.f32.partialorder %v3191, 0.0
      %vm3366 = vcmp.gt.f32.partialorder %v3196, 0.0
      %vm3367 = vcmp.gt.f32.partialorder %v3201, 0.0
      %vm3368 = vcmp.gt.f32.partialorder %v3206, 0.0
      %vm3369 = vcmp.gt.f32.partialorder %v3211, 0.0
      %vm3370 = vcmp.gt.f32.partialorder %v3216, 0.0
      %vm3371 = vcmp.gt.f32.partialorder %v3221, 0.0
      %vm3372 = vcmp.gt.f32.partialorder %v3226, 0.0
      %vm3373 = vcmp.gt.f32.partialorder %v3231, 0.0
      %vm3374 = vcmp.gt.f32.partialorder %v3236, 0.0
      %vm3375 = vcmp.gt.f32.partialorder %v3241, 0.0
      %vm3376 = vcmp.gt.f32.partialorder %v3246, 0.0
      %vm3377 = vcmp.gt.f32.partialorder %v3251, 0.0
      %vm3378 = vcmp.gt.f32.partialorder %v3256, 0.0
      %vm3379 = vcmp.gt.f32.partialorder %v3261, 0.0
      %vm3380 = vcmp.gt.f32.partialorder %v3266, 0.0
      %vm3381 = vcmp.gt.f32.partialorder %v3271, 0.0
      %vm3382 = vcmp.gt.f32.partialorder %v3276, 0.0
      %vm3383 = vcmp.gt.f32.partialorder %v3281, 0.0
      %vm3384 = vcmp.gt.f32.partialorder %v3286, 0.0
      %vm3385 = vcmp.gt.f32.partialorder %v3291, 0.0
      %vm3386 = vcmp.gt.f32.partialorder %v3296, 0.0
      %vm3387 = vcmp.gt.f32.partialorder %v3301, 0.0
      %vm3388 = vcmp.gt.f32.partialorder %v3306, 0.0
      %vm3389 = vcmp.gt.f32.partialorder %v3311, 0.0
      %vm3390 = vcmp.gt.f32.partialorder %v3316, 0.0
      %vm3391 = vcmp.gt.f32.partialorder %v3321, 0.0
      %vm3392 = vcmp.gt.f32.partialorder %v3326, 0.0
      %vm3393 = vcmp.gt.f32.partialorder %v3331, 0.0
      %vm3394 = vcmp.gt.f32.partialorder %v3336, 0.0
      %vm3395 = vcmp.gt.f32.partialorder %v3341, 0.0
      %vm3396 = vcmp.gt.f32.partialorder %v3346, 0.0
      %v3397 = vmul.f32 %v3111, 0.01
      %v3398 = vmul.f32 %v3116, 0.01
      %v3399 = vmul.f32 %v3121, 0.01
      %v3400 = vmul.f32 %v3126, 0.01
      %v3401 = vmul.f32 %v3131, 0.01
      %v3402 = vmul.f32 %v3136, 0.01
      %v3403 = vmul.f32 %v3141, 0.01
      %v3404 = vmul.f32 %v3146, 0.01
      %v3405 = vmul.f32 %v3151, 0.01
      %v3406 = vmul.f32 %v3156, 0.01
      %v3407 = vmul.f32 %v3161, 0.01
      %v3408 = vmul.f32 %v3166, 0.01
      %v3409 = vmul.f32 %v3171, 0.01
      %v3410 = vmul.f32 %v3176, 0.01
      %v3411 = vmul.f32 %v3181, 0.01
      %v3412 = vmul.f32 %v3186, 0.01
      %v3413 = vmul.f32 %v3191, 0.01
      %v3414 = vmul.f32 %v3196, 0.01
      %v3415 = vmul.f32 %v3201, 0.01
      %v3416 = vmul.f32 %v3206, 0.01
      %v3417 = vmul.f32 %v3211, 0.01
      %v3418 = vmul.f32 %v3216, 0.01
      %v3419 = vmul.f32 %v3221, 0.01
      %v3420 = vmul.f32 %v3226, 0.01
      %v3421 = vmul.f32 %v3231, 0.01
      %v3422 = vmul.f32 %v3236, 0.01
      %v3423 = vmul.f32 %v3241, 0.01
      %v3424 = vmul.f32 %v3246, 0.01
      %v3425 = vmul.f32 %v3251, 0.01
      %v3426 = vmul.f32 %v3256, 0.01
      %v3427 = vmul.f32 %v3261, 0.01
      %v3428 = vmul.f32 %v3266, 0.01
      %v3429 = vmul.f32 %v3271, 0.01
      %v3430 = vmul.f32 %v3276, 0.01
      %v3431 = vmul.f32 %v3281, 0.01
      %v3432 = vmul.f32 %v3286, 0.01
      %v3433 = vmul.f32 %v3291, 0.01
      %v3434 = vmul.f32 %v3296, 0.01
      %v3435 = vmul.f32 %v3301, 0.01
      %v3436 = vmul.f32 %v3306, 0.01
      %v3437 = vmul.f32 %v3311, 0.01
      %v3438 = vmul.f32 %v3316, 0.01
      %v3439 = vmul.f32 %v3321, 0.01
      %v3440 = vmul.f32 %v3326, 0.01
      %v3441 = vmul.f32 %v3331, 0.01
      %v3442 = vmul.f32 %v3336, 0.01
      %v3443 = vmul.f32 %v3341, 0.01
      %v3444 = vmul.f32 %v3346, 0.01
      %v3445 = vsel %vm3349, %v3111, %v3397
      %v3446 = vsel %vm3350, %v3116, %v3398
      %v3447 = vsel %vm3351, %v3121, %v3399
      %v3448 = vsel %vm3352, %v3126, %v3400
      %v3449 = vsel %vm3353, %v3131, %v3401
      %v3450 = vsel %vm3354, %v3136, %v3402
      %v3451 = vsel %vm3355, %v3141, %v3403
      %v3452 = vsel %vm3356, %v3146, %v3404
      %v3453 = vsel %vm3357, %v3151, %v3405
      %v3454 = vsel %vm3358, %v3156, %v3406
      %v3455 = vsel %vm3359, %v3161, %v3407
      %v3456 = vsel %vm3360, %v3166, %v3408
      %v3457 = vsel %vm3361, %v3171, %v3409
      %v3458 = vsel %vm3362, %v3176, %v3410
      %v3459 = vsel %vm3363, %v3181, %v3411
      %v3460 = vsel %vm3364, %v3186, %v3412
      %v3461 = vsel %vm3365, %v3191, %v3413
      %v3462 = vsel %vm3366, %v3196, %v3414
      %v3463 = vsel %vm3367, %v3201, %v3415
      %v3464 = vsel %vm3368, %v3206, %v3416
      %v3465 = vsel %vm3369, %v3211, %v3417
      %v3466 = vsel %vm3370, %v3216, %v3418
      %v3467 = vsel %vm3371, %v3221, %v3419
      %v3468 = vsel %vm3372, %v3226, %v3420
      %v3469 = vsel %vm3373, %v3231, %v3421
      %v3470 = vsel %vm3374, %v3236, %v3422
      %v3471 = vsel %vm3375, %v3241, %v3423
      %v3472 = vsel %vm3376, %v3246, %v3424
      %v3473 = vsel %vm3377, %v3251, %v3425
      %v3474 = vsel %vm3378, %v3256, %v3426
      %v3475 = vsel %vm3379, %v3261, %v3427
      %v3476 = vsel %vm3380, %v3266, %v3428
      %v3477 = vsel %vm3381, %v3271, %v3429
      %v3478 = vsel %vm3382, %v3276, %v3430
      %v3479 = vsel %vm3383, %v3281, %v3431
      %v3480 = vsel %vm3384, %v3286, %v3432
      %v3481 = vsel %vm3385, %v3291, %v3433
      %v3482 = vsel %vm3386, %v3296, %v3434
      %v3483 = vsel %vm3387, %v3301, %v3435
      %v3484 = vsel %vm3388, %v3306, %v3436
      %v3485 = vsel %vm3389, %v3311, %v3437
      %v3486 = vsel %vm3390, %v3316, %v3438
      %v3487 = vsel %vm3391, %v3321, %v3439
      %v3488 = vsel %vm3392, %v3326, %v3440
      %v3489 = vsel %vm3393, %v3331, %v3441
      %v3490 = vsel %vm3394, %v3336, %v3442
      %v3491 = vsel %vm3395, %v3341, %v3443
      %v3492 = vsel %vm3396, %v3346, %v3444
      %v3493 = vld [vmem:[%s9] sm:$0xff]
      %v3494 = vld [vmem:[%s9 + $0x8] sm:$0xff]
      %v3495 = vld [vmem:[%s9 + $0x10] sm:$0xff]
      %v3496 = vld [vmem:[%s9 + $0x18] sm:$0xff]
      %v3497 = vld [vmem:[%s9 + $0x20] sm:$0xff]
      %v3498 = vld [vmem:[%s9 + $0x28] sm:$0xff]
      %v3499 = vld [vmem:[%s9 + $0x30] sm:$0xff]
      %v3500 = vld [vmem:[%s9 + $0x38] sm:$0xff]
      %v3501 = vld [vmem:[%s9 + $0x40] sm:$0xff]
      %v3502 = vld [vmem:[%s9 + $0x48] sm:$0xff]
      %v3503 = vld [vmem:[%s9 + $0x50] sm:$0xff]
      %v3504 = vld [vmem:[%s9 + $0x58] sm:$0xff]
      %v3505 = vld [vmem:[%s9 + $0x60] sm:$0xff]
      %v3506 = vld [vmem:[%s9 + $0x68] sm:$0xff]
      %v3507 = vld [vmem:[%s9 + $0x70] sm:$0xff]
      %v3508 = vld [vmem:[%s9 + $0x78] sm:$0xff]
      %v3509 = vld [vmem:[%s9 + $0x80] sm:$0xff]
      %v3510 = vld [vmem:[%s9 + $0x88] sm:$0xff]
      %v3511 = vld [vmem:[%s9 + $0x90] sm:$0xff]
      %v3512 = vld [vmem:[%s9 + $0x98] sm:$0xff]
      %v3513 = vld [vmem:[%s9 + $0xa0] sm:$0xff]
      %v3514 = vld [vmem:[%s9 + $0xa8] sm:$0xff]
      %v3515 = vld [vmem:[%s9 + $0xb0] sm:$0xff]
      %v3516 = vld [vmem:[%s9 + $0xb8] sm:$0xff]
      %v3517 = vld [vmem:[%s9 + $0xc0] sm:$0xff]
      %v3518 = vld [vmem:[%s9 + $0xc8] sm:$0xff]
      %v3519 = vld [vmem:[%s9 + $0xd0] sm:$0xff]
      %v3520 = vld [vmem:[%s9 + $0xd8] sm:$0xff]
      %v3521 = vld [vmem:[%s9 + $0xe0] sm:$0xff]
      %v3522 = vld [vmem:[%s9 + $0xe8] sm:$0xff]
      %v3523 = vld [vmem:[%s9 + $0xf0] sm:$0xff]
      %v3524 = vld [vmem:[%s9 + $0xf8] sm:$0xff]
      %v3525 = vld [vmem:[%s9 + $0x100] sm:$0xff]
      %v3526 = vld [vmem:[%s9 + $0x108] sm:$0xff]
      %v3527 = vld [vmem:[%s9 + $0x110] sm:$0xff]
      %v3528 = vld [vmem:[%s9 + $0x118] sm:$0xff]
      %v3529 = vld [vmem:[%s9 + $0x120] sm:$0xff]
      %v3530 = vld [vmem:[%s9 + $0x128] sm:$0xff]
      %v3531 = vld [vmem:[%s9 + $0x130] sm:$0xff]
      %v3532 = vld [vmem:[%s9 + $0x138] sm:$0xff]
      %v3533 = vld [vmem:[%s9 + $0x140] sm:$0xff]
      %v3534 = vld [vmem:[%s9 + $0x148] sm:$0xff]
      %v3535 = vld [vmem:[%s9 + $0x150] sm:$0xff]
      %v3536 = vld [vmem:[%s9 + $0x158] sm:$0xff]
      %v3537 = vld [vmem:[%s9 + $0x160] sm:$0xff]
      %v3538 = vld [vmem:[%s9 + $0x168] sm:$0xff]
      %v3539 = vld [vmem:[%s9 + $0x170] sm:$0xff]
      %v3540 = vld [vmem:[%s9 + $0x178] sm:$0xff]
      %v3541 = vadd.f32 %v3445, %v3493
      %v3542 = vadd.f32 %v3446, %v3494
      %v3543 = vadd.f32 %v3447, %v3495
      %v3544 = vadd.f32 %v3448, %v3496
      %v3545 = vadd.f32 %v3449, %v3497
      %v3546 = vadd.f32 %v3450, %v3498
      %v3547 = vadd.f32 %v3451, %v3499
      %v3548 = vadd.f32 %v3452, %v3500
      %v3549 = vadd.f32 %v3453, %v3501
      %v3550 = vadd.f32 %v3454, %v3502
      %v3551 = vadd.f32 %v3455, %v3503
      %v3552 = vadd.f32 %v3456, %v3504
      %v3553 = vadd.f32 %v3457, %v3505
      %v3554 = vadd.f32 %v3458, %v3506
      %v3555 = vadd.f32 %v3459, %v3507
      %v3556 = vadd.f32 %v3460, %v3508
      %v3557 = vadd.f32 %v3461, %v3509
      %v3558 = vadd.f32 %v3462, %v3510
      %v3559 = vadd.f32 %v3463, %v3511
      %v3560 = vadd.f32 %v3464, %v3512
      %v3561 = vadd.f32 %v3465, %v3513
      %v3562 = vadd.f32 %v3466, %v3514
      %v3563 = vadd.f32 %v3467, %v3515
      %v3564 = vadd.f32 %v3468, %v3516
      %v3565 = vadd.f32 %v3469, %v3517
      %v3566 = vadd.f32 %v3470, %v3518
      %v3567 = vadd.f32 %v3471, %v3519
      %v3568 = vadd.f32 %v3472, %v3520
      %v3569 = vadd.f32 %v3473, %v3521
      %v3570 = vadd.f32 %v3474, %v3522
      %v3571 = vadd.f32 %v3475, %v3523
      %v3572 = vadd.f32 %v3476, %v3524
      %v3573 = vadd.f32 %v3477, %v3525
      %v3574 = vadd.f32 %v3478, %v3526
      %v3575 = vadd.f32 %v3479, %v3527
      %v3576 = vadd.f32 %v3480, %v3528
      %v3577 = vadd.f32 %v3481, %v3529
      %v3578 = vadd.f32 %v3482, %v3530
      %v3579 = vadd.f32 %v3483, %v3531
      %v3580 = vadd.f32 %v3484, %v3532
      %v3581 = vadd.f32 %v3485, %v3533
      %v3582 = vadd.f32 %v3486, %v3534
      %v3583 = vadd.f32 %v3487, %v3535
      %v3584 = vadd.f32 %v3488, %v3536
      %v3585 = vadd.f32 %v3489, %v3537
      %v3586 = vadd.f32 %v3490, %v3538
      %v3587 = vadd.f32 %v3491, %v3539
      %v3588 = vadd.f32 %v3492, %v3540
      %3589 = vmax.xlane.f32.xlu0 %v3541
      %v3590 = vpop.xlane.xlu0 %3589
      %3591 = vmax.xlane.f32.xlu0 %v3542
      %v3592 = vpop.xlane.xlu0 %3591
      %3593 = vmax.xlane.f32.xlu0 %v3543
      %v3594 = vpop.xlane.xlu0 %3593
      %3595 = vmax.xlane.f32.xlu0 %v3544
      %v3596 = vpop.xlane.xlu0 %3595
      %3597 = vmax.xlane.f32.xlu0 %v3545
      %v3598 = vpop.xlane.xlu0 %3597
      %3599 = vmax.xlane.f32.xlu0 %v3546
      %v3600 = vpop.xlane.xlu0 %3599
      %3601 = vmax.xlane.f32.xlu0 %v3547
      %v3602 = vpop.xlane.xlu0 %3601
      %3603 = vmax.xlane.f32.xlu0 %v3548
      %v3604 = vpop.xlane.xlu0 %3603
      %3605 = vmax.xlane.f32.xlu0 %v3549
      %v3606 = vpop.xlane.xlu0 %3605
      %3607 = vmax.xlane.f32.xlu0 %v3550
      %v3608 = vpop.xlane.xlu0 %3607
      %3609 = vmax.xlane.f32.xlu0 %v3551
      %v3610 = vpop.xlane.xlu0 %3609
      %3611 = vmax.xlane.f32.xlu0 %v3552
      %v3612 = vpop.xlane.xlu0 %3611
      %3613 = vmax.xlane.f32.xlu0 %v3553
      %v3614 = vpop.xlane.xlu0 %3613
      %3615 = vmax.xlane.f32.xlu0 %v3554
      %v3616 = vpop.xlane.xlu0 %3615
      %3617 = vmax.xlane.f32.xlu0 %v3555
      %v3618 = vpop.xlane.xlu0 %3617
      %3619 = vmax.xlane.f32.xlu0 %v3556
      %v3620 = vpop.xlane.xlu0 %3619
      %3621 = vmax.xlane.f32.xlu0 %v3557
      %v3622 = vpop.xlane.xlu0 %3621
      %3623 = vmax.xlane.f32.xlu0 %v3558
      %v3624 = vpop.xlane.xlu0 %3623
      %3625 = vmax.xlane.f32.xlu0 %v3559
      %v3626 = vpop.xlane.xlu0 %3625
      %3627 = vmax.xlane.f32.xlu0 %v3560
      %v3628 = vpop.xlane.xlu0 %3627
      %3629 = vmax.xlane.f32.xlu0 %v3561
      %v3630 = vpop.xlane.xlu0 %3629
      %3631 = vmax.xlane.f32.xlu0 %v3562
      %v3632 = vpop.xlane.xlu0 %3631
      %3633 = vmax.xlane.f32.xlu0 %v3563
      %v3634 = vpop.xlane.xlu0 %3633
      %3635 = vmax.xlane.f32.xlu0 %v3564
      %v3636 = vpop.xlane.xlu0 %3635
      %3637 = vmax.xlane.f32.xlu0 %v3565
      %v3638 = vpop.xlane.xlu0 %3637
      %3639 = vmax.xlane.f32.xlu0 %v3566
      %v3640 = vpop.xlane.xlu0 %3639
      %3641 = vmax.xlane.f32.xlu0 %v3567
      %v3642 = vpop.xlane.xlu0 %3641
      %3643 = vmax.xlane.f32.xlu0 %v3568
      %v3644 = vpop.xlane.xlu0 %3643
      %3645 = vmax.xlane.f32.xlu0 %v3569
      %v3646 = vpop.xlane.xlu0 %3645
      %3647 = vmax.xlane.f32.xlu0 %v3570
      %v3648 = vpop.xlane.xlu0 %3647
      %3649 = vmax.xlane.f32.xlu0 %v3571
      %v3650 = vpop.xlane.xlu0 %3649
      %3651 = vmax.xlane.f32.xlu0 %v3572
      %v3652 = vpop.xlane.xlu0 %3651
      %3653 = vmax.xlane.f32.xlu0 %v3573
      %v3654 = vpop.xlane.xlu0 %3653
      %3655 = vmax.xlane.f32.xlu0 %v3574
      %v3656 = vpop.xlane.xlu0 %3655
      %3657 = vmax.xlane.f32.xlu0 %v3575
      %v3658 = vpop.xlane.xlu0 %3657
      %3659 = vmax.xlane.f32.xlu0 %v3576
      %v3660 = vpop.xlane.xlu0 %3659
      %3661 = vmax.xlane.f32.xlu0 %v3577
      %v3662 = vpop.xlane.xlu0 %3661
      %3663 = vmax.xlane.f32.xlu0 %v3578
      %v3664 = vpop.xlane.xlu0 %3663
      %3665 = vmax.xlane.f32.xlu0 %v3579
      %v3666 = vpop.xlane.xlu0 %3665
      %3667 = vmax.xlane.f32.xlu0 %v3580
      %v3668 = vpop.xlane.xlu0 %3667
      %3669 = vmax.xlane.f32.xlu0 %v3581
      %v3670 = vpop.xlane.xlu0 %3669
      %3671 = vmax.xlane.f32.xlu0 %v3582
      %v3672 = vpop.xlane.xlu0 %3671
      %3673 = vmax.xlane.f32.xlu0 %v3583
      %v3674 = vpop.xlane.xlu0 %3673
      %3675 = vmax.xlane.f32.xlu0 %v3584
      %v3676 = vpop.xlane.xlu0 %3675
      %3677 = vmax.xlane.f32.xlu0 %v3585
      %v3678 = vpop.xlane.xlu0 %3677
      %3679 = vmax.xlane.f32.xlu0 %v3586
      %v3680 = vpop.xlane.xlu0 %3679
      %3681 = vmax.xlane.f32.xlu0 %v3587
      %v3682 = vpop.xlane.xlu0 %3681
      %3683 = vmax.xlane.f32.xlu0 %v3588
      %v3684 = vpop.xlane.xlu0 %3683
      %v3685 = vsub.f32 %v3541, %v3590
      %v3686 = vsub.f32 %v3542, %v3592
      %v3687 = vsub.f32 %v3543, %v3594
      %v3688 = vsub.f32 %v3544, %v3596
      %v3689 = vsub.f32 %v3545, %v3598
      %v3690 = vsub.f32 %v3546, %v3600
      %v3691 = vsub.f32 %v3547, %v3602
      %v3692 = vsub.f32 %v3548, %v3604
      %v3693 = vsub.f32 %v3549, %v3606
      %v3694 = vsub.f32 %v3550, %v3608
      %v3695 = vsub.f32 %v3551, %v3610
      %v3696 = vsub.f32 %v3552, %v3612
      %v3697 = vsub.f32 %v3553, %v3614
      %v3698 = vsub.f32 %v3554, %v3616
      %v3699 = vsub.f32 %v3555, %v3618
      %v3700 = vsub.f32 %v3556, %v3620
      %v3701 = vsub.f32 %v3557, %v3622
      %v3702 = vsub.f32 %v3558, %v3624
      %v3703 = vsub.f32 %v3559, %v3626
      %v3704 = vsub.f32 %v3560, %v3628
      %v3705 = vsub.f32 %v3561, %v3630
      %v3706 = vsub.f32 %v3562, %v3632
      %v3707 = vsub.f32 %v3563, %v3634
      %v3708 = vsub.f32 %v3564, %v3636
      %v3709 = vsub.f32 %v3565, %v3638
      %v3710 = vsub.f32 %v3566, %v3640
      %v3711 = vsub.f32 %v3567, %v3642
      %v3712 = vsub.f32 %v3568, %v3644
      %v3713 = vsub.f32 %v3569, %v3646
      %v3714 = vsub.f32 %v3570, %v3648
      %v3715 = vsub.f32 %v3571, %v3650
      %v3716 = vsub.f32 %v3572, %v3652
      %v3717 = vsub.f32 %v3573, %v3654
      %v3718 = vsub.f32 %v3574, %v3656
      %v3719 = vsub.f32 %v3575, %v3658
      %v3720 = vsub.f32 %v3576, %v3660
      %v3721 = vsub.f32 %v3577, %v3662
      %v3722 = vsub.f32 %v3578, %v3664
      %v3723 = vsub.f32 %v3579, %v3666
      %v3724 = vsub.f32 %v3580, %v3668
      %v3725 = vsub.f32 %v3581, %v3670
      %v3726 = vsub.f32 %v3582, %v3672
      %v3727 = vsub.f32 %v3583, %v3674
      %v3728 = vsub.f32 %v3584, %v3676
      %v3729 = vsub.f32 %v3585, %v3678
      %v3730 = vsub.f32 %v3586, %v3680
      %v3731 = vsub.f32 %v3587, %v3682
      %v3732 = vsub.f32 %v3588, %v3684
      %v3733 = vmul.f32 %v3685, 1.442695
      %v3734 = vpow.pop %v3733
      %v3735 = vmul.f32 %v3686, 1.442695
      %v3736 = vpow.pop %v3735
      %v3737 = vmul.f32 %v3687, 1.442695
      %v3738 = vpow.pop %v3737
      %v3739 = vmul.f32 %v3688, 1.442695
      %v3740 = vpow.pop %v3739
      %v3741 = vmul.f32 %v3689, 1.442695
      %v3742 = vpow.pop %v3741
      %v3743 = vmul.f32 %v3690, 1.442695
      %v3744 = vpow.pop %v3743
      %v3745 = vmul.f32 %v3691, 1.442695
      %v3746 = vpow.pop %v3745
      %v3747 = vmul.f32 %v3692, 1.442695
      %v3748 = vpow.pop %v3747
      %v3749 = vmul.f32 %v3693, 1.442695
      %v3750 = vpow.pop %v3749
      %v3751 = vmul.f32 %v3694, 1.442695
      %v3752 = vpow.pop %v3751
      %v3753 = vmul.f32 %v3695, 1.442695
      %v3754 = vpow.pop %v3753
      %v3755 = vmul.f32 %v3696, 1.442695
      %v3756 = vpow.pop %v3755
      %v3757 = vmul.f32 %v3697, 1.442695
      %v3758 = vpow.pop %v3757
      %v3759 = vmul.f32 %v3698, 1.442695
      %v3760 = vpow.pop %v3759
      %v3761 = vmul.f32 %v3699, 1.442695
      %v3762 = vpow.pop %v3761
      %v3763 = vmul.f32 %v3700, 1.442695
      %v3764 = vpow.pop %v3763
      %v3765 = vmul.f32 %v3701, 1.442695
      %v3766 = vpow.pop %v3765
      %v3767 = vmul.f32 %v3702, 1.442695
      %v3768 = vpow.pop %v3767
      %v3769 = vmul.f32 %v3703, 1.442695
      %v3770 = vpow.pop %v3769
      %v3771 = vmul.f32 %v3704, 1.442695
      %v3772 = vpow.pop %v3771
      %v3773 = vmul.f32 %v3705, 1.442695
      %v3774 = vpow.pop %v3773
      %v3775 = vmul.f32 %v3706, 1.442695
      %v3776 = vpow.pop %v3775
      %v3777 = vmul.f32 %v3707, 1.442695
      %v3778 = vpow.pop %v3777
      %v3779 = vmul.f32 %v3708, 1.442695
      %v3780 = vpow.pop %v3779
      %v3781 = vmul.f32 %v3709, 1.442695
      %v3782 = vpow.pop %v3781
      %v3783 = vmul.f32 %v3710, 1.442695
      %v3784 = vpow.pop %v3783
      %v3785 = vmul.f32 %v3711, 1.442695
      %v3786 = vpow.pop %v3785
      %v3787 = vmul.f32 %v3712, 1.442695
      %v3788 = vpow.pop %v3787
      %v3789 = vmul.f32 %v3713, 1.442695
      %v3790 = vpow.pop %v3789
      %v3791 = vmul.f32 %v3714, 1.442695
      %v3792 = vpow.pop %v3791
      %v3793 = vmul.f32 %v3715, 1.442695
      %v3794 = vpow.pop %v3793
      %v3795 = vmul.f32 %v3716, 1.442695
      %v3796 = vpow.pop %v3795
      %v3797 = vmul.f32 %v3717, 1.442695
      %v3798 = vpow.pop %v3797
      %v3799 = vmul.f32 %v3718, 1.442695
      %v3800 = vpow.pop %v3799
      %v3801 = vmul.f32 %v3719, 1.442695
      %v3802 = vpow.pop %v3801
      %v3803 = vmul.f32 %v3720, 1.442695
      %v3804 = vpow.pop %v3803
      %v3805 = vmul.f32 %v3721, 1.442695
      %v3806 = vpow.pop %v3805
      %v3807 = vmul.f32 %v3722, 1.442695
      %v3808 = vpow.pop %v3807
      %v3809 = vmul.f32 %v3723, 1.442695
      %v3810 = vpow.pop %v3809
      %v3811 = vmul.f32 %v3724, 1.442695
      %v3812 = vpow.pop %v3811
      %v3813 = vmul.f32 %v3725, 1.442695
      %v3814 = vpow.pop %v3813
      %v3815 = vmul.f32 %v3726, 1.442695
      %v3816 = vpow.pop %v3815
      %v3817 = vmul.f32 %v3727, 1.442695
      %v3818 = vpow.pop %v3817
      %v3819 = vmul.f32 %v3728, 1.442695
      %v3820 = vpow.pop %v3819
      %v3821 = vmul.f32 %v3729, 1.442695
      %v3822 = vpow.pop %v3821
      %v3823 = vmul.f32 %v3730, 1.442695
      %v3824 = vpow.pop %v3823
      %v3825 = vmul.f32 %v3731, 1.442695
      %v3826 = vpow.pop %v3825
      %v3827 = vmul.f32 %v3732, 1.442695
      %v3828 = vpow.pop %v3827
      %3829 = vadd.xlane.f32.xlu0 %v3734
      %v3830 = vpop.xlane.xlu0 %3829
      %3831 = vadd.xlane.f32.xlu0 %v3736
      %v3832 = vpop.xlane.xlu0 %3831
      %3833 = vadd.xlane.f32.xlu0 %v3738
      %v3834 = vpop.xlane.xlu0 %3833
      %3835 = vadd.xlane.f32.xlu0 %v3740
      %v3836 = vpop.xlane.xlu0 %3835
      %3837 = vadd.xlane.f32.xlu0 %v3742
      %v3838 = vpop.xlane.xlu0 %3837
      %3839 = vadd.xlane.f32.xlu0 %v3744
      %v3840 = vpop.xlane.xlu0 %3839
      %3841 = vadd.xlane.f32.xlu0 %v3746
      %v3842 = vpop.xlane.xlu0 %3841
      %3843 = vadd.xlane.f32.xlu0 %v3748
      %v3844 = vpop.xlane.xlu0 %3843
      %3845 = vadd.xlane.f32.xlu0 %v3750
      %v3846 = vpop.xlane.xlu0 %3845
      %3847 = vadd.xlane.f32.xlu0 %v3752
      %v3848 = vpop.xlane.xlu0 %3847
      %3849 = vadd.xlane.f32.xlu0 %v3754
      %v3850 = vpop.xlane.xlu0 %3849
      %3851 = vadd.xlane.f32.xlu0 %v3756
      %v3852 = vpop.xlane.xlu0 %3851
      %3853 = vadd.xlane.f32.xlu0 %v3758
      %v3854 = vpop.xlane.xlu0 %3853
      %3855 = vadd.xlane.f32.xlu0 %v3760
      %v3856 = vpop.xlane.xlu0 %3855
      %3857 = vadd.xlane.f32.xlu0 %v3762
      %v3858 = vpop.xlane.xlu0 %3857
      %3859 = vadd.xlane.f32.xlu0 %v3764
      %v3860 = vpop.xlane.xlu0 %3859
      %3861 = vadd.xlane.f32.xlu0 %v3766
      %v3862 = vpop.xlane.xlu0 %3861
      %3863 = vadd.xlane.f32.xlu0 %v3768
      %v3864 = vpop.xlane.xlu0 %3863
      %3865 = vadd.xlane.f32.xlu0 %v3770
      %v3866 = vpop.xlane.xlu0 %3865
      %3867 = vadd.xlane.f32.xlu0 %v3772
      %v3868 = vpop.xlane.xlu0 %3867
      %3869 = vadd.xlane.f32.xlu0 %v3774
      %v3870 = vpop.xlane.xlu0 %3869
      %3871 = vadd.xlane.f32.xlu0 %v3776
      %v3872 = vpop.xlane.xlu0 %3871
      %3873 = vadd.xlane.f32.xlu0 %v3778
      %v3874 = vpop.xlane.xlu0 %3873
      %3875 = vadd.xlane.f32.xlu0 %v3780
      %v3876 = vpop.xlane.xlu0 %3875
      %3877 = vadd.xlane.f32.xlu0 %v3782
      %v3878 = vpop.xlane.xlu0 %3877
      %3879 = vadd.xlane.f32.xlu0 %v3784
      %v3880 = vpop.xlane.xlu0 %3879
      %3881 = vadd.xlane.f32.xlu0 %v3786
      %v3882 = vpop.xlane.xlu0 %3881
      %3883 = vadd.xlane.f32.xlu0 %v3788
      %v3884 = vpop.xlane.xlu0 %3883
      %3885 = vadd.xlane.f32.xlu0 %v3790
      %v3886 = vpop.xlane.xlu0 %3885
      %3887 = vadd.xlane.f32.xlu0 %v3792
      %v3888 = vpop.xlane.xlu0 %3887
      %3889 = vadd.xlane.f32.xlu0 %v3794
      %v3890 = vpop.xlane.xlu0 %3889
      %3891 = vadd.xlane.f32.xlu0 %v3796
      %v3892 = vpop.xlane.xlu0 %3891
      %3893 = vadd.xlane.f32.xlu0 %v3798
      %v3894 = vpop.xlane.xlu0 %3893
      %3895 = vadd.xlane.f32.xlu0 %v3800
      %v3896 = vpop.xlane.xlu0 %3895
      %3897 = vadd.xlane.f32.xlu0 %v3802
      %v3898 = vpop.xlane.xlu0 %3897
      %3899 = vadd.xlane.f32.xlu0 %v3804
      %v3900 = vpop.xlane.xlu0 %3899
      %3901 = vadd.xlane.f32.xlu0 %v3806
      %v3902 = vpop.xlane.xlu0 %3901
      %3903 = vadd.xlane.f32.xlu0 %v3808
      %v3904 = vpop.xlane.xlu0 %3903
      %3905 = vadd.xlane.f32.xlu0 %v3810
      %v3906 = vpop.xlane.xlu0 %3905
      %3907 = vadd.xlane.f32.xlu0 %v3812
      %v3908 = vpop.xlane.xlu0 %3907
      %3909 = vadd.xlane.f32.xlu0 %v3814
      %v3910 = vpop.xlane.xlu0 %3909
      %3911 = vadd.xlane.f32.xlu0 %v3816
      %v3912 = vpop.xlane.xlu0 %3911
      %3913 = vadd.xlane.f32.xlu0 %v3818
      %v3914 = vpop.xlane.xlu0 %3913
      %3915 = vadd.xlane.f32.xlu0 %v3820
      %v3916 = vpop.xlane.xlu0 %3915
      %3917 = vadd.xlane.f32.xlu0 %v3822
      %v3918 = vpop.xlane.xlu0 %3917
      %3919 = vadd.xlane.f32.xlu0 %v3824
      %v3920 = vpop.xlane.xlu0 %3919
      %3921 = vadd.xlane.f32.xlu0 %v3826
      %v3922 = vpop.xlane.xlu0 %3921
      %3923 = vadd.xlane.f32.xlu0 %v3828
      %v3924 = vpop.xlane.xlu0 %3923
      %v3925 = vrcp.pop %v3830
      %v3926 = vrcp.pop %v3832
      %v3927 = vrcp.pop %v3834
      %v3928 = vrcp.pop %v3836
      %v3929 = vrcp.pop %v3838
      %v3930 = vrcp.pop %v3840
      %v3931 = vrcp.pop %v3842
      %v3932 = vrcp.pop %v3844
      %v3933 = vrcp.pop %v3846
      %v3934 = vrcp.pop %v3848
      %v3935 = vrcp.pop %v3850
      %v3936 = vrcp.pop %v3852
      %v3937 = vrcp.pop %v3854
      %v3938 = vrcp.pop %v3856
      %v3939 = vrcp.pop %v3858
      %v3940 = vrcp.pop %v3860
      %v3941 = vrcp.pop %v3862
      %v3942 = vrcp.pop %v3864
      %v3943 = vrcp.pop %v3866
      %v3944 = vrcp.pop %v3868
      %v3945 = vrcp.pop %v3870
      %v3946 = vrcp.pop %v3872
      %v3947 = vrcp.pop %v3874
      %v3948 = vrcp.pop %v3876
      %v3949 = vrcp.pop %v3878
      %v3950 = vrcp.pop %v3880
      %v3951 = vrcp.pop %v3882
      %v3952 = vrcp.pop %v3884
      %v3953 = vrcp.pop %v3886
      %v3954 = vrcp.pop %v3888
      %v3955 = vrcp.pop %v3890
      %v3956 = vrcp.pop %v3892
      %v3957 = vrcp.pop %v3894
      %v3958 = vrcp.pop %v3896
      %v3959 = vrcp.pop %v3898
      %v3960 = vrcp.pop %v3900
      %v3961 = vrcp.pop %v3902
      %v3962 = vrcp.pop %v3904
      %v3963 = vrcp.pop %v3906
      %v3964 = vrcp.pop %v3908
      %v3965 = vrcp.pop %v3910
      %v3966 = vrcp.pop %v3912
      %v3967 = vrcp.pop %v3914
      %v3968 = vrcp.pop %v3916
      %v3969 = vrcp.pop %v3918
      %v3970 = vrcp.pop %v3920
      %v3971 = vrcp.pop %v3922
      %v3972 = vrcp.pop %v3924
      %v3973 = vmul.f32 %v3734, %v3925
      %v3974 = vmul.f32 %v3736, %v3926
      %v3975 = vmul.f32 %v3738, %v3927
      %v3976 = vmul.f32 %v3740, %v3928
      %v3977 = vmul.f32 %v3742, %v3929
      %v3978 = vmul.f32 %v3744, %v3930
      %v3979 = vmul.f32 %v3746, %v3931
      %v3980 = vmul.f32 %v3748, %v3932
      %v3981 = vmul.f32 %v3750, %v3933
      %v3982 = vmul.f32 %v3752, %v3934
      %v3983 = vmul.f32 %v3754, %v3935
      %v3984 = vmul.f32 %v3756, %v3936
      %v3985 = vmul.f32 %v3758, %v3937
      %v3986 = vmul.f32 %v3760, %v3938
      %v3987 = vmul.f32 %v3762, %v3939
      %v3988 = vmul.f32 %v3764, %v3940
      %v3989 = vmul.f32 %v3766, %v3941
      %v3990 = vmul.f32 %v3768, %v3942
      %v3991 = vmul.f32 %v3770, %v3943
      %v3992 = vmul.f32 %v3772, %v3944
      %v3993 = vmul.f32 %v3774, %v3945
      %v3994 = vmul.f32 %v3776, %v3946
      %v3995 = vmul.f32 %v3778, %v3947
      %v3996 = vmul.f32 %v3780, %v3948
      %v3997 = vmul.f32 %v3782, %v3949
      %v3998 = vmul.f32 %v3784, %v3950
      %v3999 = vmul.f32 %v3786, %v3951
      %v4000 = vmul.f32 %v3788, %v3952
      %v4001 = vmul.f32 %v3790, %v3953
      %v4002 = vmul.f32 %v3792, %v3954
      %v4003 = vmul.f32 %v3794, %v3955
      %v4004 = vmul.f32 %v3796, %v3956
      %v4005 = vmul.f32 %v3798, %v3957
      %v4006 = vmul.f32 %v3800, %v3958
      %v4007 = vmul.f32 %v3802, %v3959
      %v4008 = vmul.f32 %v3804, %v3960
      %v4009 = vmul.f32 %v3806, %v3961
      %v4010 = vmul.f32 %v3808, %v3962
      %v4011 = vmul.f32 %v3810, %v3963
      %v4012 = vmul.f32 %v3812, %v3964
      %v4013 = vmul.f32 %v3814, %v3965
      %v4014 = vmul.f32 %v3816, %v3966
      %v4015 = vmul.f32 %v3818, %v3967
      %v4016 = vmul.f32 %v3820, %v3968
      %v4017 = vmul.f32 %v3822, %v3969
      %v4018 = vmul.f32 %v3824, %v3970
      %v4019 = vmul.f32 %v3826, %v3971
      %v4020 = vmul.f32 %v3828, %v3972
      %v4021 = vlaneseq
      %v4022 = vand.u32 %v4021, 127
      %vm4023 = vcmp.ge.f32.partialorder %v3685, 0.0
      %vm4024 = vcmp.ge.f32.partialorder %v3686, 0.0
      %vm4025 = vcmp.ge.f32.partialorder %v3687, 0.0
      %vm4026 = vcmp.ge.f32.partialorder %v3688, 0.0
      %vm4027 = vcmp.ge.f32.partialorder %v3689, 0.0
      %vm4028 = vcmp.ge.f32.partialorder %v3690, 0.0
      %vm4029 = vcmp.ge.f32.partialorder %v3691, 0.0
      %vm4030 = vcmp.ge.f32.partialorder %v3692, 0.0
      %vm4031 = vcmp.ge.f32.partialorder %v3693, 0.0
      %vm4032 = vcmp.ge.f32.partialorder %v3694, 0.0
      %vm4033 = vcmp.ge.f32.partialorder %v3695, 0.0
      %vm4034 = vcmp.ge.f32.partialorder %v3696, 0.0
      %vm4035 = vcmp.ge.f32.partialorder %v3697, 0.0
      %vm4036 = vcmp.ge.f32.partialorder %v3698, 0.0
      %vm4037 = vcmp.ge.f32.partialorder %v3699, 0.0
      %vm4038 = vcmp.ge.f32.partialorder %v3700, 0.0
      %vm4039 = vcmp.ge.f32.partialorder %v3701, 0.0
      %vm4040 = vcmp.ge.f32.partialorder %v3702, 0.0
      %vm4041 = vcmp.ge.f32.partialorder %v3703, 0.0
      %vm4042 = vcmp.ge.f32.partialorder %v3704, 0.0
      %vm4043 = vcmp.ge.f32.partialorder %v3705, 0.0
      %vm4044 = vcmp.ge.f32.partialorder %v3706, 0.0
      %vm4045 = vcmp.ge.f32.partialorder %v3707, 0.0
      %vm4046 = vcmp.ge.f32.partialorder %v3708, 0.0
      %vm4047 = vcmp.ge.f32.partialorder %v3709, 0.0
      %vm4048 = vcmp.ge.f32.partialorder %v3710, 0.0
      %vm4049 = vcmp.ge.f32.partialorder %v3711, 0.0
      %vm4050 = vcmp.ge.f32.partialorder %v3712, 0.0
      %vm4051 = vcmp.ge.f32.partialorder %v3713, 0.0
      %vm4052 = vcmp.ge.f32.partialorder %v3714, 0.0
      %vm4053 = vcmp.ge.f32.partialorder %v3715, 0.0
      %vm4054 = vcmp.ge.f32.partialorder %v3716, 0.0
      %vm4055 = vcmp.ge.f32.partialorder %v3717, 0.0
      %vm4056 = vcmp.ge.f32.partialorder %v3718, 0.0
      %vm4057 = vcmp.ge.f32.partialorder %v3719, 0.0
      %vm4058 = vcmp.ge.f32.partialorder %v3720, 0.0
      %vm4059 = vcmp.ge.f32.partialorder %v3721, 0.0
      %vm4060 = vcmp.ge.f32.partialorder %v3722, 0.0
      %vm4061 = vcmp.ge.f32.partialorder %v3723, 0.0
      %vm4062 = vcmp.ge.f32.partialorder %v3724, 0.0
      %vm4063 = vcmp.ge.f32.partialorder %v3725, 0.0
      %vm4064 = vcmp.ge.f32.partialorder %v3726, 0.0
      %vm4065 = vcmp.ge.f32.partialorder %v3727, 0.0
      %vm4066 = vcmp.ge.f32.partialorder %v3728, 0.0
      %vm4067 = vcmp.ge.f32.partialorder %v3729, 0.0
      %vm4068 = vcmp.ge.f32.partialorder %v3730, 0.0
      %vm4069 = vcmp.ge.f32.partialorder %v3731, 0.0
      %vm4070 = vcmp.ge.f32.partialorder %v3732, 0.0
      %v4071 = vsel %vm4023, %v4022, 128
      %v4072 = vsel %vm4024, %v4022, 128
      %v4073 = vsel %vm4025, %v4022, 128
      %v4074 = vsel %vm4026, %v4022, 128
      %v4075 = vsel %vm4027, %v4022, 128
      %v4076 = vsel %vm4028, %v4022, 128
      %v4077 = vsel %vm4029, %v4022, 128
      %v4078 = vsel %vm4030, %v4022, 128
      %v4079 = vsel %vm4031, %v4022, 128
      %v4080 = vsel %vm4032, %v4022, 128
      %v4081 = vsel %vm4033, %v4022, 128
      %v4082 = vsel %vm4034, %v4022, 128
      %v4083 = vsel %vm4035, %v4022, 128
      %v4084 = vsel %vm4036, %v4022, 128
      %v4085 = vsel %vm4037, %v4022, 128
      %v4086 = vsel %vm4038, %v4022, 128
      %v4087 = vsel %vm4039, %v4022, 128
      %v4088 = vsel %vm4040, %v4022, 128
      %v4089 = vsel %vm4041, %v4022, 128
      %v4090 = vsel %vm4042, %v4022, 128
      %v4091 = vsel %vm4043, %v4022, 128
      %v4092 = vsel %vm4044, %v4022, 128
      %v4093 = vsel %vm4045, %v4022, 128
      %v4094 = vsel %vm4046, %v4022, 128
      %v4095 = vsel %vm4047, %v4022, 128
      %v4096 = vsel %vm4048, %v4022, 128
      %v4097 = vsel %vm4049, %v4022, 128
      %v4098 = vsel %vm4050, %v4022, 128
      %v4099 = vsel %vm4051, %v4022, 128
      %v4100 = vsel %vm4052, %v4022, 128
      %v4101 = vsel %vm4053, %v4022, 128
      %v4102 = vsel %vm4054, %v4022, 128
      %v4103 = vsel %vm4055, %v4022, 128
      %v4104 = vsel %vm4056, %v4022, 128
      %v4105 = vsel %vm4057, %v4022, 128
      %v4106 = vsel %vm4058, %v4022, 128
      %v4107 = vsel %vm4059, %v4022, 128
      %v4108 = vsel %vm4060, %v4022, 128
      %v4109 = vsel %vm4061, %v4022, 128
      %v4110 = vsel %vm4062, %v4022, 128
      %v4111 = vsel %vm4063, %v4022, 128
      %v4112 = vsel %vm4064, %v4022, 128
      %v4113 = vsel %vm4065, %v4022, 128
      %v4114 = vsel %vm4066, %v4022, 128
      %v4115 = vsel %vm4067, %v4022, 128
      %v4116 = vsel %vm4068, %v4022, 128
      %v4117 = vsel %vm4069, %v4022, 128
      %v4118 = vsel %vm4070, %v4022, 128
      %v4119 = vand.u32 %v4071, 65535
      %v4120 = vshra.s32 %v4071, 16
      %v4121 = vcvt.s32.f32 %v4119
      %v4122 = vcvt.s32.f32 %v4120
      %4123 = vmin.xlane.f32.xlu0 %v4122
      %v4124 = vpop.xlane.xlu0 %4123
      %vm4125 = vcmp.eq.f32.partialorder %v4122, %v4124
      %v4126 = vsel %vm4125, %v4121, inf
      %4127 = vmin.xlane.f32.xlu0 %v4126
      %v4128 = vpop.xlane.xlu0 %4127
      %v4129 = vcvt.f32.s32 %v4128
      %v4130 = vcvt.f32.s32 %v4124
      %v4131 = vshll.u32 %v4130, 16
      %v4132 = vadd.s32 %v4131, %v4129
      %v4133 = vand.u32 %v4072, 65535
      %v4134 = vshra.s32 %v4072, 16
      %v4135 = vcvt.s32.f32 %v4133
      %v4136 = vcvt.s32.f32 %v4134
      %4137 = vmin.xlane.f32.xlu0 %v4136
      %v4138 = vpop.xlane.xlu0 %4137
      %vm4139 = vcmp.eq.f32.partialorder %v4136, %v4138
      %v4140 = vsel %vm4139, %v4135, inf
      %4141 = vmin.xlane.f32.xlu0 %v4140
      %v4142 = vpop.xlane.xlu0 %4141
      %v4143 = vcvt.f32.s32 %v4142
      %v4144 = vcvt.f32.s32 %v4138
      %v4145 = vshll.u32 %v4144, 16
      %v4146 = vadd.s32 %v4145, %v4143
      %v4147 = vand.u32 %v4073, 65535
      %v4148 = vshra.s32 %v4073, 16
      %v4149 = vcvt.s32.f32 %v4147
      %v4150 = vcvt.s32.f32 %v4148
      %4151 = vmin.xlane.f32.xlu0 %v4150
      %v4152 = vpop.xlane.xlu0 %4151
      %vm4153 = vcmp.eq.f32.partialorder %v4150, %v4152
      %v4154 = vsel %vm4153, %v4149, inf
      %4155 = vmin.xlane.f32.xlu0 %v4154
      %v4156 = vpop.xlane.xlu0 %4155
      %v4157 = vcvt.f32.s32 %v4156
      %v4158 = vcvt.f32.s32 %v4152
      %v4159 = vshll.u32 %v4158, 16
      %v4160 = vadd.s32 %v4159, %v4157
      %v4161 = vand.u32 %v4074, 65535
      %v4162 = vshra.s32 %v4074, 16
      %v4163 = vcvt.s32.f32 %v4161
      %v4164 = vcvt.s32.f32 %v4162
      %4165 = vmin.xlane.f32.xlu0 %v4164
      %v4166 = vpop.xlane.xlu0 %4165
      %vm4167 = vcmp.eq.f32.partialorder %v4164, %v4166
      %v4168 = vsel %vm4167, %v4163, inf
      %4169 = vmin.xlane.f32.xlu0 %v4168
      %v4170 = vpop.xlane.xlu0 %4169
      %v4171 = vcvt.f32.s32 %v4170
      %v4172 = vcvt.f32.s32 %v4166
      %v4173 = vshll.u32 %v4172, 16
      %v4174 = vadd.s32 %v4173, %v4171
      %v4175 = vand.u32 %v4075, 65535
      %v4176 = vshra.s32 %v4075, 16
      %v4177 = vcvt.s32.f32 %v4175
      %v4178 = vcvt.s32.f32 %v4176
      %4179 = vmin.xlane.f32.xlu0 %v4178
      %v4180 = vpop.xlane.xlu0 %4179
      %vm4181 = vcmp.eq.f32.partialorder %v4178, %v4180
      %v4182 = vsel %vm4181, %v4177, inf
      %4183 = vmin.xlane.f32.xlu0 %v4182
      %v4184 = vpop.xlane.xlu0 %4183
      %v4185 = vcvt.f32.s32 %v4184
      %v4186 = vcvt.f32.s32 %v4180
      %v4187 = vshll.u32 %v4186, 16
      %v4188 = vadd.s32 %v4187, %v4185
      %v4189 = vand.u32 %v4076, 65535
      %v4190 = vshra.s32 %v4076, 16
      %v4191 = vcvt.s32.f32 %v4189
      %v4192 = vcvt.s32.f32 %v4190
      %4193 = vmin.xlane.f32.xlu0 %v4192
      %v4194 = vpop.xlane.xlu0 %4193
      %vm4195 = vcmp.eq.f32.partialorder %v4192, %v4194
      %v4196 = vsel %vm4195, %v4191, inf
      %4197 = vmin.xlane.f32.xlu0 %v4196
      %v4198 = vpop.xlane.xlu0 %4197
      %v4199 = vcvt.f32.s32 %v4198
      %v4200 = vcvt.f32.s32 %v4194
      %v4201 = vshll.u32 %v4200, 16
      %v4202 = vadd.s32 %v4201, %v4199
      %v4203 = vand.u32 %v4077, 65535
      %v4204 = vshra.s32 %v4077, 16
      %v4205 = vcvt.s32.f32 %v4203
      %v4206 = vcvt.s32.f32 %v4204
      %4207 = vmin.xlane.f32.xlu0 %v4206
      %v4208 = vpop.xlane.xlu0 %4207
      %vm4209 = vcmp.eq.f32.partialorder %v4206, %v4208
      %v4210 = vsel %vm4209, %v4205, inf
      %4211 = vmin.xlane.f32.xlu0 %v4210
      %v4212 = vpop.xlane.xlu0 %4211
      %v4213 = vcvt.f32.s32 %v4212
      %v4214 = vcvt.f32.s32 %v4208
      %v4215 = vshll.u32 %v4214, 16
      %v4216 = vadd.s32 %v4215, %v4213
      %v4217 = vand.u32 %v4078, 65535
      %v4218 = vshra.s32 %v4078, 16
      %v4219 = vcvt.s32.f32 %v4217
      %v4220 = vcvt.s32.f32 %v4218
      %4221 = vmin.xlane.f32.xlu0 %v4220
      %v4222 = vpop.xlane.xlu0 %4221
      %vm4223 = vcmp.eq.f32.partialorder %v4220, %v4222
      %v4224 = vsel %vm4223, %v4219, inf
      %4225 = vmin.xlane.f32.xlu0 %v4224
      %v4226 = vpop.xlane.xlu0 %4225
      %v4227 = vcvt.f32.s32 %v4226
      %v4228 = vcvt.f32.s32 %v4222
      %v4229 = vshll.u32 %v4228, 16
      %v4230 = vadd.s32 %v4229, %v4227
      %v4231 = vand.u32 %v4079, 65535
      %v4232 = vshra.s32 %v4079, 16
      %v4233 = vcvt.s32.f32 %v4231
      %v4234 = vcvt.s32.f32 %v4232
      %4235 = vmin.xlane.f32.xlu0 %v4234
      %v4236 = vpop.xlane.xlu0 %4235
      %vm4237 = vcmp.eq.f32.partialorder %v4234, %v4236
      %v4238 = vsel %vm4237, %v4233, inf
      %4239 = vmin.xlane.f32.xlu0 %v4238
      %v4240 = vpop.xlane.xlu0 %4239
      %v4241 = vcvt.f32.s32 %v4240
      %v4242 = vcvt.f32.s32 %v4236
      %v4243 = vshll.u32 %v4242, 16
      %v4244 = vadd.s32 %v4243, %v4241
      %v4245 = vand.u32 %v4080, 65535
      %v4246 = vshra.s32 %v4080, 16
      %v4247 = vcvt.s32.f32 %v4245
      %v4248 = vcvt.s32.f32 %v4246
      %4249 = vmin.xlane.f32.xlu0 %v4248
      %v4250 = vpop.xlane.xlu0 %4249
      %vm4251 = vcmp.eq.f32.partialorder %v4248, %v4250
      %v4252 = vsel %vm4251, %v4247, inf
      %4253 = vmin.xlane.f32.xlu0 %v4252
      %v4254 = vpop.xlane.xlu0 %4253
      %v4255 = vcvt.f32.s32 %v4254
      %v4256 = vcvt.f32.s32 %v4250
      %v4257 = vshll.u32 %v4256, 16
      %v4258 = vadd.s32 %v4257, %v4255
      %v4259 = vand.u32 %v4081, 65535
      %v4260 = vshra.s32 %v4081, 16
      %v4261 = vcvt.s32.f32 %v4259
      %v4262 = vcvt.s32.f32 %v4260
      %4263 = vmin.xlane.f32.xlu0 %v4262
      %v4264 = vpop.xlane.xlu0 %4263
      %vm4265 = vcmp.eq.f32.partialorder %v4262, %v4264
      %v4266 = vsel %vm4265, %v4261, inf
      %4267 = vmin.xlane.f32.xlu0 %v4266
      %v4268 = vpop.xlane.xlu0 %4267
      %v4269 = vcvt.f32.s32 %v4268
      %v4270 = vcvt.f32.s32 %v4264
      %v4271 = vshll.u32 %v4270, 16
      %v4272 = vadd.s32 %v4271, %v4269
      %v4273 = vand.u32 %v4082, 65535
      %v4274 = vshra.s32 %v4082, 16
      %v4275 = vcvt.s32.f32 %v4273
      %v4276 = vcvt.s32.f32 %v4274
      %4277 = vmin.xlane.f32.xlu0 %v4276
      %v4278 = vpop.xlane.xlu0 %4277
      %vm4279 = vcmp.eq.f32.partialorder %v4276, %v4278
      %v4280 = vsel %vm4279, %v4275, inf
      %4281 = vmin.xlane.f32.xlu0 %v4280
      %v4282 = vpop.xlane.xlu0 %4281
      %v4283 = vcvt.f32.s32 %v4282
      %v4284 = vcvt.f32.s32 %v4278
      %v4285 = vshll.u32 %v4284, 16
      %v4286 = vadd.s32 %v4285, %v4283
      %v4287 = vand.u32 %v4083, 65535
      %v4288 = vshra.s32 %v4083, 16
      %v4289 = vcvt.s32.f32 %v4287
      %v4290 = vcvt.s32.f32 %v4288
      %4291 = vmin.xlane.f32.xlu0 %v4290
      %v4292 = vpop.xlane.xlu0 %4291
      %vm4293 = vcmp.eq.f32.partialorder %v4290, %v4292
      %v4294 = vsel %vm4293, %v4289, inf
      %4295 = vmin.xlane.f32.xlu0 %v4294
      %v4296 = vpop.xlane.xlu0 %4295
      %v4297 = vcvt.f32.s32 %v4296
      %v4298 = vcvt.f32.s32 %v4292
      %v4299 = vshll.u32 %v4298, 16
      %v4300 = vadd.s32 %v4299, %v4297
      %v4301 = vand.u32 %v4084, 65535
      %v4302 = vshra.s32 %v4084, 16
      %v4303 = vcvt.s32.f32 %v4301
      %v4304 = vcvt.s32.f32 %v4302
      %4305 = vmin.xlane.f32.xlu0 %v4304
      %v4306 = vpop.xlane.xlu0 %4305
      %vm4307 = vcmp.eq.f32.partialorder %v4304, %v4306
      %v4308 = vsel %vm4307, %v4303, inf
      %4309 = vmin.xlane.f32.xlu0 %v4308
      %v4310 = vpop.xlane.xlu0 %4309
      %v4311 = vcvt.f32.s32 %v4310
      %v4312 = vcvt.f32.s32 %v4306
      %v4313 = vshll.u32 %v4312, 16
      %v4314 = vadd.s32 %v4313, %v4311
      %v4315 = vand.u32 %v4085, 65535
      %v4316 = vshra.s32 %v4085, 16
      %v4317 = vcvt.s32.f32 %v4315
      %v4318 = vcvt.s32.f32 %v4316
      %4319 = vmin.xlane.f32.xlu0 %v4318
      %v4320 = vpop.xlane.xlu0 %4319
      %vm4321 = vcmp.eq.f32.partialorder %v4318, %v4320
      %v4322 = vsel %vm4321, %v4317, inf
      %4323 = vmin.xlane.f32.xlu0 %v4322
      %v4324 = vpop.xlane.xlu0 %4323
      %v4325 = vcvt.f32.s32 %v4324
      %v4326 = vcvt.f32.s32 %v4320
      %v4327 = vshll.u32 %v4326, 16
      %v4328 = vadd.s32 %v4327, %v4325
      %v4329 = vand.u32 %v4086, 65535
      %v4330 = vshra.s32 %v4086, 16
      %v4331 = vcvt.s32.f32 %v4329
      %v4332 = vcvt.s32.f32 %v4330
      %4333 = vmin.xlane.f32.xlu0 %v4332
      %v4334 = vpop.xlane.xlu0 %4333
      %vm4335 = vcmp.eq.f32.partialorder %v4332, %v4334
      %v4336 = vsel %vm4335, %v4331, inf
      %4337 = vmin.xlane.f32.xlu0 %v4336
      %v4338 = vpop.xlane.xlu0 %4337
      %v4339 = vcvt.f32.s32 %v4338
      %v4340 = vcvt.f32.s32 %v4334
      %v4341 = vshll.u32 %v4340, 16
      %v4342 = vadd.s32 %v4341, %v4339
      %v4343 = vand.u32 %v4087, 65535
      %v4344 = vshra.s32 %v4087, 16
      %v4345 = vcvt.s32.f32 %v4343
      %v4346 = vcvt.s32.f32 %v4344
      %4347 = vmin.xlane.f32.xlu0 %v4346
      %v4348 = vpop.xlane.xlu0 %4347
      %vm4349 = vcmp.eq.f32.partialorder %v4346, %v4348
      %v4350 = vsel %vm4349, %v4345, inf
      %4351 = vmin.xlane.f32.xlu0 %v4350
      %v4352 = vpop.xlane.xlu0 %4351
      %v4353 = vcvt.f32.s32 %v4352
      %v4354 = vcvt.f32.s32 %v4348
      %v4355 = vshll.u32 %v4354, 16
      %v4356 = vadd.s32 %v4355, %v4353
      %v4357 = vand.u32 %v4088, 65535
      %v4358 = vshra.s32 %v4088, 16
      %v4359 = vcvt.s32.f32 %v4357
      %v4360 = vcvt.s32.f32 %v4358
      %4361 = vmin.xlane.f32.xlu0 %v4360
      %v4362 = vpop.xlane.xlu0 %4361
      %vm4363 = vcmp.eq.f32.partialorder %v4360, %v4362
      %v4364 = vsel %vm4363, %v4359, inf
      %4365 = vmin.xlane.f32.xlu0 %v4364
      %v4366 = vpop.xlane.xlu0 %4365
      %v4367 = vcvt.f32.s32 %v4366
      %v4368 = vcvt.f32.s32 %v4362
      %v4369 = vshll.u32 %v4368, 16
      %v4370 = vadd.s32 %v4369, %v4367
      %v4371 = vand.u32 %v4089, 65535
      %v4372 = vshra.s32 %v4089, 16
      %v4373 = vcvt.s32.f32 %v4371
      %v4374 = vcvt.s32.f32 %v4372
      %4375 = vmin.xlane.f32.xlu0 %v4374
      %v4376 = vpop.xlane.xlu0 %4375
      %vm4377 = vcmp.eq.f32.partialorder %v4374, %v4376
      %v4378 = vsel %vm4377, %v4373, inf
      %4379 = vmin.xlane.f32.xlu0 %v4378
      %v4380 = vpop.xlane.xlu0 %4379
      %v4381 = vcvt.f32.s32 %v4380
      %v4382 = vcvt.f32.s32 %v4376
      %v4383 = vshll.u32 %v4382, 16
      %v4384 = vadd.s32 %v4383, %v4381
      %v4385 = vand.u32 %v4090, 65535
      %v4386 = vshra.s32 %v4090, 16
      %v4387 = vcvt.s32.f32 %v4385
      %v4388 = vcvt.s32.f32 %v4386
      %4389 = vmin.xlane.f32.xlu0 %v4388
      %v4390 = vpop.xlane.xlu0 %4389
      %vm4391 = vcmp.eq.f32.partialorder %v4388, %v4390
      %v4392 = vsel %vm4391, %v4387, inf
      %4393 = vmin.xlane.f32.xlu0 %v4392
      %v4394 = vpop.xlane.xlu0 %4393
      %v4395 = vcvt.f32.s32 %v4394
      %v4396 = vcvt.f32.s32 %v4390
      %v4397 = vshll.u32 %v4396, 16
      %v4398 = vadd.s32 %v4397, %v4395
      %v4399 = vand.u32 %v4091, 65535
      %v4400 = vshra.s32 %v4091, 16
      %v4401 = vcvt.s32.f32 %v4399
      %v4402 = vcvt.s32.f32 %v4400
      %4403 = vmin.xlane.f32.xlu0 %v4402
      %v4404 = vpop.xlane.xlu0 %4403
      %vm4405 = vcmp.eq.f32.partialorder %v4402, %v4404
      %v4406 = vsel %vm4405, %v4401, inf
      %4407 = vmin.xlane.f32.xlu0 %v4406
      %v4408 = vpop.xlane.xlu0 %4407
      %v4409 = vcvt.f32.s32 %v4408
      %v4410 = vcvt.f32.s32 %v4404
      %v4411 = vshll.u32 %v4410, 16
      %v4412 = vadd.s32 %v4411, %v4409
      %v4413 = vand.u32 %v4092, 65535
      %v4414 = vshra.s32 %v4092, 16
      %v4415 = vcvt.s32.f32 %v4413
      %v4416 = vcvt.s32.f32 %v4414
      %4417 = vmin.xlane.f32.xlu0 %v4416
      %v4418 = vpop.xlane.xlu0 %4417
      %vm4419 = vcmp.eq.f32.partialorder %v4416, %v4418
      %v4420 = vsel %vm4419, %v4415, inf
      %4421 = vmin.xlane.f32.xlu0 %v4420
      %v4422 = vpop.xlane.xlu0 %4421
      %v4423 = vcvt.f32.s32 %v4422
      %v4424 = vcvt.f32.s32 %v4418
      %v4425 = vshll.u32 %v4424, 16
      %v4426 = vadd.s32 %v4425, %v4423
      %v4427 = vand.u32 %v4093, 65535
      %v4428 = vshra.s32 %v4093, 16
      %v4429 = vcvt.s32.f32 %v4427
      %v4430 = vcvt.s32.f32 %v4428
      %4431 = vmin.xlane.f32.xlu0 %v4430
      %v4432 = vpop.xlane.xlu0 %4431
      %vm4433 = vcmp.eq.f32.partialorder %v4430, %v4432
      %v4434 = vsel %vm4433, %v4429, inf
      %4435 = vmin.xlane.f32.xlu0 %v4434
      %v4436 = vpop.xlane.xlu0 %4435
      %v4437 = vcvt.f32.s32 %v4436
      %v4438 = vcvt.f32.s32 %v4432
      %v4439 = vshll.u32 %v4438, 16
      %v4440 = vadd.s32 %v4439, %v4437
      %v4441 = vand.u32 %v4094, 65535
      %v4442 = vshra.s32 %v4094, 16
      %v4443 = vcvt.s32.f32 %v4441
      %v4444 = vcvt.s32.f32 %v4442
      %4445 = vmin.xlane.f32.xlu0 %v4444
      %v4446 = vpop.xlane.xlu0 %4445
      %vm4447 = vcmp.eq.f32.partialorder %v4444, %v4446
      %v4448 = vsel %vm4447, %v4443, inf
      %4449 = vmin.xlane.f32.xlu0 %v4448
      %v4450 = vpop.xlane.xlu0 %4449
      %v4451 = vcvt.f32.s32 %v4450
      %v4452 = vcvt.f32.s32 %v4446
      %v4453 = vshll.u32 %v4452, 16
      %v4454 = vadd.s32 %v4453, %v4451
      %v4455 = vand.u32 %v4095, 65535
      %v4456 = vshra.s32 %v4095, 16
      %v4457 = vcvt.s32.f32 %v4455
      %v4458 = vcvt.s32.f32 %v4456
      %4459 = vmin.xlane.f32.xlu0 %v4458
      %v4460 = vpop.xlane.xlu0 %4459
      %vm4461 = vcmp.eq.f32.partialorder %v4458, %v4460
      %v4462 = vsel %vm4461, %v4457, inf
      %4463 = vmin.xlane.f32.xlu0 %v4462
      %v4464 = vpop.xlane.xlu0 %4463
      %v4465 = vcvt.f32.s32 %v4464
      %v4466 = vcvt.f32.s32 %v4460
      %v4467 = vshll.u32 %v4466, 16
      %v4468 = vadd.s32 %v4467, %v4465
      %v4469 = vand.u32 %v4096, 65535
      %v4470 = vshra.s32 %v4096, 16
      %v4471 = vcvt.s32.f32 %v4469
      %v4472 = vcvt.s32.f32 %v4470
      %4473 = vmin.xlane.f32.xlu0 %v4472
      %v4474 = vpop.xlane.xlu0 %4473
      %vm4475 = vcmp.eq.f32.partialorder %v4472, %v4474
      %v4476 = vsel %vm4475, %v4471, inf
      %4477 = vmin.xlane.f32.xlu0 %v4476
      %v4478 = vpop.xlane.xlu0 %4477
      %v4479 = vcvt.f32.s32 %v4478
      %v4480 = vcvt.f32.s32 %v4474
      %v4481 = vshll.u32 %v4480, 16
      %v4482 = vadd.s32 %v4481, %v4479
      %v4483 = vand.u32 %v4097, 65535
      %v4484 = vshra.s32 %v4097, 16
      %v4485 = vcvt.s32.f32 %v4483
      %v4486 = vcvt.s32.f32 %v4484
      %4487 = vmin.xlane.f32.xlu0 %v4486
      %v4488 = vpop.xlane.xlu0 %4487
      %vm4489 = vcmp.eq.f32.partialorder %v4486, %v4488
      %v4490 = vsel %vm4489, %v4485, inf
      %4491 = vmin.xlane.f32.xlu0 %v4490
      %v4492 = vpop.xlane.xlu0 %4491
      %v4493 = vcvt.f32.s32 %v4492
      %v4494 = vcvt.f32.s32 %v4488
      %v4495 = vshll.u32 %v4494, 16
      %v4496 = vadd.s32 %v4495, %v4493
      %v4497 = vand.u32 %v4098, 65535
      %v4498 = vshra.s32 %v4098, 16
      %v4499 = vcvt.s32.f32 %v4497
      %v4500 = vcvt.s32.f32 %v4498
      %4501 = vmin.xlane.f32.xlu0 %v4500
      %v4502 = vpop.xlane.xlu0 %4501
      %vm4503 = vcmp.eq.f32.partialorder %v4500, %v4502
      %v4504 = vsel %vm4503, %v4499, inf
      %4505 = vmin.xlane.f32.xlu0 %v4504
      %v4506 = vpop.xlane.xlu0 %4505
      %v4507 = vcvt.f32.s32 %v4506
      %v4508 = vcvt.f32.s32 %v4502
      %v4509 = vshll.u32 %v4508, 16
      %v4510 = vadd.s32 %v4509, %v4507
      %v4511 = vand.u32 %v4099, 65535
      %v4512 = vshra.s32 %v4099, 16
      %v4513 = vcvt.s32.f32 %v4511
      %v4514 = vcvt.s32.f32 %v4512
      %4515 = vmin.xlane.f32.xlu0 %v4514
      %v4516 = vpop.xlane.xlu0 %4515
      %vm4517 = vcmp.eq.f32.partialorder %v4514, %v4516
      %v4518 = vsel %vm4517, %v4513, inf
      %4519 = vmin.xlane.f32.xlu0 %v4518
      %v4520 = vpop.xlane.xlu0 %4519
      %v4521 = vcvt.f32.s32 %v4520
      %v4522 = vcvt.f32.s32 %v4516
      %v4523 = vshll.u32 %v4522, 16
      %v4524 = vadd.s32 %v4523, %v4521
      %v4525 = vand.u32 %v4100, 65535
      %v4526 = vshra.s32 %v4100, 16
      %v4527 = vcvt.s32.f32 %v4525
      %v4528 = vcvt.s32.f32 %v4526
      %4529 = vmin.xlane.f32.xlu0 %v4528
      %v4530 = vpop.xlane.xlu0 %4529
      %vm4531 = vcmp.eq.f32.partialorder %v4528, %v4530
      %v4532 = vsel %vm4531, %v4527, inf
      %4533 = vmin.xlane.f32.xlu0 %v4532
      %v4534 = vpop.xlane.xlu0 %4533
      %v4535 = vcvt.f32.s32 %v4534
      %v4536 = vcvt.f32.s32 %v4530
      %v4537 = vshll.u32 %v4536, 16
      %v4538 = vadd.s32 %v4537, %v4535
      %v4539 = vand.u32 %v4101, 65535
      %v4540 = vshra.s32 %v4101, 16
      %v4541 = vcvt.s32.f32 %v4539
      %v4542 = vcvt.s32.f32 %v4540
      %4543 = vmin.xlane.f32.xlu0 %v4542
      %v4544 = vpop.xlane.xlu0 %4543
      %vm4545 = vcmp.eq.f32.partialorder %v4542, %v4544
      %v4546 = vsel %vm4545, %v4541, inf
      %4547 = vmin.xlane.f32.xlu0 %v4546
      %v4548 = vpop.xlane.xlu0 %4547
      %v4549 = vcvt.f32.s32 %v4548
      %v4550 = vcvt.f32.s32 %v4544
      %v4551 = vshll.u32 %v4550, 16
      %v4552 = vadd.s32 %v4551, %v4549
      %v4553 = vand.u32 %v4102, 65535
      %v4554 = vshra.s32 %v4102, 16
      %v4555 = vcvt.s32.f32 %v4553
      %v4556 = vcvt.s32.f32 %v4554
      %4557 = vmin.xlane.f32.xlu0 %v4556
      %v4558 = vpop.xlane.xlu0 %4557
      %vm4559 = vcmp.eq.f32.partialorder %v4556, %v4558
      %v4560 = vsel %vm4559, %v4555, inf
      %4561 = vmin.xlane.f32.xlu0 %v4560
      %v4562 = vpop.xlane.xlu0 %4561
      %v4563 = vcvt.f32.s32 %v4562
      %v4564 = vcvt.f32.s32 %v4558
      %v4565 = vshll.u32 %v4564, 16
      %v4566 = vadd.s32 %v4565, %v4563
      %v4567 = vand.u32 %v4103, 65535
      %v4568 = vshra.s32 %v4103, 16
      %v4569 = vcvt.s32.f32 %v4567
      %v4570 = vcvt.s32.f32 %v4568
      %4571 = vmin.xlane.f32.xlu0 %v4570
      %v4572 = vpop.xlane.xlu0 %4571
      %vm4573 = vcmp.eq.f32.partialorder %v4570, %v4572
      %v4574 = vsel %vm4573, %v4569, inf
      %4575 = vmin.xlane.f32.xlu0 %v4574
      %v4576 = vpop.xlane.xlu0 %4575
      %v4577 = vcvt.f32.s32 %v4576
      %v4578 = vcvt.f32.s32 %v4572
      %v4579 = vshll.u32 %v4578, 16
      %v4580 = vadd.s32 %v4579, %v4577
      %v4581 = vand.u32 %v4104, 65535
      %v4582 = vshra.s32 %v4104, 16
      %v4583 = vcvt.s32.f32 %v4581
      %v4584 = vcvt.s32.f32 %v4582
      %4585 = vmin.xlane.f32.xlu0 %v4584
      %v4586 = vpop.xlane.xlu0 %4585
      %vm4587 = vcmp.eq.f32.partialorder %v4584, %v4586
      %v4588 = vsel %vm4587, %v4583, inf
      %4589 = vmin.xlane.f32.xlu0 %v4588
      %v4590 = vpop.xlane.xlu0 %4589
      %v4591 = vcvt.f32.s32 %v4590
      %v4592 = vcvt.f32.s32 %v4586
      %v4593 = vshll.u32 %v4592, 16
      %v4594 = vadd.s32 %v4593, %v4591
      %v4595 = vand.u32 %v4105, 65535
      %v4596 = vshra.s32 %v4105, 16
      %v4597 = vcvt.s32.f32 %v4595
      %v4598 = vcvt.s32.f32 %v4596
      %4599 = vmin.xlane.f32.xlu0 %v4598
      %v4600 = vpop.xlane.xlu0 %4599
      %vm4601 = vcmp.eq.f32.partialorder %v4598, %v4600
      %v4602 = vsel %vm4601, %v4597, inf
      %4603 = vmin.xlane.f32.xlu0 %v4602
      %v4604 = vpop.xlane.xlu0 %4603
      %v4605 = vcvt.f32.s32 %v4604
      %v4606 = vcvt.f32.s32 %v4600
      %v4607 = vshll.u32 %v4606, 16
      %v4608 = vadd.s32 %v4607, %v4605
      %v4609 = vand.u32 %v4106, 65535
      %v4610 = vshra.s32 %v4106, 16
      %v4611 = vcvt.s32.f32 %v4609
      %v4612 = vcvt.s32.f32 %v4610
      %4613 = vmin.xlane.f32.xlu0 %v4612
      %v4614 = vpop.xlane.xlu0 %4613
      %vm4615 = vcmp.eq.f32.partialorder %v4612, %v4614
      %v4616 = vsel %vm4615, %v4611, inf
      %4617 = vmin.xlane.f32.xlu0 %v4616
      %v4618 = vpop.xlane.xlu0 %4617
      %v4619 = vcvt.f32.s32 %v4618
      %v4620 = vcvt.f32.s32 %v4614
      %v4621 = vshll.u32 %v4620, 16
      %v4622 = vadd.s32 %v4621, %v4619
      %v4623 = vand.u32 %v4107, 65535
      %v4624 = vshra.s32 %v4107, 16
      %v4625 = vcvt.s32.f32 %v4623
      %v4626 = vcvt.s32.f32 %v4624
      %4627 = vmin.xlane.f32.xlu0 %v4626
      %v4628 = vpop.xlane.xlu0 %4627
      %vm4629 = vcmp.eq.f32.partialorder %v4626, %v4628
      %v4630 = vsel %vm4629, %v4625, inf
      %4631 = vmin.xlane.f32.xlu0 %v4630
      %v4632 = vpop.xlane.xlu0 %4631
      %v4633 = vcvt.f32.s32 %v4632
      %v4634 = vcvt.f32.s32 %v4628
      %v4635 = vshll.u32 %v4634, 16
      %v4636 = vadd.s32 %v4635, %v4633
      %v4637 = vand.u32 %v4108, 65535
      %v4638 = vshra.s32 %v4108, 16
      %v4639 = vcvt.s32.f32 %v4637
      %v4640 = vcvt.s32.f32 %v4638
      %4641 = vmin.xlane.f32.xlu0 %v4640
      %v4642 = vpop.xlane.xlu0 %4641
      %vm4643 = vcmp.eq.f32.partialorder %v4640, %v4642
      %v4644 = vsel %vm4643, %v4639, inf
      %4645 = vmin.xlane.f32.xlu0 %v4644
      %v4646 = vpop.xlane.xlu0 %4645
      %v4647 = vcvt.f32.s32 %v4646
      %v4648 = vcvt.f32.s32 %v4642
      %v4649 = vshll.u32 %v4648, 16
      %v4650 = vadd.s32 %v4649, %v4647
      %v4651 = vand.u32 %v4109, 65535
      %v4652 = vshra.s32 %v4109, 16
      %v4653 = vcvt.s32.f32 %v4651
      %v4654 = vcvt.s32.f32 %v4652
      %4655 = vmin.xlane.f32.xlu0 %v4654
      %v4656 = vpop.xlane.xlu0 %4655
      %vm4657 = vcmp.eq.f32.partialorder %v4654, %v4656
      %v4658 = vsel %vm4657, %v4653, inf
      %4659 = vmin.xlane.f32.xlu0 %v4658
      %v4660 = vpop.xlane.xlu0 %4659
      %v4661 = vcvt.f32.s32 %v4660
      %v4662 = vcvt.f32.s32 %v4656
      %v4663 = vshll.u32 %v4662, 16
      %v4664 = vadd.s32 %v4663, %v4661
      %v4665 = vand.u32 %v4110, 65535
      %v4666 = vshra.s32 %v4110, 16
      %v4667 = vcvt.s32.f32 %v4665
      %v4668 = vcvt.s32.f32 %v4666
      %4669 = vmin.xlane.f32.xlu0 %v4668
      %v4670 = vpop.xlane.xlu0 %4669
      %vm4671 = vcmp.eq.f32.partialorder %v4668, %v4670
      %v4672 = vsel %vm4671, %v4667, inf
      %4673 = vmin.xlane.f32.xlu0 %v4672
      %v4674 = vpop.xlane.xlu0 %4673
      %v4675 = vcvt.f32.s32 %v4674
      %v4676 = vcvt.f32.s32 %v4670
      %v4677 = vshll.u32 %v4676, 16
      %v4678 = vadd.s32 %v4677, %v4675
      %v4679 = vand.u32 %v4111, 65535
      %v4680 = vshra.s32 %v4111, 16
      %v4681 = vcvt.s32.f32 %v4679
      %v4682 = vcvt.s32.f32 %v4680
      %4683 = vmin.xlane.f32.xlu0 %v4682
      %v4684 = vpop.xlane.xlu0 %4683
      %vm4685 = vcmp.eq.f32.partialorder %v4682, %v4684
      %v4686 = vsel %vm4685, %v4681, inf
      %4687 = vmin.xlane.f32.xlu0 %v4686
      %v4688 = vpop.xlane.xlu0 %4687
      %v4689 = vcvt.f32.s32 %v4688
      %v4690 = vcvt.f32.s32 %v4684
      %v4691 = vshll.u32 %v4690, 16
      %v4692 = vadd.s32 %v4691, %v4689
      %v4693 = vand.u32 %v4112, 65535
      %v4694 = vshra.s32 %v4112, 16
      %v4695 = vcvt.s32.f32 %v4693
      %v4696 = vcvt.s32.f32 %v4694
      %4697 = vmin.xlane.f32.xlu0 %v4696
      %v4698 = vpop.xlane.xlu0 %4697
      %vm4699 = vcmp.eq.f32.partialorder %v4696, %v4698
      %v4700 = vsel %vm4699, %v4695, inf
      %4701 = vmin.xlane.f32.xlu0 %v4700
      %v4702 = vpop.xlane.xlu0 %4701
      %v4703 = vcvt.f32.s32 %v4702
      %v4704 = vcvt.f32.s32 %v4698
      %v4705 = vshll.u32 %v4704, 16
      %v4706 = vadd.s32 %v4705, %v4703
      %v4707 = vand.u32 %v4113, 65535
      %v4708 = vshra.s32 %v4113, 16
      %v4709 = vcvt.s32.f32 %v4707
      %v4710 = vcvt.s32.f32 %v4708
      %4711 = vmin.xlane.f32.xlu0 %v4710
      %v4712 = vpop.xlane.xlu0 %4711
      %vm4713 = vcmp.eq.f32.partialorder %v4710, %v4712
      %v4714 = vsel %vm4713, %v4709, inf
      %4715 = vmin.xlane.f32.xlu0 %v4714
      %v4716 = vpop.xlane.xlu0 %4715
      %v4717 = vcvt.f32.s32 %v4716
      %v4718 = vcvt.f32.s32 %v4712
      %v4719 = vshll.u32 %v4718, 16
      %v4720 = vadd.s32 %v4719, %v4717
      %v4721 = vand.u32 %v4114, 65535
      %v4722 = vshra.s32 %v4114, 16
      %v4723 = vcvt.s32.f32 %v4721
      %v4724 = vcvt.s32.f32 %v4722
      %4725 = vmin.xlane.f32.xlu0 %v4724
      %v4726 = vpop.xlane.xlu0 %4725
      %vm4727 = vcmp.eq.f32.partialorder %v4724, %v4726
      %v4728 = vsel %vm4727, %v4723, inf
      %4729 = vmin.xlane.f32.xlu0 %v4728
      %v4730 = vpop.xlane.xlu0 %4729
      %v4731 = vcvt.f32.s32 %v4730
      %v4732 = vcvt.f32.s32 %v4726
      %v4733 = vshll.u32 %v4732, 16
      %v4734 = vadd.s32 %v4733, %v4731
      %v4735 = vand.u32 %v4115, 65535
      %v4736 = vshra.s32 %v4115, 16
      %v4737 = vcvt.s32.f32 %v4735
      %v4738 = vcvt.s32.f32 %v4736
      %4739 = vmin.xlane.f32.xlu0 %v4738
      %v4740 = vpop.xlane.xlu0 %4739
      %vm4741 = vcmp.eq.f32.partialorder %v4738, %v4740
      %v4742 = vsel %vm4741, %v4737, inf
      %4743 = vmin.xlane.f32.xlu0 %v4742
      %v4744 = vpop.xlane.xlu0 %4743
      %v4745 = vcvt.f32.s32 %v4744
      %v4746 = vcvt.f32.s32 %v4740
      %v4747 = vshll.u32 %v4746, 16
      %v4748 = vadd.s32 %v4747, %v4745
      %v4749 = vand.u32 %v4116, 65535
      %v4750 = vshra.s32 %v4116, 16
      %v4751 = vcvt.s32.f32 %v4749
      %v4752 = vcvt.s32.f32 %v4750
      %4753 = vmin.xlane.f32.xlu0 %v4752
      %v4754 = vpop.xlane.xlu0 %4753
      %vm4755 = vcmp.eq.f32.partialorder %v4752, %v4754
      %v4756 = vsel %vm4755, %v4751, inf
      %4757 = vmin.xlane.f32.xlu0 %v4756
      %v4758 = vpop.xlane.xlu0 %4757
      %v4759 = vcvt.f32.s32 %v4758
      %v4760 = vcvt.f32.s32 %v4754
      %v4761 = vshll.u32 %v4760, 16
      %v4762 = vadd.s32 %v4761, %v4759
      %v4763 = vand.u32 %v4117, 65535
      %v4764 = vshra.s32 %v4117, 16
      %v4765 = vcvt.s32.f32 %v4763
      %v4766 = vcvt.s32.f32 %v4764
      %4767 = vmin.xlane.f32.xlu0 %v4766
      %v4768 = vpop.xlane.xlu0 %4767
      %vm4769 = vcmp.eq.f32.partialorder %v4766, %v4768
      %v4770 = vsel %vm4769, %v4765, inf
      %4771 = vmin.xlane.f32.xlu0 %v4770
      %v4772 = vpop.xlane.xlu0 %4771
      %v4773 = vcvt.f32.s32 %v4772
      %v4774 = vcvt.f32.s32 %v4768
      %v4775 = vshll.u32 %v4774, 16
      %v4776 = vadd.s32 %v4775, %v4773
      %v4777 = vand.u32 %v4118, 65535
      %v4778 = vshra.s32 %v4118, 16
      %v4779 = vcvt.s32.f32 %v4777
      %v4780 = vcvt.s32.f32 %v4778
      %4781 = vmin.xlane.f32.xlu0 %v4780
      %v4782 = vpop.xlane.xlu0 %4781
      %vm4783 = vcmp.eq.f32.partialorder %v4780, %v4782
      %v4784 = vsel %vm4783, %v4779, inf
      %4785 = vmin.xlane.f32.xlu0 %v4784
      %v4786 = vpop.xlane.xlu0 %4785
      %v4787 = vcvt.f32.s32 %v4786
      %v4788 = vcvt.f32.s32 %v4782
      %v4789 = vshll.u32 %v4788, 16
      %v4790 = vadd.s32 %v4789, %v4787
      %v4791 = vadd.s32 %v4132, 8
      %v4792 = vadd.s32 %v4146, 8
      %v4793 = vadd.s32 %v4160, 8
      %v4794 = vadd.s32 %v4174, 8
      %v4795 = vadd.s32 %v4188, 8
      %v4796 = vadd.s32 %v4202, 8
      %v4797 = vadd.s32 %v4216, 8
      %v4798 = vadd.s32 %v4230, 8
      %v4799 = vadd.s32 %v4244, 8
      %v4800 = vadd.s32 %v4258, 8
      %v4801 = vadd.s32 %v4272, 8
      %v4802 = vadd.s32 %v4286, 8
      %v4803 = vadd.s32 %v4300, 8
      %v4804 = vadd.s32 %v4314, 8
      %v4805 = vadd.s32 %v4328, 8
      %v4806 = vadd.s32 %v4342, 8
      %v4807 = vadd.s32 %v4356, 8
      %v4808 = vadd.s32 %v4370, 8
      %v4809 = vadd.s32 %v4384, 8
      %v4810 = vadd.s32 %v4398, 8
      %v4811 = vadd.s32 %v4412, 8
      %v4812 = vadd.s32 %v4426, 8
      %v4813 = vadd.s32 %v4440, 8
      %v4814 = vadd.s32 %v4454, 8
      %v4815 = vadd.s32 %v4468, 8
      %v4816 = vadd.s32 %v4482, 8
      %v4817 = vadd.s32 %v4496, 8
      %v4818 = vadd.s32 %v4510, 8
      %v4819 = vadd.s32 %v4524, 8
      %v4820 = vadd.s32 %v4538, 8
      %v4821 = vadd.s32 %v4552, 8
      %v4822 = vadd.s32 %v4566, 8
      %v4823 = vadd.s32 %v4580, 8
      %v4824 = vadd.s32 %v4594, 8
      %v4825 = vadd.s32 %v4608, 8
      %v4826 = vadd.s32 %v4622, 8
      %v4827 = vadd.s32 %v4636, 8
      %v4828 = vadd.s32 %v4650, 8
      %v4829 = vadd.s32 %v4664, 8
      %v4830 = vadd.s32 %v4678, 8
      %v4831 = vadd.s32 %v4692, 8
      %v4832 = vadd.s32 %v4706, 8
      %v4833 = vadd.s32 %v4720, 8
      %v4834 = vadd.s32 %v4734, 8
      %v4835 = vadd.s32 %v4748, 8
      %v4836 = vadd.s32 %v4762, 8
      %v4837 = vadd.s32 %v4776, 8
      %v4838 = vadd.s32 %v4790, 8
      %vm4839 = vcmp.eq.s32.totalorder %v4022, %v4791
      %vm4840 = vcmp.eq.s32.totalorder %v4022, %v4792
      %vm4841 = vcmp.eq.s32.totalorder %v4022, %v4793
      %vm4842 = vcmp.eq.s32.totalorder %v4022, %v4794
      %vm4843 = vcmp.eq.s32.totalorder %v4022, %v4795
      %vm4844 = vcmp.eq.s32.totalorder %v4022, %v4796
      %vm4845 = vcmp.eq.s32.totalorder %v4022, %v4797
      %vm4846 = vcmp.eq.s32.totalorder %v4022, %v4798
      %vm4847 = vcmp.eq.s32.totalorder %v4022, %v4799
      %vm4848 = vcmp.eq.s32.totalorder %v4022, %v4800
      %vm4849 = vcmp.eq.s32.totalorder %v4022, %v4801
      %vm4850 = vcmp.eq.s32.totalorder %v4022, %v4802
      %vm4851 = vcmp.eq.s32.totalorder %v4022, %v4803
      %vm4852 = vcmp.eq.s32.totalorder %v4022, %v4804
      %vm4853 = vcmp.eq.s32.totalorder %v4022, %v4805
      %vm4854 = vcmp.eq.s32.totalorder %v4022, %v4806
      %vm4855 = vcmp.eq.s32.totalorder %v4022, %v4807
      %vm4856 = vcmp.eq.s32.totalorder %v4022, %v4808
      %vm4857 = vcmp.eq.s32.totalorder %v4022, %v4809
      %vm4858 = vcmp.eq.s32.totalorder %v4022, %v4810
      %vm4859 = vcmp.eq.s32.totalorder %v4022, %v4811
      %vm4860 = vcmp.eq.s32.totalorder %v4022, %v4812
      %vm4861 = vcmp.eq.s32.totalorder %v4022, %v4813
      %vm4862 = vcmp.eq.s32.totalorder %v4022, %v4814
      %vm4863 = vcmp.eq.s32.totalorder %v4022, %v4815
      %vm4864 = vcmp.eq.s32.totalorder %v4022, %v4816
      %vm4865 = vcmp.eq.s32.totalorder %v4022, %v4817
      %vm4866 = vcmp.eq.s32.totalorder %v4022, %v4818
      %vm4867 = vcmp.eq.s32.totalorder %v4022, %v4819
      %vm4868 = vcmp.eq.s32.totalorder %v4022, %v4820
      %vm4869 = vcmp.eq.s32.totalorder %v4022, %v4821
      %vm4870 = vcmp.eq.s32.totalorder %v4022, %v4822
      %vm4871 = vcmp.eq.s32.totalorder %v4022, %v4823
      %vm4872 = vcmp.eq.s32.totalorder %v4022, %v4824
      %vm4873 = vcmp.eq.s32.totalorder %v4022, %v4825
      %vm4874 = vcmp.eq.s32.totalorder %v4022, %v4826
      %vm4875 = vcmp.eq.s32.totalorder %v4022, %v4827
      %vm4876 = vcmp.eq.s32.totalorder %v4022, %v4828
      %vm4877 = vcmp.eq.s32.totalorder %v4022, %v4829
      %vm4878 = vcmp.eq.s32.totalorder %v4022, %v4830
      %vm4879 = vcmp.eq.s32.totalorder %v4022, %v4831
      %vm4880 = vcmp.eq.s32.totalorder %v4022, %v4832
      %vm4881 = vcmp.eq.s32.totalorder %v4022, %v4833
      %vm4882 = vcmp.eq.s32.totalorder %v4022, %v4834
      %vm4883 = vcmp.eq.s32.totalorder %v4022, %v4835
      %vm4884 = vcmp.eq.s32.totalorder %v4022, %v4836
      %vm4885 = vcmp.eq.s32.totalorder %v4022, %v4837
      %vm4886 = vcmp.eq.s32.totalorder %v4022, %v4838
      %v4887 = vsel %vm4839, 1.0, 0.0
      %v4888 = vsel %vm4840, 1.0, 0.0
      %v4889 = vsel %vm4841, 1.0, 0.0
      %v4890 = vsel %vm4842, 1.0, 0.0
      %v4891 = vsel %vm4843, 1.0, 0.0
      %v4892 = vsel %vm4844, 1.0, 0.0
      %v4893 = vsel %vm4845, 1.0, 0.0
      %v4894 = vsel %vm4846, 1.0, 0.0
      %v4895 = vsel %vm4847, 1.0, 0.0
      %v4896 = vsel %vm4848, 1.0, 0.0
      %v4897 = vsel %vm4849, 1.0, 0.0
      %v4898 = vsel %vm4850, 1.0, 0.0
      %v4899 = vsel %vm4851, 1.0, 0.0
      %v4900 = vsel %vm4852, 1.0, 0.0
      %v4901 = vsel %vm4853, 1.0, 0.0
      %v4902 = vsel %vm4854, 1.0, 0.0
      %v4903 = vsel %vm4855, 1.0, 0.0
      %v4904 = vsel %vm4856, 1.0, 0.0
      %v4905 = vsel %vm4857, 1.0, 0.0
      %v4906 = vsel %vm4858, 1.0, 0.0
      %v4907 = vsel %vm4859, 1.0, 0.0
      %v4908 = vsel %vm4860, 1.0, 0.0
      %v4909 = vsel %vm4861, 1.0, 0.0
      %v4910 = vsel %vm4862, 1.0, 0.0
      %v4911 = vsel %vm4863, 1.0, 0.0
      %v4912 = vsel %vm4864, 1.0, 0.0
      %v4913 = vsel %vm4865, 1.0, 0.0
      %v4914 = vsel %vm4866, 1.0, 0.0
      %v4915 = vsel %vm4867, 1.0, 0.0
      %v4916 = vsel %vm4868, 1.0, 0.0
      %v4917 = vsel %vm4869, 1.0, 0.0
      %v4918 = vsel %vm4870, 1.0, 0.0
      %v4919 = vsel %vm4871, 1.0, 0.0
      %v4920 = vsel %vm4872, 1.0, 0.0
      %v4921 = vsel %vm4873, 1.0, 0.0
      %v4922 = vsel %vm4874, 1.0, 0.0
      %v4923 = vsel %vm4875, 1.0, 0.0
      %v4924 = vsel %vm4876, 1.0, 0.0
      %v4925 = vsel %vm4877, 1.0, 0.0
      %v4926 = vsel %vm4878, 1.0, 0.0
      %v4927 = vsel %vm4879, 1.0, 0.0
      %v4928 = vsel %vm4880, 1.0, 0.0
      %v4929 = vsel %vm4881, 1.0, 0.0
      %v4930 = vsel %vm4882, 1.0, 0.0
      %v4931 = vsel %vm4883, 1.0, 0.0
      %v4932 = vsel %vm4884, 1.0, 0.0
      %v4933 = vsel %vm4885, 1.0, 0.0
      %v4934 = vsel %vm4886, 1.0, 0.0
      %v4935 = vadd.f32 %v3973, %v4887
      %v4936 = vadd.f32 %v3974, %v4888
      %v4937 = vadd.f32 %v3975, %v4889
      %v4938 = vadd.f32 %v3976, %v4890
      %v4939 = vadd.f32 %v3977, %v4891
      %v4940 = vadd.f32 %v3978, %v4892
      %v4941 = vadd.f32 %v3979, %v4893
      %v4942 = vadd.f32 %v3980, %v4894
      %v4943 = vadd.f32 %v3981, %v4895
      %v4944 = vadd.f32 %v3982, %v4896
      %v4945 = vadd.f32 %v3983, %v4897
      %v4946 = vadd.f32 %v3984, %v4898
      %v4947 = vadd.f32 %v3985, %v4899
      %v4948 = vadd.f32 %v3986, %v4900
      %v4949 = vadd.f32 %v3987, %v4901
      %v4950 = vadd.f32 %v3988, %v4902
      %v4951 = vadd.f32 %v3989, %v4903
      %v4952 = vadd.f32 %v3990, %v4904
      %v4953 = vadd.f32 %v3991, %v4905
      %v4954 = vadd.f32 %v3992, %v4906
      %v4955 = vadd.f32 %v3993, %v4907
      %v4956 = vadd.f32 %v3994, %v4908
      %v4957 = vadd.f32 %v3995, %v4909
      %v4958 = vadd.f32 %v3996, %v4910
      %v4959 = vadd.f32 %v3997, %v4911
      %v4960 = vadd.f32 %v3998, %v4912
      %v4961 = vadd.f32 %v3999, %v4913
      %v4962 = vadd.f32 %v4000, %v4914
      %v4963 = vadd.f32 %v4001, %v4915
      %v4964 = vadd.f32 %v4002, %v4916
      %v4965 = vadd.f32 %v4003, %v4917
      %v4966 = vadd.f32 %v4004, %v4918
      %v4967 = vadd.f32 %v4005, %v4919
      %v4968 = vadd.f32 %v4006, %v4920
      %v4969 = vadd.f32 %v4007, %v4921
      %v4970 = vadd.f32 %v4008, %v4922
      %v4971 = vadd.f32 %v4009, %v4923
      %v4972 = vadd.f32 %v4010, %v4924
      %v4973 = vadd.f32 %v4011, %v4925
      %v4974 = vadd.f32 %v4012, %v4926
      %v4975 = vadd.f32 %v4013, %v4927
      %v4976 = vadd.f32 %v4014, %v4928
      %v4977 = vadd.f32 %v4015, %v4929
      %v4978 = vadd.f32 %v4016, %v4930
      %v4979 = vadd.f32 %v4017, %v4931
      %v4980 = vadd.f32 %v4018, %v4932
      %v4981 = vadd.f32 %v4019, %v4933
      %v4982 = vadd.f32 %v4020, %v4934
      %4983 = vst [vmem:[%s361] sm:$0xff] %v4935
      %4984 = vst [vmem:[%s361 + $0x8] sm:$0xff] %v4936
      %4985 = vst [vmem:[%s361 + $0x10] sm:$0xff] %v4937
      %4986 = vst [vmem:[%s361 + $0x18] sm:$0xff] %v4938
      %4987 = vst [vmem:[%s361 + $0x20] sm:$0xff] %v4939
      %4988 = vst [vmem:[%s361 + $0x28] sm:$0xff] %v4940
      %4989 = vst [vmem:[%s361 + $0x30] sm:$0xff] %v4941
      %4990 = vst [vmem:[%s361 + $0x38] sm:$0xff] %v4942
      %4991 = vst [vmem:[%s361 + $0x40] sm:$0xff] %v4943
      %4992 = vst [vmem:[%s361 + $0x48] sm:$0xff] %v4944
      %4993 = vst [vmem:[%s361 + $0x50] sm:$0xff] %v4945
      %4994 = vst [vmem:[%s361 + $0x58] sm:$0xff] %v4946
      %4995 = vst [vmem:[%s361 + $0x60] sm:$0xff] %v4947
      %4996 = vst [vmem:[%s361 + $0x68] sm:$0xff] %v4948
      %4997 = vst [vmem:[%s361 + $0x70] sm:$0xff] %v4949
      %4998 = vst [vmem:[%s361 + $0x78] sm:$0xff] %v4950
      %4999 = vst [vmem:[%s361 + $0x80] sm:$0xff] %v4951
      %5000 = vst [vmem:[%s361 + $0x88] sm:$0xff] %v4952
      %5001 = vst [vmem:[%s361 + $0x90] sm:$0xff] %v4953
      %5002 = vst [vmem:[%s361 + $0x98] sm:$0xff] %v4954
      %5003 = vst [vmem:[%s361 + $0xa0] sm:$0xff] %v4955
      %5004 = vst [vmem:[%s361 + $0xa8] sm:$0xff] %v4956
      %5005 = vst [vmem:[%s361 + $0xb0] sm:$0xff] %v4957
      %5006 = vst [vmem:[%s361 + $0xb8] sm:$0xff] %v4958
      %5007 = vst [vmem:[%s361 + $0xc0] sm:$0xff] %v4959
      %5008 = vst [vmem:[%s361 + $0xc8] sm:$0xff] %v4960
      %5009 = vst [vmem:[%s361 + $0xd0] sm:$0xff] %v4961
      %5010 = vst [vmem:[%s361 + $0xd8] sm:$0xff] %v4962
      %5011 = vst [vmem:[%s361 + $0xe0] sm:$0xff] %v4963
      %5012 = vst [vmem:[%s361 + $0xe8] sm:$0xff] %v4964
      %5013 = vst [vmem:[%s361 + $0xf0] sm:$0xff] %v4965
      %5014 = vst [vmem:[%s361 + $0xf8] sm:$0xff] %v4966
      %5015 = vst [vmem:[%s361 + $0x100] sm:$0xff] %v4967
      %5016 = vst [vmem:[%s361 + $0x108] sm:$0xff] %v4968
      %5017 = vst [vmem:[%s361 + $0x110] sm:$0xff] %v4969
      %5018 = vst [vmem:[%s361 + $0x118] sm:$0xff] %v4970
      %5019 = vst [vmem:[%s361 + $0x120] sm:$0xff] %v4971
      %5020 = vst [vmem:[%s361 + $0x128] sm:$0xff] %v4972
      %5021 = vst [vmem:[%s361 + $0x130] sm:$0xff] %v4973
      %5022 = vst [vmem:[%s361 + $0x138] sm:$0xff] %v4974
      %5023 = vst [vmem:[%s361 + $0x140] sm:$0xff] %v4975
      %5024 = vst [vmem:[%s361 + $0x148] sm:$0xff] %v4976
      %5025 = vst [vmem:[%s361 + $0x150] sm:$0xff] %v4977
      %5026 = vst [vmem:[%s361 + $0x158] sm:$0xff] %v4978
      %5027 = vst [vmem:[%s361 + $0x160] sm:$0xff] %v4979
      %5028 = vst [vmem:[%s361 + $0x168] sm:$0xff] %v4980
      %5029 = vst [vmem:[%s361 + $0x170] sm:$0xff] %v4981
      %5030 = vst [vmem:[%s361 + $0x178] sm:$0xff] %v4982
      %s5031 = smul.u32 48, %s21
      %p5032 = scmp.lt.s32.totalorder %s5031, 191
      %s5033 = scalar_select %p5032, %s5031, 191
      %s5034 = smul.addr %s5033, 8
      %s5035 = scalar_lea.vmem %s10, %s5034
      // Predicated region
      $region61: #{forward.1} parent=59 // pred_check
        %p5036 = pneg %p254
      $region62: #{forward.1} parent=59 // pred_check_branch
        %5038 = sbr.rel (%p5036) target = $region64
      $region63: #{forward.1} parent=59 // pred_region
        %s5039 = smul.u32 48, %s21
      $region64: #{forward.1} parent=59 // pred_fallthru
        _
    $region60: #{forward.1} parent=5 // pred_fallthru
      _
    %p5040 = scmp.le.s32.totalorder 2, %s16
    // Predicated region
    $region65: #{forward.1} parent=5 // pred_check
      %p5041 = pneg %p5040
    $region66: #{forward.1} parent=5 // pred_check_branch
      %5043 = sbr.rel (%p5041) target = $region68
    $region67: #{forward.1} parent=5 // pred_region
      %s5044 = ssub.s32 %s16, 2
      // Predicated region
      $region69: #{forward.1} parent=67 // pred_check
        %p5045 = pneg %p260
      $region70: #{forward.1} parent=67 // pred_check_branch
        %5047 = sbr.rel (%p5045) target = $region72
      $region71: #{forward.1} parent=67 // pred_region
        %s5048 = smul.u32 48, %s22
        %p5049 = scmp.lt.s32.totalorder %s5048, 191
        %s5050 = scalar_select %p5049, %s5048, 191
        %s5051 = smul.addr %s5050, 8
        %s5052 = scalar_lea.vmem %s10, %s5051
      $region72: #{forward.1} parent=67 // pred_fallthru
        _
    $region68: #{forward.1} parent=5 // pred_fallthru
      _
  $region6: #{forward.1} parent=0 // loop_footer
    %s20 = sadd.s32 1, %s16
  $region7: #{forward.1} parent=0 // loop_footer_branch
    %15 = sbr.rel target = $region3
  $region8: #{forward.1} parent=0 // loop_exit
    _

</llo_original>
